<compile_context>
chip_gen: v7x
topology: tpu7x:2x2x1
jax: 0.10.0
libtpu: 0.0.40
codegen_flags: <defaults>
</compile_context>

<pallas_src>
import functools
import math

import jax
import jax.numpy as jnp
from jax.experimental import pallas as pl
from jax.experimental.pallas import tpu as pltpu


# ----------------------------------------------------------------------------
# Fused Pallas kernel: one grid step per TransformerLayer (+ vocab head at end)
# ----------------------------------------------------------------------------
def fused_transformer_kernel(
    x_ref,                       # (R, D) f32, R = B*S (batch folded into rows)
    wqkv_ref, bqkv_ref,          # (1, D, 3D) bf16 / (1, 1, 3D) f32
    wo_ref, bo_ref,              # (1, H, hd, D) bf16 / (1, 1, D) f32
    g1_ref, be1_ref,             # (1, 1, D) f32
    w1_ref, bf1_ref,             # (1, D, 4D) bf16 / (1, 1, 4D) f32
    w2_ref, bf2_ref,             # (1, 4D, D) bf16 / (1, 1, D) f32
    g2_ref, be2_ref,             # (1, 1, D) f32
    wout_ref, bout_ref,          # (D, Vp) bf16 / (1, Vp) f32
    o_ref,                       # (R, Vp) f32
    x_scratch,                   # VMEM (R, D) f32 - activations carried across layers
    attn_scratch,                # VMEM (R, D) f32 - per-layer attention output
    *, batch, seq, n_heads, head_dim, eps=1e-5,
):
    l = pl.program_id(0)

    @pl.when(l == 0)
    def _():
        x_scratch[...] = x_ref[...]

    D = x_ref.shape[-1]
    H, hd, S = n_heads, head_dim, seq
    scale = 1.0 / math.sqrt(head_dim)
    bf16 = jnp.bfloat16

    x = x_scratch[...]                                   # (R, D) f32

    def layer_norm(y, g, b):
        # PyTorch LayerNorm: biased variance, eps inside the sqrt. All f32.
        mu = jnp.mean(y, axis=-1, keepdims=True)
        var = jnp.mean((y - mu) ** 2, axis=-1, keepdims=True)
        return (y - mu) * jax.lax.rsqrt(var + eps) * g + b

    def mm(a, w):
        # bf16 MXU operands, f32 accumulation.
        return jnp.dot(a.astype(bf16), w, preferred_element_type=jnp.float32)

    # ---- Multi-head self attention -----------------------------------------
    # Fused, full-lane-width QKV projection: (R, D) @ (D, 3D).
    qkv = mm(x, wqkv_ref[0]) + bqkv_ref[0]               # (R, 3D) f32
    wo_l = wo_ref[0]                                     # (H, hd, D) bf16

    # Per-(batch, head) scores / softmax / PV.  The "concat heads + fc_out"
    # projection is folded in as an accumulated sum of per-head (hd, D)
    # matmuls -- identical to (S, H*hd) @ (D, D) without any lane concat.
    for b in range(batch):
        rows = qkv[b * S:(b + 1) * S, :]                 # (S, 3D) f32
        acc = None
        for h in range(H):
            q = (rows[:, h * hd:(h + 1) * hd] * scale).astype(bf16)
            k = rows[:, D + h * hd:D + (h + 1) * hd].astype(bf16)
            v = rows[:, 2 * D + h * hd:2 * D + (h + 1) * hd].astype(bf16)
            s = jnp.einsum("qd,kd->qk", q, k,
                           preferred_element_type=jnp.float32)    # (S, S)
            s = s - jnp.max(s, axis=-1, keepdims=True)
            p = jnp.exp(s)
            p = p * pl.reciprocal(jnp.sum(p, axis=-1, keepdims=True),
                                  approx=True)
            ctx = jnp.dot(p.astype(bf16), v,
                          preferred_element_type=jnp.float32)     # (S, hd)
            contrib = mm(ctx, wo_l[h])                            # (S, D)
            acc = contrib if acc is None else acc + contrib
        attn_scratch[b * S:(b + 1) * S, :] = acc

    attn = attn_scratch[...] + bo_ref[0]                 # (R, D) f32
    x1 = layer_norm(x + attn, g1_ref[0], be1_ref[0])

    # ---- FFN: Linear(D, 4D) -> ReLU -> Linear(4D, D) ------------------------
    h1 = jnp.maximum(mm(x1, w1_ref[0]) + bf1_ref[0], 0.0)
    ffn = mm(h1, w2_ref[0]) + bf2_ref[0]
    x2 = layer_norm(x1 + ffn, g2_ref[0], be2_ref[0])

    x_scratch[...] = x2

    # ---- Vocab projection at the last layer step (padded, lane-dense store) -
    @pl.when(l == pl.num_programs(0) - 1)
    def _():
        o_ref[...] = mm(x2, wout_ref[...]) + bout_ref[...]


# ----------------------------------------------------------------------------
# Wrapper around pallas_call
# ----------------------------------------------------------------------------
def run_fused_transformer(x_rows, kp, *, batch, seq, n_heads, num_layers):
    R, D = x_rows.shape
    Vp = kp["w_out"].shape[-1]
    head_dim = D // n_heads

    layer_names = ["wqkv", "bqkv", "wo", "bo", "g1", "be1",
                   "w1", "bf1", "w2", "bf2", "g2", "be2"]
    layer_weights = [kp[n] for n in layer_names]
    const_weights = [kp["w_out"], kp["b_out"]]

    def layer_spec(arr):
        zeros = (0,) * (arr.ndim - 1)
        return pl.BlockSpec((1,) + arr.shape[1:],
                            lambda l, _z=zeros: (l,) + _z)

    def const_spec(shape):
        zeros = (0,) * len(shape)
        return pl.BlockSpec(shape, lambda l, _z=zeros: _z)

    kernel = functools.partial(
        fused_transformer_kernel,
        batch=batch, seq=seq, n_heads=n_heads, head_dim=head_dim,
    )
    return pl.pallas_call(
        kernel,
        out_shape=jax.ShapeDtypeStruct((R, Vp), jnp.float32),
        grid_spec=pltpu.PrefetchScalarGridSpec(
            num_scalar_prefetch=0,
            grid=(num_layers,),
            in_specs=[const_spec(x_rows.shape)]
            + [layer_spec(w) for w in layer_weights]
            + [const_spec(w.shape) for w in const_weights],
            out_specs=const_spec((R, Vp)),
            scratch_shapes=[pltpu.VMEM((R, D), jnp.float32),
                            pltpu.VMEM((R, D), jnp.float32)],
        ),
        compiler_params=pltpu.CompilerParams(
            dimension_semantics=("arbitrary",)),
    )(x_rows, *layer_weights, *const_weights)


# ----------------------------------------------------------------------------
# Parameter init (PyTorch-like) and kernel-layout preparation
# ----------------------------------------------------------------------------
def init_params(key, vocab_size, d_model, n_heads, num_layers, max_len):
    keys = iter(jax.random.split(key, 4 + num_layers * 12))

    def linear(in_f, out_f):
        # PyTorch nn.Linear default init; weight stored pre-transposed as
        # (in_f, out_f) so y = x @ W + b. Bias kept 2-D (1, out_f).
        bound = 1.0 / math.sqrt(in_f)
        w = jax.random.uniform(next(keys), (in_f, out_f), jnp.float32, -bound, bound)
        b = jax.random.uniform(next(keys), (1, out_f), jnp.float32, -bound, bound)
        return w, b

    params = {
        "embedding": jax.random.normal(next(keys), (vocab_size, d_model), jnp.float32),
        "pos_enc": jax.random.normal(next(keys), (max_len, d_model), jnp.float32),
        "layers": [],
    }
    for _ in range(num_layers):
        lp = {}
        lp["wq"], lp["bq"] = linear(d_model, d_model)
        lp["wk"], lp["bk"] = linear(d_model, d_model)
        lp["wv"], lp["bv"] = linear(d_model, d_model)
        lp["wo"], lp["bo"] = linear(d_model, d_model)
        lp["g1"] = jnp.ones((1, d_model), jnp.float32)
        lp["be1"] = jnp.zeros((1, d_model), jnp.float32)
        lp["w1"], lp["bf1"] = linear(d_model, d_model * 4)
        lp["w2"], lp["bf2"] = linear(d_model * 4, d_model)
        lp["g2"] = jnp.ones((1, d_model), jnp.float32)
        lp["be2"] = jnp.zeros((1, d_model), jnp.float32)
        params["layers"].append(lp)
    params["w_out"], params["b_out"] = linear(d_model, vocab_size)
    return params


def prepare_kernel_params(params, n_heads):
    """Restructure canonical params for the fused kernel:
    QKV fused into a single compact (L, D, 3D) bf16 weight, fc_out stored per
    head (L, H, hd, D) bf16 (lane dim = full D), FFN weights bf16, vocab
    projection padded to a 128-lane multiple for unmasked output stores."""
    D = params["embedding"].shape[1]
    hd = D // n_heads
    layers = params["layers"]
    bf16 = jnp.bfloat16

    def stack(fn, dtype=None):
        arr = jnp.stack([fn(lp) for lp in layers])
        return arr.astype(dtype) if dtype is not None else arr

    kp = {
        "wqkv": stack(lambda lp: jnp.concatenate(
            [lp["wq"], lp["wk"], lp["wv"]], axis=1), bf16),          # (L, D, 3D)
        "bqkv": stack(lambda lp: jnp.concatenate(
            [lp["bq"], lp["bk"], lp["bv"]], axis=1)),                # (L, 1, 3D)
        "wo": stack(lambda lp: lp["wo"].reshape(n_heads, hd, D), bf16),
        "bo": stack(lambda lp: lp["bo"]),
        "g1": stack(lambda lp: lp["g1"]),
        "be1": stack(lambda lp: lp["be1"]),
        "w1": stack(lambda lp: lp["w1"], bf16),
        "bf1": stack(lambda lp: lp["bf1"]),
        "w2": stack(lambda lp: lp["w2"], bf16),
        "bf2": stack(lambda lp: lp["bf2"]),
        "g2": stack(lambda lp: lp["g2"]),
        "be2": stack(lambda lp: lp["be2"]),
    }

    w_out, b_out = params["w_out"], params["b_out"]
    V = w_out.shape[1]
    Vp = max(128, ((V + 127) // 128) * 128)
    kp["w_out"] = jnp.zeros((D, Vp), jnp.float32).at[:, :V].set(w_out).astype(bf16)
    kp["b_out"] = jnp.zeros((1, Vp), jnp.float32).at[:, :V].set(b_out)
    return kp


def custom_transformer_forward(tokens, params, n_heads):
    B, S = tokens.shape
    D = params["embedding"].shape[1]
    V = params["w_out"].shape[1]
    # Embedding gather + positional encoding (plain JAX glue).
    x = jnp.take(params["embedding"], tokens, axis=0) + params["pos_enc"][:S, :]
    x_rows = x.reshape(B * S, D)                       # batch folded into rows
    kp = prepare_kernel_params(params, n_heads)
    logits_rows = run_fused_transformer(
        x_rows, kp, batch=B, seq=S, n_heads=n_heads,
        num_layers=len(params["layers"]))
    return logits_rows.reshape(B, S, -1)[:, :, :V]


# ----------------------------------------------------------------------------
# Pure-JAX f32 reference (mirrors the PyTorch module exactly)
# ----------------------------------------------------------------------------
def reference_forward(tokens, params, n_heads):
    B, S = tokens.shape
    x = jnp.take(params["embedding"], tokens, axis=0) + params["pos_enc"][:S, :]

    def layer_norm(y, g, b, eps=1e-5):
        mu = jnp.mean(y, axis=-1, keepdims=True)
        var = jnp.mean((y - mu) ** 2, axis=-1, keepdims=True)
        return (y - mu) / jnp.sqrt(var + eps) * g + b

    for lp in params["layers"]:
        D = x.shape[-1]
        hd = D // n_heads
        q = x @ lp["wq"] + lp["bq"]
        k = x @ lp["wk"] + lp["bk"]
        v = x @ lp["wv"] + lp["bv"]
        q = q.reshape(B, S, n_heads, hd).transpose(0, 2, 1, 3)
        k = k.reshape(B, S, n_heads, hd).transpose(0, 2, 1, 3)
        v = v.reshape(B, S, n_heads, hd).transpose(0, 2, 1, 3)
        scores = jnp.einsum("bhqd,bhkd->bhqk", q, k) / math.sqrt(hd)
        p = jax.nn.softmax(scores, axis=-1)
        attn = jnp.einsum("bhqk,bhkd->bhqd", p, v)
        attn = attn.transpose(0, 2, 1, 3).reshape(B, S, D)
        attn = attn @ lp["wo"] + lp["bo"]
        x = layer_norm(x + attn, lp["g1"], lp["be1"])
        ffn = jnp.maximum(x @ lp["w1"] + lp["bf1"], 0.0) @ lp["w2"] + lp["bf2"]
        x = layer_norm(x + ffn, lp["g2"], lp["be2"])
    return x @ params["w_out"] + params["b_out"]


# ----------------------------------------------------------------------------
if __name__ == "__main__":
    vocab_size = 16
    d_model = 32
    n_heads = 4
    num_layers = 2
    max_len = 20
    batch = 2
    seq = 8

    key = jax.random.PRNGKey(0)
    pkey, tkey = jax.random.split(key)
    params = init_params(pkey, vocab_size, d_model, n_heads, num_layers, max_len)
    tokens = jax.random.randint(tkey, (batch, seq), 0, vocab_size, dtype=jnp.int32)

    logits = custom_transformer_forward(tokens, params, n_heads)
    logits = jax.block_until_ready(logits)

    ref = jax.block_until_ready(reference_forward(tokens, params, n_heads))
    assert logits.shape == (batch, seq, vocab_size)
    # Tolerance covers bf16 matmul operands (f32 accumulation) and the EUP
    # approx-reciprocal softmax vs the pure-f32 reference.
    assert jnp.allclose(logits, ref, rtol=3e-2, atol=3e-2), "mismatch vs reference"

    print("KERNEL_OK")
</pallas_src>

<mosaic_0001>
module attributes {stable_mosaic.version = 11 : i64} {
  func.func @fused_transformer_kernel(%arg0: i32, %arg1: memref<16x32xf32, #tpu.memory_space<vmem>>, %arg2: memref<1x32x96xbf16, #tpu.memory_space<vmem>>, %arg3: memref<1x1x96xf32, #tpu.memory_space<vmem>>, %arg4: memref<1x4x8x32xbf16, #tpu.memory_space<vmem>>, %arg5: memref<1x1x32xf32, #tpu.memory_space<vmem>>, %arg6: memref<1x1x32xf32, #tpu.memory_space<vmem>>, %arg7: memref<1x1x32xf32, #tpu.memory_space<vmem>>, %arg8: memref<1x32x128xbf16, #tpu.memory_space<vmem>>, %arg9: memref<1x1x128xf32, #tpu.memory_space<vmem>>, %arg10: memref<1x128x32xbf16, #tpu.memory_space<vmem>>, %arg11: memref<1x1x32xf32, #tpu.memory_space<vmem>>, %arg12: memref<1x1x32xf32, #tpu.memory_space<vmem>>, %arg13: memref<1x1x32xf32, #tpu.memory_space<vmem>>, %arg14: memref<32x128xbf16, #tpu.memory_space<vmem>>, %arg15: memref<1x128xf32, #tpu.memory_space<vmem>>, %arg16: memref<16x128xf32, #tpu.memory_space<vmem>>, %arg17: memref<16x32xf32, #tpu.memory_space<vmem>>, %arg18: memref<16x32xf32, #tpu.memory_space<vmem>>) attributes {dimension_semantics = [#tpu.dimension_semantics<arbitrary>], iteration_bounds = array<i64: 2>, scalar_prefetch = 0 : i64, scratch_operands = 2 : i64, tpu.core_type = #tpu.core_type<tc>, window_params = [{pipeline_mode = #tpu.pipeline_mode<synchronous>, transform_indices = @transform_0, window_bounds = array<i64: 16, 32>}, {transform_indices = @transform_1, window_bounds = array<i64: 1, 32, 96>}, {transform_indices = @transform_2, window_bounds = array<i64: 1, 1, 96>}, {transform_indices = @transform_3, window_bounds = array<i64: 1, 4, 8, 32>}, {transform_indices = @transform_4, window_bounds = array<i64: 1, 1, 32>}, {transform_indices = @transform_5, window_bounds = array<i64: 1, 1, 32>}, {transform_indices = @transform_6, window_bounds = array<i64: 1, 1, 32>}, {transform_indices = @transform_7, window_bounds = array<i64: 1, 32, 128>}, {transform_indices = @transform_8, window_bounds = array<i64: 1, 1, 128>}, {transform_indices = @transform_9, window_bounds = array<i64: 1, 128, 32>}, {transform_indices = @transform_10, window_bounds = array<i64: 1, 1, 32>}, {transform_indices = @transform_11, window_bounds = array<i64: 1, 1, 32>}, {transform_indices = @transform_12, window_bounds = array<i64: 1, 1, 32>}, {pipeline_mode = #tpu.pipeline_mode<synchronous>, transform_indices = @transform_13, window_bounds = array<i64: 32, 128>}, {pipeline_mode = #tpu.pipeline_mode<synchronous>, transform_indices = @transform_14, window_bounds = array<i64: 1, 128>}, {pipeline_mode = #tpu.pipeline_mode<synchronous>, transform_indices = @transform_15, window_bounds = array<i64: 16, 128>}]} {
    %c0_i32 = arith.constant 0 : i32
    %0 = arith.cmpi eq, %arg0, %c0_i32 : i32
    %1 = arith.extui %0 : i1 to i32
    %c0_i32_0 = arith.constant 0 : i32
    %2 = arith.cmpi ne, %1, %c0_i32_0 : i32
    scf.if %2 {
      %c0_108 = arith.constant 0 : index
      %c0_109 = arith.constant 0 : index
      %305 = vector.load %arg1[%c0_108, %c0_109] : memref<16x32xf32, #tpu.memory_space<vmem>>, vector<16x32xf32>
      %c0_110 = arith.constant 0 : index
      %c0_111 = arith.constant 0 : index
      %306 = vector.load %arg17[%c0_110, %c0_111] : memref<16x32xf32, #tpu.memory_space<vmem>>, vector<16x32xf32>
      tpu.vector_store %arg17[%c0_110, %c0_111], %305 {strides = array<i32>} : memref<16x32xf32, #tpu.memory_space<vmem>>, vector<16x32xf32>,
    } else {
    }
    %c0 = arith.constant 0 : index
    %c0_1 = arith.constant 0 : index
    %3 = vector.load %arg17[%c0, %c0_1] : memref<16x32xf32, #tpu.memory_space<vmem>>, vector<16x32xf32>
    %c0_2 = arith.constant 0 : index
    %c0_3 = arith.constant 0 : index
    %c0_4 = arith.constant 0 : index
    %4 = vector.load %arg2[%c0_2, %c0_3, %c0_4] : memref<1x32x96xbf16, #tpu.memory_space<vmem>>, vector<1x32x96xbf16>
    %5 = vector.shape_cast %4 : vector<1x32x96xbf16> to vector<32x96xbf16>
    %6 = arith.truncf %3 : vector<16x32xf32> to vector<16x32xbf16>
    %cst = arith.constant dense<0.000000e+00> : vector<16x96xf32>
    %7 = tpu.matmul %6, %5, %cst {dimension_numbers = #tpu.dot_dimension_numbers<[1], [0], [0], [1], [0, 0, 1, 1], [], []>} : vector<16x32xbf16>, vector<32x96xbf16>, vector<16x96xf32> -> vector<16x96xf32>
    %c0_5 = arith.constant 0 : index
    %c0_6 = arith.constant 0 : index
    %c0_7 = arith.constant 0 : index
    %8 = vector.load %arg3[%c0_5, %c0_6, %c0_7] : memref<1x1x96xf32, #tpu.memory_space<vmem>>, vector<1x1x96xf32>
    %9 = vector.shape_cast %8 : vector<1x1x96xf32> to vector<1x96xf32>
    %10 = vector.broadcast %9 : vector<1x96xf32> to vector<16x96xf32>
    %11 = arith.addf %7, %10 : vector<16x96xf32>
    %c0_8 = arith.constant 0 : index
    %c0_9 = arith.constant 0 : index
    %c0_10 = arith.constant 0 : index
    %c0_11 = arith.constant 0 : index
    %12 = vector.load %arg4[%c0_8, %c0_9, %c0_10, %c0_11] : memref<1x4x8x32xbf16, #tpu.memory_space<vmem>>, vector<1x4x8x32xbf16>
    %13 = vector.shape_cast %12 : vector<1x4x8x32xbf16> to vector<4x8x32xbf16>
    %14 = vector.extract_strided_slice %11 {offsets = [0, 0], sizes = [8, 96], strides = [1, 1]} : vector<16x96xf32> to vector<8x96xf32>
    %15 = vector.extract_strided_slice %14 {offsets = [0, 0], sizes = [8, 8], strides = [1, 1]} : vector<8x96xf32> to vector<8x8xf32>
    %cst_12 = arith.constant 0.353553385 : f32
    %16 = vector.broadcast %cst_12 : f32 to vector<8x8xf32>
    %17 = arith.mulf %15, %16 : vector<8x8xf32>
    %18 = arith.truncf %17 : vector<8x8xf32> to vector<8x8xbf16>
    %19 = vector.extract_strided_slice %14 {offsets = [0, 32], sizes = [8, 8], strides = [1, 1]} : vector<8x96xf32> to vector<8x8xf32>
    %20 = arith.truncf %19 : vector<8x8xf32> to vector<8x8xbf16>
    %21 = vector.extract_strided_slice %14 {offsets = [0, 64], sizes = [8, 8], strides = [1, 1]} : vector<8x96xf32> to vector<8x8xf32>
    %22 = arith.truncf %21 : vector<8x8xf32> to vector<8x8xbf16>
    "tpu.trace_start"() <{level = 10 : i32, message = "qd,kd->qk"}> : () -> ()
    %cst_13 = arith.constant dense<0.000000e+00> : vector<8x8xf32>
    %23 = tpu.matmul %18, %20, %cst_13 {dimension_numbers = #tpu.dot_dimension_numbers<[1], [1], [0], [0], [0, 0, 1, 0], [], []>} : vector<8x8xbf16>, vector<8x8xbf16>, vector<8x8xf32> -> vector<8x8xf32>
    "tpu.trace_stop"() : () -> ()
    %cst_14 = arith.constant dense<0xFF800000> : vector<8xf32>
    %24 = vector.multi_reduction <maximumf>, %23, %cst_14 [1] : vector<8x8xf32> to vector<8xf32>
    %25 = vector.shape_cast %24 : vector<8xf32> to vector<8x1xf32>
    %26 = vector.broadcast %25 : vector<8x1xf32> to vector<8x8xf32>
    %27 = arith.subf %23, %26 : vector<8x8xf32>
    %28 = math.exp %27 : vector<8x8xf32>
    %cst_15 = arith.constant dense<0.000000e+00> : vector<8xf32>
    %29 = vector.multi_reduction <add>, %28, %cst_15 [1] : vector<8x8xf32> to vector<8xf32>
    %30 = vector.shape_cast %29 : vector<8xf32> to vector<8x1xf32>
    %31 = tpu.reciprocal %30 {approx = true} : vector<8x1xf32> -> vector<8x1xf32>
    %32 = vector.broadcast %31 : vector<8x1xf32> to vector<8x8xf32>
    %33 = arith.mulf %28, %32 : vector<8x8xf32>
    %34 = arith.truncf %33 : vector<8x8xf32> to vector<8x8xbf16>
    %cst_16 = arith.constant dense<0.000000e+00> : vector<8x8xf32>
    %35 = tpu.matmul %34, %22, %cst_16 {dimension_numbers = #tpu.dot_dimension_numbers<[1], [0], [0], [1], [0, 0, 1, 1], [], []>} : vector<8x8xbf16>, vector<8x8xbf16>, vector<8x8xf32> -> vector<8x8xf32>
    %36 = vector.extract_strided_slice %13 {offsets = [0, 0, 0], sizes = [1, 8, 32], strides = [1, 1, 1]} : vector<4x8x32xbf16> to vector<1x8x32xbf16>
    %37 = vector.shape_cast %36 : vector<1x8x32xbf16> to vector<8x32xbf16>
    %38 = arith.truncf %35 : vector<8x8xf32> to vector<8x8xbf16>
    %cst_17 = arith.constant dense<0.000000e+00> : vector<8x32xf32>
    %39 = tpu.matmul %38, %37, %cst_17 {dimension_numbers = #tpu.dot_dimension_numbers<[1], [0], [0], [1], [0, 0, 1, 1], [], []>} : vector<8x8xbf16>, vector<8x32xbf16>, vector<8x32xf32> -> vector<8x32xf32>
    %40 = vector.extract_strided_slice %14 {offsets = [0, 8], sizes = [8, 8], strides = [1, 1]} : vector<8x96xf32> to vector<8x8xf32>
    %cst_18 = arith.constant 0.353553385 : f32
    %41 = vector.broadcast %cst_18 : f32 to vector<8x8xf32>
    %42 = arith.mulf %40, %41 : vector<8x8xf32>
    %43 = arith.truncf %42 : vector<8x8xf32> to vector<8x8xbf16>
    %44 = vector.extract_strided_slice %14 {offsets = [0, 40], sizes = [8, 8], strides = [1, 1]} : vector<8x96xf32> to vector<8x8xf32>
    %45 = arith.truncf %44 : vector<8x8xf32> to vector<8x8xbf16>
    %46 = vector.extract_strided_slice %14 {offsets = [0, 72], sizes = [8, 8], strides = [1, 1]} : vector<8x96xf32> to vector<8x8xf32>
    %47 = arith.truncf %46 : vector<8x8xf32> to vector<8x8xbf16>
    "tpu.trace_start"() <{level = 10 : i32, message = "qd,kd->qk"}> : () -> ()
    %cst_19 = arith.constant dense<0.000000e+00> : vector<8x8xf32>
    %48 = tpu.matmul %43, %45, %cst_19 {dimension_numbers = #tpu.dot_dimension_numbers<[1], [1], [0], [0], [0, 0, 1, 0], [], []>} : vector<8x8xbf16>, vector<8x8xbf16>, vector<8x8xf32> -> vector<8x8xf32>
    "tpu.trace_stop"() : () -> ()
    %cst_20 = arith.constant dense<0xFF800000> : vector<8xf32>
    %49 = vector.multi_reduction <maximumf>, %48, %cst_20 [1] : vector<8x8xf32> to vector<8xf32>
    %50 = vector.shape_cast %49 : vector<8xf32> to vector<8x1xf32>
    %51 = vector.broadcast %50 : vector<8x1xf32> to vector<8x8xf32>
    %52 = arith.subf %48, %51 : vector<8x8xf32>
    %53 = math.exp %52 : vector<8x8xf32>
    %cst_21 = arith.constant dense<0.000000e+00> : vector<8xf32>
    %54 = vector.multi_reduction <add>, %53, %cst_21 [1] : vector<8x8xf32> to vector<8xf32>
    %55 = vector.shape_cast %54 : vector<8xf32> to vector<8x1xf32>
    %56 = tpu.reciprocal %55 {approx = true} : vector<8x1xf32> -> vector<8x1xf32>
    %57 = vector.broadcast %56 : vector<8x1xf32> to vector<8x8xf32>
    %58 = arith.mulf %53, %57 : vector<8x8xf32>
    %59 = arith.truncf %58 : vector<8x8xf32> to vector<8x8xbf16>
    %cst_22 = arith.constant dense<0.000000e+00> : vector<8x8xf32>
    %60 = tpu.matmul %59, %47, %cst_22 {dimension_numbers = #tpu.dot_dimension_numbers<[1], [0], [0], [1], [0, 0, 1, 1], [], []>} : vector<8x8xbf16>, vector<8x8xbf16>, vector<8x8xf32> -> vector<8x8xf32>
    %61 = vector.extract_strided_slice %13 {offsets = [1, 0, 0], sizes = [1, 8, 32], strides = [1, 1, 1]} : vector<4x8x32xbf16> to vector<1x8x32xbf16>
    %62 = vector.shape_cast %61 : vector<1x8x32xbf16> to vector<8x32xbf16>
    %63 = arith.truncf %60 : vector<8x8xf32> to vector<8x8xbf16>
    %cst_23 = arith.constant dense<0.000000e+00> : vector<8x32xf32>
    %64 = tpu.matmul %63, %62, %cst_23 {dimension_numbers = #tpu.dot_dimension_numbers<[1], [0], [0], [1], [0, 0, 1, 1], [], []>} : vector<8x8xbf16>, vector<8x32xbf16>, vector<8x32xf32> -> vector<8x32xf32>
    %65 = arith.addf %39, %64 : vector<8x32xf32>
    %66 = vector.extract_strided_slice %14 {offsets = [0, 16], sizes = [8, 8], strides = [1, 1]} : vector<8x96xf32> to vector<8x8xf32>
    %cst_24 = arith.constant 0.353553385 : f32
    %67 = vector.broadcast %cst_24 : f32 to vector<8x8xf32>
    %68 = arith.mulf %66, %67 : vector<8x8xf32>
    %69 = arith.truncf %68 : vector<8x8xf32> to vector<8x8xbf16>
    %70 = vector.extract_strided_slice %14 {offsets = [0, 48], sizes = [8, 8], strides = [1, 1]} : vector<8x96xf32> to vector<8x8xf32>
    %71 = arith.truncf %70 : vector<8x8xf32> to vector<8x8xbf16>
    %72 = vector.extract_strided_slice %14 {offsets = [0, 80], sizes = [8, 8], strides = [1, 1]} : vector<8x96xf32> to vector<8x8xf32>
    %73 = arith.truncf %72 : vector<8x8xf32> to vector<8x8xbf16>
    "tpu.trace_start"() <{level = 10 : i32, message = "qd,kd->qk"}> : () -> ()
    %cst_25 = arith.constant dense<0.000000e+00> : vector<8x8xf32>
    %74 = tpu.matmul %69, %71, %cst_25 {dimension_numbers = #tpu.dot_dimension_numbers<[1], [1], [0], [0], [0, 0, 1, 0], [], []>} : vector<8x8xbf16>, vector<8x8xbf16>, vector<8x8xf32> -> vector<8x8xf32>
    "tpu.trace_stop"() : () -> ()
    %cst_26 = arith.constant dense<0xFF800000> : vector<8xf32>
    %75 = vector.multi_reduction <maximumf>, %74, %cst_26 [1] : vector<8x8xf32> to vector<8xf32>
    %76 = vector.shape_cast %75 : vector<8xf32> to vector<8x1xf32>
    %77 = vector.broadcast %76 : vector<8x1xf32> to vector<8x8xf32>
    %78 = arith.subf %74, %77 : vector<8x8xf32>
    %79 = math.exp %78 : vector<8x8xf32>
    %cst_27 = arith.constant dense<0.000000e+00> : vector<8xf32>
    %80 = vector.multi_reduction <add>, %79, %cst_27 [1] : vector<8x8xf32> to vector<8xf32>
    %81 = vector.shape_cast %80 : vector<8xf32> to vector<8x1xf32>
    %82 = tpu.reciprocal %81 {approx = true} : vector<8x1xf32> -> vector<8x1xf32>
    %83 = vector.broadcast %82 : vector<8x1xf32> to vector<8x8xf32>
    %84 = arith.mulf %79, %83 : vector<8x8xf32>
    %85 = arith.truncf %84 : vector<8x8xf32> to vector<8x8xbf16>
    %cst_28 = arith.constant dense<0.000000e+00> : vector<8x8xf32>
    %86 = tpu.matmul %85, %73, %cst_28 {dimension_numbers = #tpu.dot_dimension_numbers<[1], [0], [0], [1], [0, 0, 1, 1], [], []>} : vector<8x8xbf16>, vector<8x8xbf16>, vector<8x8xf32> -> vector<8x8xf32>
    %87 = vector.extract_strided_slice %13 {offsets = [2, 0, 0], sizes = [1, 8, 32], strides = [1, 1, 1]} : vector<4x8x32xbf16> to vector<1x8x32xbf16>
    %88 = vector.shape_cast %87 : vector<1x8x32xbf16> to vector<8x32xbf16>
    %89 = arith.truncf %86 : vector<8x8xf32> to vector<8x8xbf16>
    %cst_29 = arith.constant dense<0.000000e+00> : vector<8x32xf32>
    %90 = tpu.matmul %89, %88, %cst_29 {dimension_numbers = #tpu.dot_dimension_numbers<[1], [0], [0], [1], [0, 0, 1, 1], [], []>} : vector<8x8xbf16>, vector<8x32xbf16>, vector<8x32xf32> -> vector<8x32xf32>
    %91 = arith.addf %65, %90 : vector<8x32xf32>
    %92 = vector.extract_strided_slice %14 {offsets = [0, 24], sizes = [8, 8], strides = [1, 1]} : vector<8x96xf32> to vector<8x8xf32>
    %cst_30 = arith.constant 0.353553385 : f32
    %93 = vector.broadcast %cst_30 : f32 to vector<8x8xf32>
    %94 = arith.mulf %92, %93 : vector<8x8xf32>
    %95 = arith.truncf %94 : vector<8x8xf32> to vector<8x8xbf16>
    %96 = vector.extract_strided_slice %14 {offsets = [0, 56], sizes = [8, 8], strides = [1, 1]} : vector<8x96xf32> to vector<8x8xf32>
    %97 = arith.truncf %96 : vector<8x8xf32> to vector<8x8xbf16>
    %98 = vector.extract_strided_slice %14 {offsets = [0, 88], sizes = [8, 8], strides = [1, 1]} : vector<8x96xf32> to vector<8x8xf32>
    %99 = arith.truncf %98 : vector<8x8xf32> to vector<8x8xbf16>
    "tpu.trace_start"() <{level = 10 : i32, message = "qd,kd->qk"}> : () -> ()
    %cst_31 = arith.constant dense<0.000000e+00> : vector<8x8xf32>
    %100 = tpu.matmul %95, %97, %cst_31 {dimension_numbers = #tpu.dot_dimension_numbers<[1], [1], [0], [0], [0, 0, 1, 0], [], []>} : vector<8x8xbf16>, vector<8x8xbf16>, vector<8x8xf32> -> vector<8x8xf32>
    "tpu.trace_stop"() : () -> ()
    %cst_32 = arith.constant dense<0xFF800000> : vector<8xf32>
    %101 = vector.multi_reduction <maximumf>, %100, %cst_32 [1] : vector<8x8xf32> to vector<8xf32>
    %102 = vector.shape_cast %101 : vector<8xf32> to vector<8x1xf32>
    %103 = vector.broadcast %102 : vector<8x1xf32> to vector<8x8xf32>
    %104 = arith.subf %100, %103 : vector<8x8xf32>
    %105 = math.exp %104 : vector<8x8xf32>
    %cst_33 = arith.constant dense<0.000000e+00> : vector<8xf32>
    %106 = vector.multi_reduction <add>, %105, %cst_33 [1] : vector<8x8xf32> to vector<8xf32>
    %107 = vector.shape_cast %106 : vector<8xf32> to vector<8x1xf32>
    %108 = tpu.reciprocal %107 {approx = true} : vector<8x1xf32> -> vector<8x1xf32>
    %109 = vector.broadcast %108 : vector<8x1xf32> to vector<8x8xf32>
    %110 = arith.mulf %105, %109 : vector<8x8xf32>
    %111 = arith.truncf %110 : vector<8x8xf32> to vector<8x8xbf16>
    %cst_34 = arith.constant dense<0.000000e+00> : vector<8x8xf32>
    %112 = tpu.matmul %111, %99, %cst_34 {dimension_numbers = #tpu.dot_dimension_numbers<[1], [0], [0], [1], [0, 0, 1, 1], [], []>} : vector<8x8xbf16>, vector<8x8xbf16>, vector<8x8xf32> -> vector<8x8xf32>
    %113 = vector.extract_strided_slice %13 {offsets = [3, 0, 0], sizes = [1, 8, 32], strides = [1, 1, 1]} : vector<4x8x32xbf16> to vector<1x8x32xbf16>
    %114 = vector.shape_cast %113 : vector<1x8x32xbf16> to vector<8x32xbf16>
    %115 = arith.truncf %112 : vector<8x8xf32> to vector<8x8xbf16>
    %cst_35 = arith.constant dense<0.000000e+00> : vector<8x32xf32>
    %116 = tpu.matmul %115, %114, %cst_35 {dimension_numbers = #tpu.dot_dimension_numbers<[1], [0], [0], [1], [0, 0, 1, 1], [], []>} : vector<8x8xbf16>, vector<8x32xbf16>, vector<8x32xf32> -> vector<8x32xf32>
    %117 = arith.addf %91, %116 : vector<8x32xf32>
    %c0_36 = arith.constant 0 : index
    %c0_37 = arith.constant 0 : index
    %118 = vector.load %arg18[%c0_36, %c0_37] : memref<16x32xf32, #tpu.memory_space<vmem>>, vector<8x32xf32>
    tpu.vector_store %arg18[%c0_36, %c0_37], %117 {strides = array<i32>} : memref<16x32xf32, #tpu.memory_space<vmem>>, vector<8x32xf32>,
    %119 = vector.extract_strided_slice %11 {offsets = [8, 0], sizes = [8, 96], strides = [1, 1]} : vector<16x96xf32> to vector<8x96xf32>
    %120 = vector.extract_strided_slice %119 {offsets = [0, 0], sizes = [8, 8], strides = [1, 1]} : vector<8x96xf32> to vector<8x8xf32>
    %cst_38 = arith.constant 0.353553385 : f32
    %121 = vector.broadcast %cst_38 : f32 to vector<8x8xf32>
    %122 = arith.mulf %120, %121 : vector<8x8xf32>
    %123 = arith.truncf %122 : vector<8x8xf32> to vector<8x8xbf16>
    %124 = vector.extract_strided_slice %119 {offsets = [0, 32], sizes = [8, 8], strides = [1, 1]} : vector<8x96xf32> to vector<8x8xf32>
    %125 = arith.truncf %124 : vector<8x8xf32> to vector<8x8xbf16>
    %126 = vector.extract_strided_slice %119 {offsets = [0, 64], sizes = [8, 8], strides = [1, 1]} : vector<8x96xf32> to vector<8x8xf32>
    %127 = arith.truncf %126 : vector<8x8xf32> to vector<8x8xbf16>
    "tpu.trace_start"() <{level = 10 : i32, message = "qd,kd->qk"}> : () -> ()
    %cst_39 = arith.constant dense<0.000000e+00> : vector<8x8xf32>
    %128 = tpu.matmul %123, %125, %cst_39 {dimension_numbers = #tpu.dot_dimension_numbers<[1], [1], [0], [0], [0, 0, 1, 0], [], []>} : vector<8x8xbf16>, vector<8x8xbf16>, vector<8x8xf32> -> vector<8x8xf32>
    "tpu.trace_stop"() : () -> ()
    %cst_40 = arith.constant dense<0xFF800000> : vector<8xf32>
    %129 = vector.multi_reduction <maximumf>, %128, %cst_40 [1] : vector<8x8xf32> to vector<8xf32>
    %130 = vector.shape_cast %129 : vector<8xf32> to vector<8x1xf32>
    %131 = vector.broadcast %130 : vector<8x1xf32> to vector<8x8xf32>
    %132 = arith.subf %128, %131 : vector<8x8xf32>
    %133 = math.exp %132 : vector<8x8xf32>
    %cst_41 = arith.constant dense<0.000000e+00> : vector<8xf32>
    %134 = vector.multi_reduction <add>, %133, %cst_41 [1] : vector<8x8xf32> to vector<8xf32>
    %135 = vector.shape_cast %134 : vector<8xf32> to vector<8x1xf32>
    %136 = tpu.reciprocal %135 {approx = true} : vector<8x1xf32> -> vector<8x1xf32>
    %137 = vector.broadcast %136 : vector<8x1xf32> to vector<8x8xf32>
    %138 = arith.mulf %133, %137 : vector<8x8xf32>
    %139 = arith.truncf %138 : vector<8x8xf32> to vector<8x8xbf16>
    %cst_42 = arith.constant dense<0.000000e+00> : vector<8x8xf32>
    %140 = tpu.matmul %139, %127, %cst_42 {dimension_numbers = #tpu.dot_dimension_numbers<[1], [0], [0], [1], [0, 0, 1, 1], [], []>} : vector<8x8xbf16>, vector<8x8xbf16>, vector<8x8xf32> -> vector<8x8xf32>
    %141 = vector.extract_strided_slice %13 {offsets = [0, 0, 0], sizes = [1, 8, 32], strides = [1, 1, 1]} : vector<4x8x32xbf16> to vector<1x8x32xbf16>
    %142 = vector.shape_cast %141 : vector<1x8x32xbf16> to vector<8x32xbf16>
    %143 = arith.truncf %140 : vector<8x8xf32> to vector<8x8xbf16>
    %cst_43 = arith.constant dense<0.000000e+00> : vector<8x32xf32>
    %144 = tpu.matmul %143, %142, %cst_43 {dimension_numbers = #tpu.dot_dimension_numbers<[1], [0], [0], [1], [0, 0, 1, 1], [], []>} : vector<8x8xbf16>, vector<8x32xbf16>, vector<8x32xf32> -> vector<8x32xf32>
    %145 = vector.extract_strided_slice %119 {offsets = [0, 8], sizes = [8, 8], strides = [1, 1]} : vector<8x96xf32> to vector<8x8xf32>
    %cst_44 = arith.constant 0.353553385 : f32
    %146 = vector.broadcast %cst_44 : f32 to vector<8x8xf32>
    %147 = arith.mulf %145, %146 : vector<8x8xf32>
    %148 = arith.truncf %147 : vector<8x8xf32> to vector<8x8xbf16>
    %149 = vector.extract_strided_slice %119 {offsets = [0, 40], sizes = [8, 8], strides = [1, 1]} : vector<8x96xf32> to vector<8x8xf32>
    %150 = arith.truncf %149 : vector<8x8xf32> to vector<8x8xbf16>
    %151 = vector.extract_strided_slice %119 {offsets = [0, 72], sizes = [8, 8], strides = [1, 1]} : vector<8x96xf32> to vector<8x8xf32>
    %152 = arith.truncf %151 : vector<8x8xf32> to vector<8x8xbf16>
    "tpu.trace_start"() <{level = 10 : i32, message = "qd,kd->qk"}> : () -> ()
    %cst_45 = arith.constant dense<0.000000e+00> : vector<8x8xf32>
    %153 = tpu.matmul %148, %150, %cst_45 {dimension_numbers = #tpu.dot_dimension_numbers<[1], [1], [0], [0], [0, 0, 1, 0], [], []>} : vector<8x8xbf16>, vector<8x8xbf16>, vector<8x8xf32> -> vector<8x8xf32>
    "tpu.trace_stop"() : () -> ()
    %cst_46 = arith.constant dense<0xFF800000> : vector<8xf32>
    %154 = vector.multi_reduction <maximumf>, %153, %cst_46 [1] : vector<8x8xf32> to vector<8xf32>
    %155 = vector.shape_cast %154 : vector<8xf32> to vector<8x1xf32>
    %156 = vector.broadcast %155 : vector<8x1xf32> to vector<8x8xf32>
    %157 = arith.subf %153, %156 : vector<8x8xf32>
    %158 = math.exp %157 : vector<8x8xf32>
    %cst_47 = arith.constant dense<0.000000e+00> : vector<8xf32>
    %159 = vector.multi_reduction <add>, %158, %cst_47 [1] : vector<8x8xf32> to vector<8xf32>
    %160 = vector.shape_cast %159 : vector<8xf32> to vector<8x1xf32>
    %161 = tpu.reciprocal %160 {approx = true} : vector<8x1xf32> -> vector<8x1xf32>
    %162 = vector.broadcast %161 : vector<8x1xf32> to vector<8x8xf32>
    %163 = arith.mulf %158, %162 : vector<8x8xf32>
    %164 = arith.truncf %163 : vector<8x8xf32> to vector<8x8xbf16>
    %cst_48 = arith.constant dense<0.000000e+00> : vector<8x8xf32>
    %165 = tpu.matmul %164, %152, %cst_48 {dimension_numbers = #tpu.dot_dimension_numbers<[1], [0], [0], [1], [0, 0, 1, 1], [], []>} : vector<8x8xbf16>, vector<8x8xbf16>, vector<8x8xf32> -> vector<8x8xf32>
    %166 = vector.extract_strided_slice %13 {offsets = [1, 0, 0], sizes = [1, 8, 32], strides = [1, 1, 1]} : vector<4x8x32xbf16> to vector<1x8x32xbf16>
    %167 = vector.shape_cast %166 : vector<1x8x32xbf16> to vector<8x32xbf16>
    %168 = arith.truncf %165 : vector<8x8xf32> to vector<8x8xbf16>
    %cst_49 = arith.constant dense<0.000000e+00> : vector<8x32xf32>
    %169 = tpu.matmul %168, %167, %cst_49 {dimension_numbers = #tpu.dot_dimension_numbers<[1], [0], [0], [1], [0, 0, 1, 1], [], []>} : vector<8x8xbf16>, vector<8x32xbf16>, vector<8x32xf32> -> vector<8x32xf32>
    %170 = arith.addf %144, %169 : vector<8x32xf32>
    %171 = vector.extract_strided_slice %119 {offsets = [0, 16], sizes = [8, 8], strides = [1, 1]} : vector<8x96xf32> to vector<8x8xf32>
    %cst_50 = arith.constant 0.353553385 : f32
    %172 = vector.broadcast %cst_50 : f32 to vector<8x8xf32>
    %173 = arith.mulf %171, %172 : vector<8x8xf32>
    %174 = arith.truncf %173 : vector<8x8xf32> to vector<8x8xbf16>
    %175 = vector.extract_strided_slice %119 {offsets = [0, 48], sizes = [8, 8], strides = [1, 1]} : vector<8x96xf32> to vector<8x8xf32>
    %176 = arith.truncf %175 : vector<8x8xf32> to vector<8x8xbf16>
    %177 = vector.extract_strided_slice %119 {offsets = [0, 80], sizes = [8, 8], strides = [1, 1]} : vector<8x96xf32> to vector<8x8xf32>
    %178 = arith.truncf %177 : vector<8x8xf32> to vector<8x8xbf16>
    "tpu.trace_start"() <{level = 10 : i32, message = "qd,kd->qk"}> : () -> ()
    %cst_51 = arith.constant dense<0.000000e+00> : vector<8x8xf32>
    %179 = tpu.matmul %174, %176, %cst_51 {dimension_numbers = #tpu.dot_dimension_numbers<[1], [1], [0], [0], [0, 0, 1, 0], [], []>} : vector<8x8xbf16>, vector<8x8xbf16>, vector<8x8xf32> -> vector<8x8xf32>
    "tpu.trace_stop"() : () -> ()
    %cst_52 = arith.constant dense<0xFF800000> : vector<8xf32>
    %180 = vector.multi_reduction <maximumf>, %179, %cst_52 [1] : vector<8x8xf32> to vector<8xf32>
    %181 = vector.shape_cast %180 : vector<8xf32> to vector<8x1xf32>
    %182 = vector.broadcast %181 : vector<8x1xf32> to vector<8x8xf32>
    %183 = arith.subf %179, %182 : vector<8x8xf32>
    %184 = math.exp %183 : vector<8x8xf32>
    %cst_53 = arith.constant dense<0.000000e+00> : vector<8xf32>
    %185 = vector.multi_reduction <add>, %184, %cst_53 [1] : vector<8x8xf32> to vector<8xf32>
    %186 = vector.shape_cast %185 : vector<8xf32> to vector<8x1xf32>
    %187 = tpu.reciprocal %186 {approx = true} : vector<8x1xf32> -> vector<8x1xf32>
    %188 = vector.broadcast %187 : vector<8x1xf32> to vector<8x8xf32>
    %189 = arith.mulf %184, %188 : vector<8x8xf32>
    %190 = arith.truncf %189 : vector<8x8xf32> to vector<8x8xbf16>
    %cst_54 = arith.constant dense<0.000000e+00> : vector<8x8xf32>
    %191 = tpu.matmul %190, %178, %cst_54 {dimension_numbers = #tpu.dot_dimension_numbers<[1], [0], [0], [1], [0, 0, 1, 1], [], []>} : vector<8x8xbf16>, vector<8x8xbf16>, vector<8x8xf32> -> vector<8x8xf32>
    %192 = vector.extract_strided_slice %13 {offsets = [2, 0, 0], sizes = [1, 8, 32], strides = [1, 1, 1]} : vector<4x8x32xbf16> to vector<1x8x32xbf16>
    %193 = vector.shape_cast %192 : vector<1x8x32xbf16> to vector<8x32xbf16>
    %194 = arith.truncf %191 : vector<8x8xf32> to vector<8x8xbf16>
    %cst_55 = arith.constant dense<0.000000e+00> : vector<8x32xf32>
    %195 = tpu.matmul %194, %193, %cst_55 {dimension_numbers = #tpu.dot_dimension_numbers<[1], [0], [0], [1], [0, 0, 1, 1], [], []>} : vector<8x8xbf16>, vector<8x32xbf16>, vector<8x32xf32> -> vector<8x32xf32>
    %196 = arith.addf %170, %195 : vector<8x32xf32>
    %197 = vector.extract_strided_slice %119 {offsets = [0, 24], sizes = [8, 8], strides = [1, 1]} : vector<8x96xf32> to vector<8x8xf32>
    %cst_56 = arith.constant 0.353553385 : f32
    %198 = vector.broadcast %cst_56 : f32 to vector<8x8xf32>
    %199 = arith.mulf %197, %198 : vector<8x8xf32>
    %200 = arith.truncf %199 : vector<8x8xf32> to vector<8x8xbf16>
    %201 = vector.extract_strided_slice %119 {offsets = [0, 56], sizes = [8, 8], strides = [1, 1]} : vector<8x96xf32> to vector<8x8xf32>
    %202 = arith.truncf %201 : vector<8x8xf32> to vector<8x8xbf16>
    %203 = vector.extract_strided_slice %119 {offsets = [0, 88], sizes = [8, 8], strides = [1, 1]} : vector<8x96xf32> to vector<8x8xf32>
    %204 = arith.truncf %203 : vector<8x8xf32> to vector<8x8xbf16>
    "tpu.trace_start"() <{level = 10 : i32, message = "qd,kd->qk"}> : () -> ()
    %cst_57 = arith.constant dense<0.000000e+00> : vector<8x8xf32>
    %205 = tpu.matmul %200, %202, %cst_57 {dimension_numbers = #tpu.dot_dimension_numbers<[1], [1], [0], [0], [0, 0, 1, 0], [], []>} : vector<8x8xbf16>, vector<8x8xbf16>, vector<8x8xf32> -> vector<8x8xf32>
    "tpu.trace_stop"() : () -> ()
    %cst_58 = arith.constant dense<0xFF800000> : vector<8xf32>
    %206 = vector.multi_reduction <maximumf>, %205, %cst_58 [1] : vector<8x8xf32> to vector<8xf32>
    %207 = vector.shape_cast %206 : vector<8xf32> to vector<8x1xf32>
    %208 = vector.broadcast %207 : vector<8x1xf32> to vector<8x8xf32>
    %209 = arith.subf %205, %208 : vector<8x8xf32>
    %210 = math.exp %209 : vector<8x8xf32>
    %cst_59 = arith.constant dense<0.000000e+00> : vector<8xf32>
    %211 = vector.multi_reduction <add>, %210, %cst_59 [1] : vector<8x8xf32> to vector<8xf32>
    %212 = vector.shape_cast %211 : vector<8xf32> to vector<8x1xf32>
    %213 = tpu.reciprocal %212 {approx = true} : vector<8x1xf32> -> vector<8x1xf32>
    %214 = vector.broadcast %213 : vector<8x1xf32> to vector<8x8xf32>
    %215 = arith.mulf %210, %214 : vector<8x8xf32>
    %216 = arith.truncf %215 : vector<8x8xf32> to vector<8x8xbf16>
    %cst_60 = arith.constant dense<0.000000e+00> : vector<8x8xf32>
    %217 = tpu.matmul %216, %204, %cst_60 {dimension_numbers = #tpu.dot_dimension_numbers<[1], [0], [0], [1], [0, 0, 1, 1], [], []>} : vector<8x8xbf16>, vector<8x8xbf16>, vector<8x8xf32> -> vector<8x8xf32>
    %218 = vector.extract_strided_slice %13 {offsets = [3, 0, 0], sizes = [1, 8, 32], strides = [1, 1, 1]} : vector<4x8x32xbf16> to vector<1x8x32xbf16>
    %219 = vector.shape_cast %218 : vector<1x8x32xbf16> to vector<8x32xbf16>
    %220 = arith.truncf %217 : vector<8x8xf32> to vector<8x8xbf16>
    %cst_61 = arith.constant dense<0.000000e+00> : vector<8x32xf32>
    %221 = tpu.matmul %220, %219, %cst_61 {dimension_numbers = #tpu.dot_dimension_numbers<[1], [0], [0], [1], [0, 0, 1, 1], [], []>} : vector<8x8xbf16>, vector<8x32xbf16>, vector<8x32xf32> -> vector<8x32xf32>
    %222 = arith.addf %196, %221 : vector<8x32xf32>
    %c8 = arith.constant 8 : index
    %c0_62 = arith.constant 0 : index
    %223 = vector.load %arg18[%c8, %c0_62] : memref<16x32xf32, #tpu.memory_space<vmem>>, vector<8x32xf32>
    tpu.vector_store %arg18[%c8, %c0_62], %222 {strides = array<i32>} : memref<16x32xf32, #tpu.memory_space<vmem>>, vector<8x32xf32>,
    %c0_63 = arith.constant 0 : index
    %c0_64 = arith.constant 0 : index
    %224 = vector.load %arg18[%c0_63, %c0_64] : memref<16x32xf32, #tpu.memory_space<vmem>>, vector<16x32xf32>
    %c0_65 = arith.constant 0 : index
    %c0_66 = arith.constant 0 : index
    %c0_67 = arith.constant 0 : index
    %225 = vector.load %arg5[%c0_65, %c0_66, %c0_67] : memref<1x1x32xf32, #tpu.memory_space<vmem>>, vector<1x1x32xf32>
    %226 = vector.shape_cast %225 : vector<1x1x32xf32> to vector<1x32xf32>
    %227 = vector.broadcast %226 : vector<1x32xf32> to vector<16x32xf32>
    %228 = arith.addf %224, %227 : vector<16x32xf32>
    %229 = arith.addf %3, %228 : vector<16x32xf32>
    %c0_68 = arith.constant 0 : index
    %c0_69 = arith.constant 0 : index
    %c0_70 = arith.constant 0 : index
    %230 = vector.load %arg6[%c0_68, %c0_69, %c0_70] : memref<1x1x32xf32, #tpu.memory_space<vmem>>, vector<1x1x32xf32>
    %231 = vector.shape_cast %230 : vector<1x1x32xf32> to vector<1x32xf32>
    %c0_71 = arith.constant 0 : index
    %c0_72 = arith.constant 0 : index
    %c0_73 = arith.constant 0 : index
    %232 = vector.load %arg7[%c0_71, %c0_72, %c0_73] : memref<1x1x32xf32, #tpu.memory_space<vmem>>, vector<1x1x32xf32>
    %233 = vector.shape_cast %232 : vector<1x1x32xf32> to vector<1x32xf32>
    %cst_74 = arith.constant dense<0.000000e+00> : vector<16xf32>
    %234 = vector.multi_reduction <add>, %229, %cst_74 [1] : vector<16x32xf32> to vector<16xf32>
    %235 = vector.shape_cast %234 : vector<16xf32> to vector<16x1xf32>
    %cst_75 = arith.constant 3.200000e+01 : f32
    %236 = vector.broadcast %cst_75 : f32 to vector<16x1xf32>
    %237 = arith.divf %235, %236 : vector<16x1xf32>
    %238 = vector.broadcast %237 : vector<16x1xf32> to vector<16x32xf32>
    %239 = arith.subf %229, %238 : vector<16x32xf32>
    %240 = arith.mulf %239, %239 : vector<16x32xf32>
    %cst_76 = arith.constant dense<0.000000e+00> : vector<16xf32>
    %241 = vector.multi_reduction <add>, %240, %cst_76 [1] : vector<16x32xf32> to vector<16xf32>
    %242 = vector.shape_cast %241 : vector<16xf32> to vector<16x1xf32>
    %cst_77 = arith.constant 3.200000e+01 : f32
    %243 = vector.broadcast %cst_77 : f32 to vector<16x1xf32>
    %244 = arith.divf %242, %243 : vector<16x1xf32>
    %245 = vector.broadcast %237 : vector<16x1xf32> to vector<16x32xf32>
    %246 = arith.subf %229, %245 : vector<16x32xf32>
    %cst_78 = arith.constant 9.99999974E-6 : f32
    %247 = vector.broadcast %cst_78 : f32 to vector<16x1xf32>
    %248 = arith.addf %244, %247 : vector<16x1xf32>
    %249 = math.rsqrt %248 : vector<16x1xf32>
    %250 = vector.broadcast %249 : vector<16x1xf32> to vector<16x32xf32>
    %251 = arith.mulf %246, %250 : vector<16x32xf32>
    %252 = vector.broadcast %231 : vector<1x32xf32> to vector<16x32xf32>
    %253 = arith.mulf %251, %252 : vector<16x32xf32>
    %254 = vector.broadcast %233 : vector<1x32xf32> to vector<16x32xf32>
    %255 = arith.addf %253, %254 : vector<16x32xf32>
    %c0_79 = arith.constant 0 : index
    %c0_80 = arith.constant 0 : index
    %c0_81 = arith.constant 0 : index
    %256 = vector.load %arg8[%c0_79, %c0_80, %c0_81] : memref<1x32x128xbf16, #tpu.memory_space<vmem>>, vector<1x32x128xbf16>
    %257 = vector.shape_cast %256 : vector<1x32x128xbf16> to vector<32x128xbf16>
    %258 = arith.truncf %255 : vector<16x32xf32> to vector<16x32xbf16>
    %cst_82 = arith.constant dense<0.000000e+00> : vector<16x128xf32>
    %259 = tpu.matmul %258, %257, %cst_82 {dimension_numbers = #tpu.dot_dimension_numbers<[1], [0], [0], [1], [0, 0, 1, 1], [], []>} : vector<16x32xbf16>, vector<32x128xbf16>, vector<16x128xf32> -> vector<16x128xf32>
    %c0_83 = arith.constant 0 : index
    %c0_84 = arith.constant 0 : index
    %c0_85 = arith.constant 0 : index
    %260 = vector.load %arg9[%c0_83, %c0_84, %c0_85] : memref<1x1x128xf32, #tpu.memory_space<vmem>>, vector<1x1x128xf32>
    %261 = vector.shape_cast %260 : vector<1x1x128xf32> to vector<1x128xf32>
    %262 = vector.broadcast %261 : vector<1x128xf32> to vector<16x128xf32>
    %263 = arith.addf %259, %262 : vector<16x128xf32>
    %cst_86 = arith.constant 0.000000e+00 : f32
    %264 = vector.broadcast %cst_86 : f32 to vector<16x128xf32>
    %265 = arith.maximumf %263, %264 : vector<16x128xf32>
    %c0_87 = arith.constant 0 : index
    %c0_88 = arith.constant 0 : index
    %c0_89 = arith.constant 0 : index
    %266 = vector.load %arg10[%c0_87, %c0_88, %c0_89] : memref<1x128x32xbf16, #tpu.memory_space<vmem>>, vector<1x128x32xbf16>
    %267 = vector.shape_cast %266 : vector<1x128x32xbf16> to vector<128x32xbf16>
    %268 = arith.truncf %265 : vector<16x128xf32> to vector<16x128xbf16>
    %cst_90 = arith.constant dense<0.000000e+00> : vector<16x32xf32>
    %269 = tpu.matmul %268, %267, %cst_90 {dimension_numbers = #tpu.dot_dimension_numbers<[1], [0], [0], [1], [0, 0, 1, 1], [], []>} : vector<16x128xbf16>, vector<128x32xbf16>, vector<16x32xf32> -> vector<16x32xf32>
    %c0_91 = arith.constant 0 : index
    %c0_92 = arith.constant 0 : index
    %c0_93 = arith.constant 0 : index
    %270 = vector.load %arg11[%c0_91, %c0_92, %c0_93] : memref<1x1x32xf32, #tpu.memory_space<vmem>>, vector<1x1x32xf32>
    %271 = vector.shape_cast %270 : vector<1x1x32xf32> to vector<1x32xf32>
    %272 = vector.broadcast %271 : vector<1x32xf32> to vector<16x32xf32>
    %273 = arith.addf %269, %272 : vector<16x32xf32>
    %274 = arith.addf %255, %273 : vector<16x32xf32>
    %c0_94 = arith.constant 0 : index
    %c0_95 = arith.constant 0 : index
    %c0_96 = arith.constant 0 : index
    %275 = vector.load %arg12[%c0_94, %c0_95, %c0_96] : memref<1x1x32xf32, #tpu.memory_space<vmem>>, vector<1x1x32xf32>
    %276 = vector.shape_cast %275 : vector<1x1x32xf32> to vector<1x32xf32>
    %c0_97 = arith.constant 0 : index
    %c0_98 = arith.constant 0 : index
    %c0_99 = arith.constant 0 : index
    %277 = vector.load %arg13[%c0_97, %c0_98, %c0_99] : memref<1x1x32xf32, #tpu.memory_space<vmem>>, vector<1x1x32xf32>
    %278 = vector.shape_cast %277 : vector<1x1x32xf32> to vector<1x32xf32>
    %cst_100 = arith.constant dense<0.000000e+00> : vector<16xf32>
    %279 = vector.multi_reduction <add>, %274, %cst_100 [1] : vector<16x32xf32> to vector<16xf32>
    %280 = vector.shape_cast %279 : vector<16xf32> to vector<16x1xf32>
    %cst_101 = arith.constant 3.200000e+01 : f32
    %281 = vector.broadcast %cst_101 : f32 to vector<16x1xf32>
    %282 = arith.divf %280, %281 : vector<16x1xf32>
    %283 = vector.broadcast %282 : vector<16x1xf32> to vector<16x32xf32>
    %284 = arith.subf %274, %283 : vector<16x32xf32>
    %285 = arith.mulf %284, %284 : vector<16x32xf32>
    %cst_102 = arith.constant dense<0.000000e+00> : vector<16xf32>
    %286 = vector.multi_reduction <add>, %285, %cst_102 [1] : vector<16x32xf32> to vector<16xf32>
    %287 = vector.shape_cast %286 : vector<16xf32> to vector<16x1xf32>
    %cst_103 = arith.constant 3.200000e+01 : f32
    %288 = vector.broadcast %cst_103 : f32 to vector<16x1xf32>
    %289 = arith.divf %287, %288 : vector<16x1xf32>
    %290 = vector.broadcast %282 : vector<16x1xf32> to vector<16x32xf32>
    %291 = arith.subf %274, %290 : vector<16x32xf32>
    %cst_104 = arith.constant 9.99999974E-6 : f32
    %292 = vector.broadcast %cst_104 : f32 to vector<16x1xf32>
    %293 = arith.addf %289, %292 : vector<16x1xf32>
    %294 = math.rsqrt %293 : vector<16x1xf32>
    %295 = vector.broadcast %294 : vector<16x1xf32> to vector<16x32xf32>
    %296 = arith.mulf %291, %295 : vector<16x32xf32>
    %297 = vector.broadcast %276 : vector<1x32xf32> to vector<16x32xf32>
    %298 = arith.mulf %296, %297 : vector<16x32xf32>
    %299 = vector.broadcast %278 : vector<1x32xf32> to vector<16x32xf32>
    %300 = arith.addf %298, %299 : vector<16x32xf32>
    %c0_105 = arith.constant 0 : index
    %c0_106 = arith.constant 0 : index
    %301 = vector.load %arg17[%c0_105, %c0_106] : memref<16x32xf32, #tpu.memory_space<vmem>>, vector<16x32xf32>
    tpu.vector_store %arg17[%c0_105, %c0_106], %300 {strides = array<i32>} : memref<16x32xf32, #tpu.memory_space<vmem>>, vector<16x32xf32>,
    %c1_i32 = arith.constant 1 : i32
    %302 = arith.cmpi eq, %arg0, %c1_i32 : i32
    %303 = arith.extui %302 : i1 to i32
    %c0_i32_107 = arith.constant 0 : i32
    %304 = arith.cmpi ne, %303, %c0_i32_107 : i32
    scf.if %304 {
      %c0_108 = arith.constant 0 : index
      %c0_109 = arith.constant 0 : index
      %305 = vector.load %arg14[%c0_108, %c0_109] : memref<32x128xbf16, #tpu.memory_space<vmem>>, vector<32x128xbf16>
      %306 = arith.truncf %300 : vector<16x32xf32> to vector<16x32xbf16>
      %cst_110 = arith.constant dense<0.000000e+00> : vector<16x128xf32>
      %307 = tpu.matmul %306, %305, %cst_110 {dimension_numbers = #tpu.dot_dimension_numbers<[1], [0], [0], [1], [0, 0, 1, 1], [], []>} : vector<16x32xbf16>, vector<32x128xbf16>, vector<16x128xf32> -> vector<16x128xf32>
      %c0_111 = arith.constant 0 : index
      %c0_112 = arith.constant 0 : index
      %308 = vector.load %arg15[%c0_111, %c0_112] : memref<1x128xf32, #tpu.memory_space<vmem>>, vector<1x128xf32>
      %309 = vector.broadcast %308 : vector<1x128xf32> to vector<16x128xf32>
      %310 = arith.addf %307, %309 : vector<16x128xf32>
      %c0_113 = arith.constant 0 : index
      %c0_114 = arith.constant 0 : index
      %311 = vector.load %arg16[%c0_113, %c0_114] : memref<16x128xf32, #tpu.memory_space<vmem>>, vector<16x128xf32>
      tpu.vector_store %arg16[%c0_113, %c0_114], %310 {strides = array<i32>} : memref<16x128xf32, #tpu.memory_space<vmem>>, vector<16x128xf32>,
    } else {
    }
    return
  }
  func.func @transform_0(%arg0: i32) -> (i32, i32) {
    %c0_i32 = arith.constant 0 : i32
    %c0_i32_0 = arith.constant 0 : i32
    %c0_i32_1 = arith.constant 0 : i32
    return %c0_i32, %c0_i32_0 : i32, i32
  }
  func.func @transform_1(%arg0: i32) -> (i32, i32, i32) {
    %c0_i32 = arith.constant 0 : i32
    %c0_i32_0 = arith.constant 0 : i32
    %c0_i32_1 = arith.constant 0 : i32
    return %arg0, %c0_i32, %c0_i32_0 : i32, i32, i32
  }
  func.func @transform_2(%arg0: i32) -> (i32, i32, i32) {
    %c0_i32 = arith.constant 0 : i32
    %c0_i32_0 = arith.constant 0 : i32
    %c0_i32_1 = arith.constant 0 : i32
    return %arg0, %c0_i32, %c0_i32_0 : i32, i32, i32
  }
  func.func @transform_3(%arg0: i32) -> (i32, i32, i32, i32) {
    %c0_i32 = arith.constant 0 : i32
    %c0_i32_0 = arith.constant 0 : i32
    %c0_i32_1 = arith.constant 0 : i32
    %c0_i32_2 = arith.constant 0 : i32
    return %arg0, %c0_i32, %c0_i32_0, %c0_i32_1 : i32, i32, i32, i32
  }
  func.func @transform_4(%arg0: i32) -> (i32, i32, i32) {
    %c0_i32 = arith.constant 0 : i32
    %c0_i32_0 = arith.constant 0 : i32
    %c0_i32_1 = arith.constant 0 : i32
    return %arg0, %c0_i32, %c0_i32_0 : i32, i32, i32
  }
  func.func @transform_5(%arg0: i32) -> (i32, i32, i32) {
    %c0_i32 = arith.constant 0 : i32
    %c0_i32_0 = arith.constant 0 : i32
    %c0_i32_1 = arith.constant 0 : i32
    return %arg0, %c0_i32, %c0_i32_0 : i32, i32, i32
  }
  func.func @transform_6(%arg0: i32) -> (i32, i32, i32) {
    %c0_i32 = arith.constant 0 : i32
    %c0_i32_0 = arith.constant 0 : i32
    %c0_i32_1 = arith.constant 0 : i32
    return %arg0, %c0_i32, %c0_i32_0 : i32, i32, i32
  }
  func.func @transform_7(%arg0: i32) -> (i32, i32, i32) {
    %c0_i32 = arith.constant 0 : i32
    %c0_i32_0 = arith.constant 0 : i32
    %c0_i32_1 = arith.constant 0 : i32
    return %arg0, %c0_i32, %c0_i32_0 : i32, i32, i32
  }
  func.func @transform_8(%arg0: i32) -> (i32, i32, i32) {
    %c0_i32 = arith.constant 0 : i32
    %c0_i32_0 = arith.constant 0 : i32
    %c0_i32_1 = arith.constant 0 : i32
    return %arg0, %c0_i32, %c0_i32_0 : i32, i32, i32
  }
  func.func @transform_9(%arg0: i32) -> (i32, i32, i32) {
    %c0_i32 = arith.constant 0 : i32
    %c0_i32_0 = arith.constant 0 : i32
    %c0_i32_1 = arith.constant 0 : i32
    return %arg0, %c0_i32, %c0_i32_0 : i32, i32, i32
  }
  func.func @transform_10(%arg0: i32) -> (i32, i32, i32) {
    %c0_i32 = arith.constant 0 : i32
    %c0_i32_0 = arith.constant 0 : i32
    %c0_i32_1 = arith.constant 0 : i32
    return %arg0, %c0_i32, %c0_i32_0 : i32, i32, i32
  }
  func.func @transform_11(%arg0: i32) -> (i32, i32, i32) {
    %c0_i32 = arith.constant 0 : i32
    %c0_i32_0 = arith.constant 0 : i32
    %c0_i32_1 = arith.constant 0 : i32
    return %arg0, %c0_i32, %c0_i32_0 : i32, i32, i32
  }
  func.func @transform_12(%arg0: i32) -> (i32, i32, i32) {
    %c0_i32 = arith.constant 0 : i32
    %c0_i32_0 = arith.constant 0 : i32
    %c0_i32_1 = arith.constant 0 : i32
    return %arg0, %c0_i32, %c0_i32_0 : i32, i32, i32
  }
  func.func @transform_13(%arg0: i32) -> (i32, i32) {
    %c0_i32 = arith.constant 0 : i32
    %c0_i32_0 = arith.constant 0 : i32
    %c0_i32_1 = arith.constant 0 : i32
    return %c0_i32, %c0_i32_0 : i32, i32
  }
  func.func @transform_14(%arg0: i32) -> (i32, i32) {
    %c0_i32 = arith.constant 0 : i32
    %c0_i32_0 = arith.constant 0 : i32
    %c0_i32_1 = arith.constant 0 : i32
    return %c0_i32, %c0_i32_0 : i32, i32
  }
  func.func @transform_15(%arg0: i32) -> (i32, i32) {
    %c0_i32 = arith.constant 0 : i32
    %c0_i32_0 = arith.constant 0 : i32
    %c0_i32_1 = arith.constant 0 : i32
    return %c0_i32, %c0_i32_0 : i32, i32
  }
}

</mosaic_0001>

<llo_original>
// kernel: tpu_custom_call.1
$region0: #{tpu_custom_call.1}
  #allocation0 [shape = 'u32[]', space=smem, size = 0x4, offset = 0x4, fixed_abs, tag = 'smem constant byte address 0x4 - core index']
  #allocation1 [shape = 'u32[144,128]{1,0:T(1,128)}', space=vmem, size = 0x12000, scoped, tag = 'internal scratch']
  #allocation2 [shape = 'f32[16,32]{1,0:T(8,128)}', space=vmem, size = 0x2000, scoped, tag = 'scratch operand']
  #allocation3 [shape = 'f32[16,32]{1,0:T(8,128)}', space=vmem, size = 0x2000, scoped, tag = 'scratch operand']
  %s0 = inlined_call_operand.vmem [shape: f32[16,32], index: 0, kind: input, shape index: {}]
  %s1 = inlined_call_operand.vmem [shape: bf16[2,32,96], index: 1, kind: input, shape index: {}]
  %s2 = inlined_call_operand.vmem [shape: f32[2,1,96], index: 2, kind: input, shape index: {}]
  %s3 = inlined_call_operand.vmem [shape: bf16[2,4,8,32], index: 3, kind: input, shape index: {}]
  %s4 = inlined_call_operand.vmem [shape: f32[2,1,32], index: 4, kind: input, shape index: {}]
  %s5 = inlined_call_operand.vmem [shape: f32[2,1,32], index: 5, kind: input, shape index: {}]
  %s6 = inlined_call_operand.vmem [shape: f32[2,1,32], index: 6, kind: input, shape index: {}]
  %s7 = inlined_call_operand.vmem [shape: bf16[2,32,128], index: 7, kind: input, shape index: {}]
  %s8 = inlined_call_operand.vmem [shape: f32[2,1,128], index: 8, kind: input, shape index: {}]
  %s9 = inlined_call_operand.vmem [shape: bf16[2,128,32], index: 9, kind: input, shape index: {}]
  %s10 = inlined_call_operand.vmem [shape: f32[2,1,32], index: 10, kind: input, shape index: {}]
  %s11 = inlined_call_operand.vmem [shape: f32[2,1,32], index: 11, kind: input, shape index: {}]
  %s12 = inlined_call_operand.vmem [shape: f32[2,1,32], index: 12, kind: input, shape index: {}]
  %s13 = inlined_call_operand.vmem [shape: bf16[32,128], index: 13, kind: input, shape index: {}]
  %s14 = inlined_call_operand.vmem [shape: f32[1,128], index: 14, kind: input, shape index: {}]
  %s15 = inlined_call_operand.hbm [shape: f32[16,128], index: 15, kind: output, shape index: {}]
  %s16 = sld [smem:[#allocation0]]
  $region101: #{tpu_custom_call.1} parent=0
    _
  %s18 = ssub.s32 1, %s16
  %s19 = scalar_select 0, %s18, %s16
  $region1: #{tpu_custom_call.1} parent=0
    #allocation4 [shape = 'u8[8192]{0}', space=vmem, size = 0x2000, scoped, tag = 'output window, operand 0, single buffered']
    #allocation5 [shape = 's32[2]{0}', space=sflag, size = 0x8, scoped, tag = 'scoped memory for tpu_custom_call.1']
    %20 = vsyncpa [#allocation5], 0
    loop: start=0, step=1, limit=4
    $region2: #{tpu_custom_call.1} parent=1 // loop_pre_header
      _
    $region3: #{tpu_custom_call.1} parent=1 // loop_header
      %s22 = sphi 0, %s26
      %p23 = scmp.ge.s32.totalorder %s22, 4
      %s30 = sphi 0, %s30
      %s32 = sphi 0, %s30
      %s33 = sphi 0, %s32
      %s47 = sphi 0, %s33
      %s53 = sphi 0, %s55
      %s56 = sphi 0, %s53
      %s57 = sphi 0, %s56
      %s73 = sphi 0, %s57
      %s79 = sphi 0, %s81
      %s82 = sphi 0, %s79
      %s83 = sphi 0, %s82
      %s99 = sphi 0, %s83
      %s105 = sphi 0, %s107
      %s108 = sphi 0, %s105
      %s109 = sphi 0, %s108
      %s125 = sphi 0, %s109
      %s131 = sphi 0, %s133
      %s134 = sphi 0, %s131
      %s135 = sphi 0, %s134
      %s151 = sphi 0, %s135
      %s157 = sphi 0, %s159
      %s160 = sphi 0, %s157
      %s161 = sphi 0, %s160
      %s177 = sphi 0, %s161
      %s183 = sphi 0, %s185
      %s186 = sphi 0, %s183
      %s187 = sphi 0, %s186
      %s203 = sphi 0, %s187
      %s209 = sphi 0, %s211
      %s212 = sphi 0, %s209
      %s213 = sphi 0, %s212
      %s229 = sphi 0, %s213
      %s235 = sphi 0, %s237
      %s238 = sphi 0, %s235
      %s239 = sphi 0, %s238
      %s255 = sphi 0, %s239
      %s261 = sphi 0, %s263
      %s264 = sphi 0, %s261
      %s265 = sphi 0, %s264
      %s281 = sphi 0, %s265
      %s287 = sphi 0, %s289
      %s290 = sphi 0, %s287
      %s291 = sphi 0, %s290
      %s307 = sphi 0, %s291
      %s313 = sphi 0, %s315
      %s316 = sphi 0, %s313
      %s317 = sphi 0, %s316
      %s333 = sphi 0, %s317
      %s339 = sphi 0, %s341
      %s342 = sphi 0, %s339
      %s343 = sphi 0, %s342
      %s359 = sphi 0, %s343
      %s363 = sphi 0, %s363
      %s365 = sphi 0, %s363
      %s366 = sphi 0, %s365
      %s380 = sphi 0, %s366
      %s384 = sphi 0, %s384
      %s386 = sphi 0, %s384
      %s387 = sphi 0, %s386
      %s401 = sphi 0, %s387
      %s405 = sphi 0, %s405
      %s407 = sphi 0, %s405
      %s408 = sphi 0, %s407
      %s422 = sphi 0, %s408
    $region4: #{tpu_custom_call.1} parent=1 // loop_header_branch
      %25 = sbr.rel (%p23) target = $region8
    $region5: #{tpu_custom_call.1} parent=1 // loop_body
      %s27 = ssub.s32 %s22, 1
      %s28 = ssub.s32 %s22, 2
      %s29 = sadd.s32 %s22, 1
      %s31 = sadd.s32 %s30, 1
      %p34 = scmp.eq.s32.totalorder %s22, 1
      %p35 = scmp.ne.s32.totalorder %s30, %s32
      %p36 = scmp.eq.s32.totalorder %s22, 0
      %p37 = por %p35, %p36
      %p38 = scmp.ne.s32.totalorder %s30, %s32
      %p39 = scmp.eq.s32.totalorder %s27, 1
      %p40 = por %p38, %p39
      %p41 = scmp.ne.s32.totalorder %s32, %s33
      %p42 = scmp.eq.s32.totalorder %s27, 0
      %p43 = por %p41, %p42
      %p44 = scmp.ne.s32.totalorder %s32, %s33
      %p45 = scmp.eq.s32.totalorder %s28, 1
      %p46 = por %p44, %p45
      %p48 = scmp.ne.s32.totalorder %s33, %s47
      %p49 = scmp.eq.s32.totalorder %s28, 0
      %p50 = por %p48, %p49
      %s51 = ssub.s32 %s22, %s29
      %p52 = scmp.eq.s32.totalorder %s51, 0
      %s54 = sadd.s32 %s53, 1
      %s55 = scalar_select %p52, %s53, %s54
      %p58 = pneg %p52
      %p59 = scmp.eq.s32.totalorder %s22, 1
      %p60 = por %p58, %p59
      %p61 = scmp.ne.s32.totalorder %s53, %s56
      %p62 = scmp.eq.s32.totalorder %s22, 0
      %p63 = por %p61, %p62
      %p64 = scmp.ne.s32.totalorder %s53, %s56
      %p65 = scmp.eq.s32.totalorder %s27, 1
      %p66 = por %p64, %p65
      %p67 = scmp.ne.s32.totalorder %s56, %s57
      %p68 = scmp.eq.s32.totalorder %s27, 0
      %p69 = por %p67, %p68
      %p70 = scmp.ne.s32.totalorder %s56, %s57
      %p71 = scmp.eq.s32.totalorder %s28, 1
      %p72 = por %p70, %p71
      %p74 = scmp.ne.s32.totalorder %s57, %s73
      %p75 = scmp.eq.s32.totalorder %s28, 0
      %p76 = por %p74, %p75
      %s77 = ssub.s32 %s22, %s29
      %p78 = scmp.eq.s32.totalorder %s77, 0
      %s80 = sadd.s32 %s79, 1
      %s81 = scalar_select %p78, %s79, %s80
      %p84 = pneg %p78
      %p85 = scmp.eq.s32.totalorder %s22, 1
      %p86 = por %p84, %p85
      %p87 = scmp.ne.s32.totalorder %s79, %s82
      %p88 = scmp.eq.s32.totalorder %s22, 0
      %p89 = por %p87, %p88
      %p90 = scmp.ne.s32.totalorder %s79, %s82
      %p91 = scmp.eq.s32.totalorder %s27, 1
      %p92 = por %p90, %p91
      %p93 = scmp.ne.s32.totalorder %s82, %s83
      %p94 = scmp.eq.s32.totalorder %s27, 0
      %p95 = por %p93, %p94
      %p96 = scmp.ne.s32.totalorder %s82, %s83
      %p97 = scmp.eq.s32.totalorder %s28, 1
      %p98 = por %p96, %p97
      %p100 = scmp.ne.s32.totalorder %s83, %s99
      %p101 = scmp.eq.s32.totalorder %s28, 0
      %p102 = por %p100, %p101
      %s103 = ssub.s32 %s22, %s29
      %p104 = scmp.eq.s32.totalorder %s103, 0
      %s106 = sadd.s32 %s105, 1
      %s107 = scalar_select %p104, %s105, %s106
      %p110 = pneg %p104
      %p111 = scmp.eq.s32.totalorder %s22, 1
      %p112 = por %p110, %p111
      %p113 = scmp.ne.s32.totalorder %s105, %s108
      %p114 = scmp.eq.s32.totalorder %s22, 0
      %p115 = por %p113, %p114
      %p116 = scmp.ne.s32.totalorder %s105, %s108
      %p117 = scmp.eq.s32.totalorder %s27, 1
      %p118 = por %p116, %p117
      %p119 = scmp.ne.s32.totalorder %s108, %s109
      %p120 = scmp.eq.s32.totalorder %s27, 0
      %p121 = por %p119, %p120
      %p122 = scmp.ne.s32.totalorder %s108, %s109
      %p123 = scmp.eq.s32.totalorder %s28, 1
      %p124 = por %p122, %p123
      %p126 = scmp.ne.s32.totalorder %s109, %s125
      %p127 = scmp.eq.s32.totalorder %s28, 0
      %p128 = por %p126, %p127
      %s129 = ssub.s32 %s22, %s29
      %p130 = scmp.eq.s32.totalorder %s129, 0
      %s132 = sadd.s32 %s131, 1
      %s133 = scalar_select %p130, %s131, %s132
      %p136 = pneg %p130
      %p137 = scmp.eq.s32.totalorder %s22, 1
      %p138 = por %p136, %p137
      %p139 = scmp.ne.s32.totalorder %s131, %s134
      %p140 = scmp.eq.s32.totalorder %s22, 0
      %p141 = por %p139, %p140
      %p142 = scmp.ne.s32.totalorder %s131, %s134
      %p143 = scmp.eq.s32.totalorder %s27, 1
      %p144 = por %p142, %p143
      %p145 = scmp.ne.s32.totalorder %s134, %s135
      %p146 = scmp.eq.s32.totalorder %s27, 0
      %p147 = por %p145, %p146
      %p148 = scmp.ne.s32.totalorder %s134, %s135
      %p149 = scmp.eq.s32.totalorder %s28, 1
      %p150 = por %p148, %p149
      %p152 = scmp.ne.s32.totalorder %s135, %s151
      %p153 = scmp.eq.s32.totalorder %s28, 0
      %p154 = por %p152, %p153
      %s155 = ssub.s32 %s22, %s29
      %p156 = scmp.eq.s32.totalorder %s155, 0
      %s158 = sadd.s32 %s157, 1
      %s159 = scalar_select %p156, %s157, %s158
      %p162 = pneg %p156
      %p163 = scmp.eq.s32.totalorder %s22, 1
      %p164 = por %p162, %p163
      %p165 = scmp.ne.s32.totalorder %s157, %s160
      %p166 = scmp.eq.s32.totalorder %s22, 0
      %p167 = por %p165, %p166
      %p168 = scmp.ne.s32.totalorder %s157, %s160
      %p169 = scmp.eq.s32.totalorder %s27, 1
      %p170 = por %p168, %p169
      %p171 = scmp.ne.s32.totalorder %s160, %s161
      %p172 = scmp.eq.s32.totalorder %s27, 0
      %p173 = por %p171, %p172
      %p174 = scmp.ne.s32.totalorder %s160, %s161
      %p175 = scmp.eq.s32.totalorder %s28, 1
      %p176 = por %p174, %p175
      %p178 = scmp.ne.s32.totalorder %s161, %s177
      %p179 = scmp.eq.s32.totalorder %s28, 0
      %p180 = por %p178, %p179
      %s181 = ssub.s32 %s22, %s29
      %p182 = scmp.eq.s32.totalorder %s181, 0
      %s184 = sadd.s32 %s183, 1
      %s185 = scalar_select %p182, %s183, %s184
      %p188 = pneg %p182
      %p189 = scmp.eq.s32.totalorder %s22, 1
      %p190 = por %p188, %p189
      %p191 = scmp.ne.s32.totalorder %s183, %s186
      %p192 = scmp.eq.s32.totalorder %s22, 0
      %p193 = por %p191, %p192
      %p194 = scmp.ne.s32.totalorder %s183, %s186
      %p195 = scmp.eq.s32.totalorder %s27, 1
      %p196 = por %p194, %p195
      %p197 = scmp.ne.s32.totalorder %s186, %s187
      %p198 = scmp.eq.s32.totalorder %s27, 0
      %p199 = por %p197, %p198
      %p200 = scmp.ne.s32.totalorder %s186, %s187
      %p201 = scmp.eq.s32.totalorder %s28, 1
      %p202 = por %p200, %p201
      %p204 = scmp.ne.s32.totalorder %s187, %s203
      %p205 = scmp.eq.s32.totalorder %s28, 0
      %p206 = por %p204, %p205
      %s207 = ssub.s32 %s22, %s29
      %p208 = scmp.eq.s32.totalorder %s207, 0
      %s210 = sadd.s32 %s209, 1
      %s211 = scalar_select %p208, %s209, %s210
      %p214 = pneg %p208
      %p215 = scmp.eq.s32.totalorder %s22, 1
      %p216 = por %p214, %p215
      %p217 = scmp.ne.s32.totalorder %s209, %s212
      %p218 = scmp.eq.s32.totalorder %s22, 0
      %p219 = por %p217, %p218
      %p220 = scmp.ne.s32.totalorder %s209, %s212
      %p221 = scmp.eq.s32.totalorder %s27, 1
      %p222 = por %p220, %p221
      %p223 = scmp.ne.s32.totalorder %s212, %s213
      %p224 = scmp.eq.s32.totalorder %s27, 0
      %p225 = por %p223, %p224
      %p226 = scmp.ne.s32.totalorder %s212, %s213
      %p227 = scmp.eq.s32.totalorder %s28, 1
      %p228 = por %p226, %p227
      %p230 = scmp.ne.s32.totalorder %s213, %s229
      %p231 = scmp.eq.s32.totalorder %s28, 0
      %p232 = por %p230, %p231
      %s233 = ssub.s32 %s22, %s29
      %p234 = scmp.eq.s32.totalorder %s233, 0
      %s236 = sadd.s32 %s235, 1
      %s237 = scalar_select %p234, %s235, %s236
      %p240 = pneg %p234
      %p241 = scmp.eq.s32.totalorder %s22, 1
      %p242 = por %p240, %p241
      %p243 = scmp.ne.s32.totalorder %s235, %s238
      %p244 = scmp.eq.s32.totalorder %s22, 0
      %p245 = por %p243, %p244
      %p246 = scmp.ne.s32.totalorder %s235, %s238
      %p247 = scmp.eq.s32.totalorder %s27, 1
      %p248 = por %p246, %p247
      %p249 = scmp.ne.s32.totalorder %s238, %s239
      %p250 = scmp.eq.s32.totalorder %s27, 0
      %p251 = por %p249, %p250
      %p252 = scmp.ne.s32.totalorder %s238, %s239
      %p253 = scmp.eq.s32.totalorder %s28, 1
      %p254 = por %p252, %p253
      %p256 = scmp.ne.s32.totalorder %s239, %s255
      %p257 = scmp.eq.s32.totalorder %s28, 0
      %p258 = por %p256, %p257
      %s259 = ssub.s32 %s22, %s29
      %p260 = scmp.eq.s32.totalorder %s259, 0
      %s262 = sadd.s32 %s261, 1
      %s263 = scalar_select %p260, %s261, %s262
      %p266 = pneg %p260
      %p267 = scmp.eq.s32.totalorder %s22, 1
      %p268 = por %p266, %p267
      %p269 = scmp.ne.s32.totalorder %s261, %s264
      %p270 = scmp.eq.s32.totalorder %s22, 0
      %p271 = por %p269, %p270
      %p272 = scmp.ne.s32.totalorder %s261, %s264
      %p273 = scmp.eq.s32.totalorder %s27, 1
      %p274 = por %p272, %p273
      %p275 = scmp.ne.s32.totalorder %s264, %s265
      %p276 = scmp.eq.s32.totalorder %s27, 0
      %p277 = por %p275, %p276
      %p278 = scmp.ne.s32.totalorder %s264, %s265
      %p279 = scmp.eq.s32.totalorder %s28, 1
      %p280 = por %p278, %p279
      %p282 = scmp.ne.s32.totalorder %s265, %s281
      %p283 = scmp.eq.s32.totalorder %s28, 0
      %p284 = por %p282, %p283
      %s285 = ssub.s32 %s22, %s29
      %p286 = scmp.eq.s32.totalorder %s285, 0
      %s288 = sadd.s32 %s287, 1
      %s289 = scalar_select %p286, %s287, %s288
      %p292 = pneg %p286
      %p293 = scmp.eq.s32.totalorder %s22, 1
      %p294 = por %p292, %p293
      %p295 = scmp.ne.s32.totalorder %s287, %s290
      %p296 = scmp.eq.s32.totalorder %s22, 0
      %p297 = por %p295, %p296
      %p298 = scmp.ne.s32.totalorder %s287, %s290
      %p299 = scmp.eq.s32.totalorder %s27, 1
      %p300 = por %p298, %p299
      %p301 = scmp.ne.s32.totalorder %s290, %s291
      %p302 = scmp.eq.s32.totalorder %s27, 0
      %p303 = por %p301, %p302
      %p304 = scmp.ne.s32.totalorder %s290, %s291
      %p305 = scmp.eq.s32.totalorder %s28, 1
      %p306 = por %p304, %p305
      %p308 = scmp.ne.s32.totalorder %s291, %s307
      %p309 = scmp.eq.s32.totalorder %s28, 0
      %p310 = por %p308, %p309
      %s311 = ssub.s32 %s22, %s29
      %p312 = scmp.eq.s32.totalorder %s311, 0
      %s314 = sadd.s32 %s313, 1
      %s315 = scalar_select %p312, %s313, %s314
      %p318 = pneg %p312
      %p319 = scmp.eq.s32.totalorder %s22, 1
      %p320 = por %p318, %p319
      %p321 = scmp.ne.s32.totalorder %s313, %s316
      %p322 = scmp.eq.s32.totalorder %s22, 0
      %p323 = por %p321, %p322
      %p324 = scmp.ne.s32.totalorder %s313, %s316
      %p325 = scmp.eq.s32.totalorder %s27, 1
      %p326 = por %p324, %p325
      %p327 = scmp.ne.s32.totalorder %s316, %s317
      %p328 = scmp.eq.s32.totalorder %s27, 0
      %p329 = por %p327, %p328
      %p330 = scmp.ne.s32.totalorder %s316, %s317
      %p331 = scmp.eq.s32.totalorder %s28, 1
      %p332 = por %p330, %p331
      %p334 = scmp.ne.s32.totalorder %s317, %s333
      %p335 = scmp.eq.s32.totalorder %s28, 0
      %p336 = por %p334, %p335
      %s337 = ssub.s32 %s22, %s29
      %p338 = scmp.eq.s32.totalorder %s337, 0
      %s340 = sadd.s32 %s339, 1
      %s341 = scalar_select %p338, %s339, %s340
      %p344 = pneg %p338
      %p345 = scmp.eq.s32.totalorder %s22, 1
      %p346 = por %p344, %p345
      %p347 = scmp.ne.s32.totalorder %s339, %s342
      %p348 = scmp.eq.s32.totalorder %s22, 0
      %p349 = por %p347, %p348
      %p350 = scmp.ne.s32.totalorder %s339, %s342
      %p351 = scmp.eq.s32.totalorder %s27, 1
      %p352 = por %p350, %p351
      %p353 = scmp.ne.s32.totalorder %s342, %s343
      %p354 = scmp.eq.s32.totalorder %s27, 0
      %p355 = por %p353, %p354
      %p356 = scmp.ne.s32.totalorder %s342, %s343
      %p357 = scmp.eq.s32.totalorder %s28, 1
      %p358 = por %p356, %p357
      %p360 = scmp.ne.s32.totalorder %s343, %s359
      %p361 = scmp.eq.s32.totalorder %s28, 0
      %p362 = por %p360, %p361
      %s364 = sadd.s32 %s363, 1
      %p367 = scmp.eq.s32.totalorder %s22, 1
      %p368 = scmp.ne.s32.totalorder %s363, %s365
      %p369 = scmp.eq.s32.totalorder %s22, 0
      %p370 = por %p368, %p369
      %p371 = scmp.ne.s32.totalorder %s363, %s365
      %p372 = scmp.eq.s32.totalorder %s27, 1
      %p373 = por %p371, %p372
      %p374 = scmp.ne.s32.totalorder %s365, %s366
      %p375 = scmp.eq.s32.totalorder %s27, 0
      %p376 = por %p374, %p375
      %p377 = scmp.ne.s32.totalorder %s365, %s366
      %p378 = scmp.eq.s32.totalorder %s28, 1
      %p379 = por %p377, %p378
      %p381 = scmp.ne.s32.totalorder %s366, %s380
      %p382 = scmp.eq.s32.totalorder %s28, 0
      %p383 = por %p381, %p382
      %s385 = sadd.s32 %s384, 1
      %p388 = scmp.eq.s32.totalorder %s22, 1
      %p389 = scmp.ne.s32.totalorder %s384, %s386
      %p390 = scmp.eq.s32.totalorder %s22, 0
      %p391 = por %p389, %p390
      %p392 = scmp.ne.s32.totalorder %s384, %s386
      %p393 = scmp.eq.s32.totalorder %s27, 1
      %p394 = por %p392, %p393
      %p395 = scmp.ne.s32.totalorder %s386, %s387
      %p396 = scmp.eq.s32.totalorder %s27, 0
      %p397 = por %p395, %p396
      %p398 = scmp.ne.s32.totalorder %s386, %s387
      %p399 = scmp.eq.s32.totalorder %s28, 1
      %p400 = por %p398, %p399
      %p402 = scmp.ne.s32.totalorder %s387, %s401
      %p403 = scmp.eq.s32.totalorder %s28, 0
      %p404 = por %p402, %p403
      %s406 = sadd.s32 %s405, 1
      %p409 = scmp.eq.s32.totalorder %s22, 1
      %p410 = scmp.ne.s32.totalorder %s405, %s407
      %p411 = scmp.eq.s32.totalorder %s22, 0
      %p412 = por %p410, %p411
      %p413 = scmp.ne.s32.totalorder %s405, %s407
      %p414 = scmp.eq.s32.totalorder %s27, 1
      %p415 = por %p413, %p414
      %p416 = scmp.ne.s32.totalorder %s407, %s408
      %p417 = scmp.eq.s32.totalorder %s27, 0
      %p418 = por %p416, %p417
      %p419 = scmp.ne.s32.totalorder %s407, %s408
      %p420 = scmp.eq.s32.totalorder %s28, 1
      %p421 = por %p419, %p420
      %p423 = scmp.ne.s32.totalorder %s408, %s422
      %p424 = scmp.eq.s32.totalorder %s28, 0
      %p425 = por %p423, %p424
      %p426 = scmp.le.s32.totalorder 1, %s22
      %p427 = scmp.lt.s32.totalorder %s22, 3
      %p428 = pnand %p426, %p427
      %p429 = pneg %p428
      // Predicated region
      $region9: #{tpu_custom_call.1} parent=5 // pred_check
        _
      $region10: #{tpu_custom_call.1} parent=5 // pred_check_branch
        %431 = sbr.rel (%p428) target = $region12
      $region11: #{tpu_custom_call.1} parent=5 // pred_region
        %s432 = ssub.s32 %s22, 1
        // Predicated region
        $region13: #{tpu_custom_call.1} parent=11 // pred_check
          %p433 = pneg %p43
        $region14: #{tpu_custom_call.1} parent=11 // pred_check_branch
          %435 = sbr.rel (%p433) target = $region16
        $region15: #{tpu_custom_call.1} parent=11 // pred_region
          _
        $region16: #{tpu_custom_call.1} parent=11 // pred_fallthru
          _
        // Predicated region
        $region17: #{tpu_custom_call.1} parent=11 // pred_check
          %p436 = pneg %p376
        $region18: #{tpu_custom_call.1} parent=11 // pred_check_branch
          %438 = sbr.rel (%p436) target = $region20
        $region19: #{tpu_custom_call.1} parent=11 // pred_region
          _
        $region20: #{tpu_custom_call.1} parent=11 // pred_fallthru
          _
        // Predicated region
        $region21: #{tpu_custom_call.1} parent=11 // pred_check
          %p439 = pneg %p397
        $region22: #{tpu_custom_call.1} parent=11 // pred_check_branch
          %441 = sbr.rel (%p439) target = $region24
        $region23: #{tpu_custom_call.1} parent=11 // pred_region
          _
        $region24: #{tpu_custom_call.1} parent=11 // pred_fallthru
          _
      $region12: #{tpu_custom_call.1} parent=5 // pred_fallthru
        _
      %p442 = scmp.lt.s32.totalorder %s22, 2
      // Predicated region
      $region25: #{tpu_custom_call.1} parent=5 // pred_check
        %p443 = pneg %p442
      $region26: #{tpu_custom_call.1} parent=5 // pred_check_branch
        %445 = sbr.rel (%p443) target = $region28
      $region27: #{tpu_custom_call.1} parent=5 // pred_region
        // Predicated region
        $region29: #{tpu_custom_call.1} parent=27 // pred_check
          %p446 = pneg %p63
        $region30: #{tpu_custom_call.1} parent=27 // pred_check_branch
          %448 = sbr.rel (%p446) target = $region32
        $region31: #{tpu_custom_call.1} parent=27 // pred_region
          %p449 = scmp.lt.s32.totalorder %s22, 1
          %s450 = scalar_select %p449, %s22, 1
          %s451 = smul.addr %s450, 4
          %s452 = smul.addr %s451, 4
          %s453 = scalar_lea.vmem %s1, %s452
        $region32: #{tpu_custom_call.1} parent=27 // pred_fallthru
          _
        // Predicated region
        $region33: #{tpu_custom_call.1} parent=27 // pred_check
          %p454 = pneg %p89
        $region34: #{tpu_custom_call.1} parent=27 // pred_check_branch
          %456 = sbr.rel (%p454) target = $region36
        $region35: #{tpu_custom_call.1} parent=27 // pred_region
          %p457 = scmp.lt.s32.totalorder %s22, 1
          %s458 = scalar_select %p457, %s22, 1
          %s459 = scalar_lea.vmem %s2, %s458
        $region36: #{tpu_custom_call.1} parent=27 // pred_fallthru
          _
        // Predicated region
        $region37: #{tpu_custom_call.1} parent=27 // pred_check
          %p460 = pneg %p115
        $region38: #{tpu_custom_call.1} parent=27 // pred_check_branch
          %462 = sbr.rel (%p460) target = $region40
        $region39: #{tpu_custom_call.1} parent=27 // pred_region
          %p463 = scmp.lt.s32.totalorder %s22, 1
          %s464 = scalar_select %p463, %s22, 1
          %s465 = smul.addr %s464, 4
          %s466 = smul.addr %s465, 4
          %s467 = scalar_lea.vmem %s3, %s466
        $region40: #{tpu_custom_call.1} parent=27 // pred_fallthru
          _
        // Predicated region
        $region41: #{tpu_custom_call.1} parent=27 // pred_check
          %p468 = pneg %p141
        $region42: #{tpu_custom_call.1} parent=27 // pred_check_branch
          %470 = sbr.rel (%p468) target = $region44
        $region43: #{tpu_custom_call.1} parent=27 // pred_region
          %p471 = scmp.lt.s32.totalorder %s22, 1
          %s472 = scalar_select %p471, %s22, 1
          %s473 = scalar_lea.vmem %s4, %s472
        $region44: #{tpu_custom_call.1} parent=27 // pred_fallthru
          _
        // Predicated region
        $region45: #{tpu_custom_call.1} parent=27 // pred_check
          %p474 = pneg %p167
        $region46: #{tpu_custom_call.1} parent=27 // pred_check_branch
          %476 = sbr.rel (%p474) target = $region48
        $region47: #{tpu_custom_call.1} parent=27 // pred_region
          %p477 = scmp.lt.s32.totalorder %s22, 1
          %s478 = scalar_select %p477, %s22, 1
          %s479 = scalar_lea.vmem %s5, %s478
        $region48: #{tpu_custom_call.1} parent=27 // pred_fallthru
          _
        // Predicated region
        $region49: #{tpu_custom_call.1} parent=27 // pred_check
          %p480 = pneg %p193
        $region50: #{tpu_custom_call.1} parent=27 // pred_check_branch
          %482 = sbr.rel (%p480) target = $region52
        $region51: #{tpu_custom_call.1} parent=27 // pred_region
          %p483 = scmp.lt.s32.totalorder %s22, 1
          %s484 = scalar_select %p483, %s22, 1
          %s485 = scalar_lea.vmem %s6, %s484
        $region52: #{tpu_custom_call.1} parent=27 // pred_fallthru
          _
        // Predicated region
        $region53: #{tpu_custom_call.1} parent=27 // pred_check
          %p486 = pneg %p219
        $region54: #{tpu_custom_call.1} parent=27 // pred_check_branch
          %488 = sbr.rel (%p486) target = $region56
        $region55: #{tpu_custom_call.1} parent=27 // pred_region
          %p489 = scmp.lt.s32.totalorder %s22, 1
          %s490 = scalar_select %p489, %s22, 1
          %s491 = smul.addr %s490, 4
          %s492 = smul.addr %s491, 4
          %s493 = scalar_lea.vmem %s7, %s492
        $region56: #{tpu_custom_call.1} parent=27 // pred_fallthru
          _
        // Predicated region
        $region57: #{tpu_custom_call.1} parent=27 // pred_check
          %p494 = pneg %p245
        $region58: #{tpu_custom_call.1} parent=27 // pred_check_branch
          %496 = sbr.rel (%p494) target = $region60
        $region59: #{tpu_custom_call.1} parent=27 // pred_region
          %p497 = scmp.lt.s32.totalorder %s22, 1
          %s498 = scalar_select %p497, %s22, 1
          %s499 = scalar_lea.vmem %s8, %s498
        $region60: #{tpu_custom_call.1} parent=27 // pred_fallthru
          _
        // Predicated region
        $region61: #{tpu_custom_call.1} parent=27 // pred_check
          %p500 = pneg %p271
        $region62: #{tpu_custom_call.1} parent=27 // pred_check_branch
          %502 = sbr.rel (%p500) target = $region64
        $region63: #{tpu_custom_call.1} parent=27 // pred_region
          %p503 = scmp.lt.s32.totalorder %s22, 1
          %s504 = scalar_select %p503, %s22, 1
          %s505 = smul.addr %s504, 16
          %s506 = smul.addr %s505, 4
          %s507 = scalar_lea.vmem %s9, %s506
        $region64: #{tpu_custom_call.1} parent=27 // pred_fallthru
          _
        // Predicated region
        $region65: #{tpu_custom_call.1} parent=27 // pred_check
          %p508 = pneg %p297
        $region66: #{tpu_custom_call.1} parent=27 // pred_check_branch
          %510 = sbr.rel (%p508) target = $region68
        $region67: #{tpu_custom_call.1} parent=27 // pred_region
          %p511 = scmp.lt.s32.totalorder %s22, 1
          %s512 = scalar_select %p511, %s22, 1
          %s513 = scalar_lea.vmem %s10, %s512
        $region68: #{tpu_custom_call.1} parent=27 // pred_fallthru
          _
        // Predicated region
        $region69: #{tpu_custom_call.1} parent=27 // pred_check
          %p514 = pneg %p323
        $region70: #{tpu_custom_call.1} parent=27 // pred_check_branch
          %516 = sbr.rel (%p514) target = $region72
        $region71: #{tpu_custom_call.1} parent=27 // pred_region
          %p517 = scmp.lt.s32.totalorder %s22, 1
          %s518 = scalar_select %p517, %s22, 1
          %s519 = scalar_lea.vmem %s11, %s518
        $region72: #{tpu_custom_call.1} parent=27 // pred_fallthru
          _
        // Predicated region
        $region73: #{tpu_custom_call.1} parent=27 // pred_check
          %p520 = pneg %p349
        $region74: #{tpu_custom_call.1} parent=27 // pred_check_branch
          %522 = sbr.rel (%p520) target = $region76
        $region75: #{tpu_custom_call.1} parent=27 // pred_region
          %p523 = scmp.lt.s32.totalorder %s22, 1
          %s524 = scalar_select %p523, %s22, 1
          %s525 = scalar_lea.vmem %s12, %s524
        $region76: #{tpu_custom_call.1} parent=27 // pred_fallthru
          _
      $region28: #{tpu_custom_call.1} parent=5 // pred_fallthru
        _
      %p526 = scmp.le.s32.totalorder 1, %s22
      %p527 = scmp.lt.s32.totalorder %s22, 3
      %p528 = pnand %p526, %p527
      %p529 = pneg %p528
      // Predicated region
      $region77: #{tpu_custom_call.1} parent=5 // pred_check
        _
      $region78: #{tpu_custom_call.1} parent=5 // pred_check_branch
        %531 = sbr.rel (%p528) target = $region80
      $region79: #{tpu_custom_call.1} parent=5 // pred_region
        %s532 = ssub.s32 %s22, 1
        %p533 = pneg %p43
        %p534 = pneg %p40
        %p535 = scmp.lt.s32.totalorder %s27, 1
        %s536 = scalar_select %p535, %s27, 1
        %s537 = smul.addr %s536, 4
        %s538 = smul.addr %s537, 4
        %s539 = scalar_lea.vmem %s1, %s538
        %p540 = pneg %p69
        %p541 = pneg %p66
        %p542 = scmp.lt.s32.totalorder %s27, 1
        %s543 = scalar_select %p542, %s27, 1
        %s544 = scalar_lea.vmem %s2, %s543
        %p545 = pneg %p95
        %p546 = pneg %p92
        %p547 = scmp.lt.s32.totalorder %s27, 1
        %s548 = scalar_select %p547, %s27, 1
        %s549 = smul.addr %s548, 4
        %s550 = smul.addr %s549, 4
        %s551 = scalar_lea.vmem %s3, %s550
        %p552 = pneg %p121
        %p553 = pneg %p118
        %p554 = scmp.lt.s32.totalorder %s27, 1
        %s555 = scalar_select %p554, %s27, 1
        %s556 = scalar_lea.vmem %s4, %s555
        %p557 = pneg %p147
        %p558 = pneg %p144
        %p559 = scmp.lt.s32.totalorder %s27, 1
        %s560 = scalar_select %p559, %s27, 1
        %s561 = scalar_lea.vmem %s5, %s560
        %p562 = pneg %p173
        %p563 = pneg %p170
        %p564 = scmp.lt.s32.totalorder %s27, 1
        %s565 = scalar_select %p564, %s27, 1
        %s566 = scalar_lea.vmem %s6, %s565
        %p567 = pneg %p199
        %p568 = pneg %p196
        %p569 = scmp.lt.s32.totalorder %s27, 1
        %s570 = scalar_select %p569, %s27, 1
        %s571 = smul.addr %s570, 4
        %s572 = smul.addr %s571, 4
        %s573 = scalar_lea.vmem %s7, %s572
        %p574 = pneg %p225
        %p575 = pneg %p222
        %p576 = scmp.lt.s32.totalorder %s27, 1
        %s577 = scalar_select %p576, %s27, 1
        %s578 = scalar_lea.vmem %s8, %s577
        %p579 = pneg %p251
        %p580 = pneg %p248
        %p581 = scmp.lt.s32.totalorder %s27, 1
        %s582 = scalar_select %p581, %s27, 1
        %s583 = smul.addr %s582, 16
        %s584 = smul.addr %s583, 4
        %s585 = scalar_lea.vmem %s9, %s584
        %p586 = pneg %p277
        %p587 = pneg %p274
        %p588 = scmp.lt.s32.totalorder %s27, 1
        %s589 = scalar_select %p588, %s27, 1
        %s590 = scalar_lea.vmem %s10, %s589
        %p591 = pneg %p303
        %p592 = pneg %p300
        %p593 = scmp.lt.s32.totalorder %s27, 1
        %s594 = scalar_select %p593, %s27, 1
        %s595 = scalar_lea.vmem %s11, %s594
        %p596 = pneg %p329
        %p597 = pneg %p326
        %p598 = scmp.lt.s32.totalorder %s27, 1
        %s599 = scalar_select %p598, %s27, 1
        %s600 = scalar_lea.vmem %s12, %s599
        %p601 = pneg %p355
        %p602 = pneg %p352
        %p603 = pneg %p376
        %p604 = pneg %p373
        %p605 = pneg %p397
        %p606 = pneg %p394
        %p607 = pneg %p418
        %p608 = pneg %p415
        %p609 = scmp.lt.s32.totalorder %s27, 1
        %s610 = scalar_select %p609, %s27, 1
        %s611 = smul.addr %s610, 4
        %s612 = smul.addr %s611, 4
        %s613 = scalar_lea.vmem %s1, %s612
        %p614 = scmp.lt.s32.totalorder %s27, 1
        %s615 = scalar_select %p614, %s27, 1
        %s616 = scalar_lea.vmem %s2, %s615
        %p617 = scmp.lt.s32.totalorder %s27, 1
        %s618 = scalar_select %p617, %s27, 1
        %s619 = smul.addr %s618, 4
        %s620 = smul.addr %s619, 4
        %s621 = scalar_lea.vmem %s3, %s620
        %p622 = scmp.lt.s32.totalorder %s27, 1
        %s623 = scalar_select %p622, %s27, 1
        %s624 = scalar_lea.vmem %s4, %s623
        %p625 = scmp.lt.s32.totalorder %s27, 1
        %s626 = scalar_select %p625, %s27, 1
        %s627 = scalar_lea.vmem %s5, %s626
        %p628 = scmp.lt.s32.totalorder %s27, 1
        %s629 = scalar_select %p628, %s27, 1
        %s630 = scalar_lea.vmem %s6, %s629
        %p631 = scmp.lt.s32.totalorder %s27, 1
        %s632 = scalar_select %p631, %s27, 1
        %s633 = smul.addr %s632, 4
        %s634 = smul.addr %s633, 4
        %s635 = scalar_lea.vmem %s7, %s634
        %p636 = scmp.lt.s32.totalorder %s27, 1
        %s637 = scalar_select %p636, %s27, 1
        %s638 = scalar_lea.vmem %s8, %s637
        %p639 = scmp.lt.s32.totalorder %s27, 1
        %s640 = scalar_select %p639, %s27, 1
        %s641 = smul.addr %s640, 16
        %s642 = smul.addr %s641, 4
        %s643 = scalar_lea.vmem %s9, %s642
        %p644 = scmp.lt.s32.totalorder %s27, 1
        %s645 = scalar_select %p644, %s27, 1
        %s646 = scalar_lea.vmem %s10, %s645
        %p647 = scmp.lt.s32.totalorder %s27, 1
        %s648 = scalar_select %p647, %s27, 1
        %s649 = scalar_lea.vmem %s11, %s648
        %p650 = scmp.lt.s32.totalorder %s27, 1
        %s651 = scalar_select %p650, %s27, 1
        %s652 = scalar_lea.vmem %s12, %s651
        %p654 = scmp.eq.s32.totalorder %s27, 0
        // Predicated region
        $region81: #{tpu_custom_call.1} parent=79 // pred_check
          %p655 = pneg %p654
        $region82: #{tpu_custom_call.1} parent=79 // pred_check_branch
          %657 = sbr.rel (%p655) target = $region84
        $region83: #{tpu_custom_call.1} parent=79 // pred_region
          %v658 = vld [vmem:[%s0] sm:$0xff]
          %v659 = vld [vmem:[%s0 + $0x8] sm:$0xff]
          %vm660 = vcmask 261120
          %661 = vst.msk [vmem:[#allocation2] sm:$0xff] %vm660, %v658
          %662 = vst.msk [vmem:[#allocation2 + $0x8] sm:$0xff] %vm660, %v659
        $region84: #{tpu_custom_call.1} parent=79 // pred_fallthru
          _
        %v663 = vld [vmem:[#allocation2] sm:$0xff]
        %v664 = vld [vmem:[#allocation2 + $0x8] sm:$0xff]
        %v665 = vld [vmem:[%s613] sm:$0xf]
        %v666 = vld [vmem:[%s613 + $0x4] sm:$0xf]
        %v667 = vld [vmem:[%s613 + $0x8] sm:$0xf]
        %v668 = vld [vmem:[%s613 + $0xc] sm:$0xf]
        %v669 = vpack.c.bf16 %v664, %v663
        %v670 = vld [vmem:[%s616] sm:$0x1]
        %v672 = vlaneseq
        %v673 = vshrl.u32 %v672, 7
        %v674 = vsub.s32 0, %v673
        %v675 = vrot.slane %v670, %v674
        %v681 = vunpack.c.l.b16 %v665
        %v682 = vunpack.c.l.b16 %v666
        %v683 = vunpack.c.l.b16 %v667
        %v684 = vunpack.c.l.b16 %v668
        %v685 = vpack.c.b16 %v682, %v681
        %v686 = vpack.c.b16 %v684, %v683
        %vm689 = vcmask 261120
        %v691 = vsel %vm689, %v669, 0
        %693 = vmatprep.subr.bf16.mxu0 0
        %694 = vmatpush1.bf16.msra.mxu0 %v685
        %695 = vmatprep.subr.bf16.mxu0 0
        %696 = vmatpush1.bf16.msra.mxu0 %v686
        %697 = vmatprep.subr.bf16.mxu0 0
        %698 = vmatpush1.bf16.msra.mxu0 0
        %699 = vmatprep.subr.bf16.mxu0 0
        %700 = vmatpush1.bf16.msra.mxu0 0
        %701 = vmatprep.subr.bf16.mxu0 0
        %702 = vmatpush1.bf16.msra.mxu0 0
        %703 = vmatprep.subr.bf16.mxu0 0
        %704 = vmatpush1.bf16.msra.mxu0 0
        %705 = vmatprep.subr.bf16.mxu0 0
        %706 = vmatpush1.bf16.msra.mxu0 0
        %707 = vmatprep.subr.bf16.mxu0 0
        %708 = vmatpush1.bf16.msra.mxu0 0
        %709 = vmatprep.subr.bf16.mxu0 0
        %710 = vmatpush1.bf16.msra.mxu0 0
        %711 = vmatprep.subr.bf16.mxu0 0
        %712 = vmatpush1.bf16.msra.mxu0 0
        %713 = vmatprep.subr.bf16.mxu0 0
        %714 = vmatpush1.bf16.msra.mxu0 0
        %715 = vmatprep.subr.bf16.mxu0 0
        %716 = vmatpush1.bf16.msra.mxu0 0
        %717 = vmatprep.subr.bf16.mxu0 0
        %718 = vmatpush1.bf16.msra.mxu0 0
        %719 = vmatprep.subr.bf16.mxu0 0
        %720 = vmatpush1.bf16.msra.mxu0 0
        %721 = vmatprep.subr.bf16.mxu0 0
        %722 = vmatpush1.bf16.msra.mxu0 0
        %723 = vmatprep.subr.bf16.mxu0 0
        %724 = vmatpush1.bf16.msra.mxu0 0
        %725 = vmatprep.mubr.bf16.mxu0 0
        %726 = vmatmul.mubr.bf16.gmra.mrb[0].mxu0 %v691
        %v727 = vpop.f32.mrb[0].mxu0
        %v728 = vadd.f32 %v675, %v727
        %v729 = vpop.f32.mrb[0].mxu0
        %v730 = vpop.f32.mrb[0].mxu0
        %v731 = vadd.f32 %v675, %v730
        %v732 = vpop.f32.mrb[0].mxu0
        %733 = vdwg.mxu0
        %v734 = vld [vmem:[%s621] sm:$0xf]
        %v735 = vld [vmem:[%s621 + $0x4] sm:$0xf]
        %v736 = vld [vmem:[%s621 + $0x8] sm:$0xf]
        %v737 = vld [vmem:[%s621 + $0xc] sm:$0xf]
        %v738 = vmul.f32 %v728, 0.35355338
        %v739 = vpack.c.bf16 %v738, %v738
        %v740 = vpack.c.bf16 %v728, %v728
        %742 = vrot.lane.b32.xlu0 %v740, 96
        %v743 = vpop.permute.xlu0 %742
        %vm744 = vcmask 64512
        %v746 = vsel %vm744, %v739, 0
        %v749 = vsel %vm744, %v743, 0
        %751 = vmatprep.subr.bf16.mxu0 0
        %752 = vmatpush1.bf16.xpose.msra.mxu0 %v749
        %753 = vmatprep.subr.bf16.mxu0 0
        %754 = vmatpush1.bf16.xpose.msra.mxu0 0
        %755 = vmatprep.subr.bf16.mxu0 0
        %756 = vmatpush1.bf16.xpose.msra.mxu0 0
        %757 = vmatprep.subr.bf16.mxu0 0
        %758 = vmatpush1.bf16.xpose.msra.mxu0 0
        %759 = vmatprep.subr.bf16.mxu0 0
        %760 = vmatpush1.bf16.xpose.msra.mxu0 0
        %761 = vmatprep.subr.bf16.mxu0 0
        %762 = vmatpush1.bf16.xpose.msra.mxu0 0
        %763 = vmatprep.subr.bf16.mxu0 0
        %764 = vmatpush1.bf16.xpose.msra.mxu0 0
        %765 = vmatprep.subr.bf16.mxu0 0
        %766 = vmatpush1.bf16.xpose.msra.mxu0 0
        %767 = vmatprep.subr.bf16.mxu0 0
        %768 = vmatpush1.bf16.xpose.msra.mxu0 0
        %769 = vmatprep.subr.bf16.mxu0 0
        %770 = vmatpush1.bf16.xpose.msra.mxu0 0
        %771 = vmatprep.subr.bf16.mxu0 0
        %772 = vmatpush1.bf16.xpose.msra.mxu0 0
        %773 = vmatprep.subr.bf16.mxu0 0
        %774 = vmatpush1.bf16.xpose.msra.mxu0 0
        %775 = vmatprep.subr.bf16.mxu0 0
        %776 = vmatpush1.bf16.xpose.msra.mxu0 0
        %777 = vmatprep.subr.bf16.mxu0 0
        %778 = vmatpush1.bf16.xpose.msra.mxu0 0
        %779 = vmatprep.subr.bf16.mxu0 0
        %780 = vmatpush1.bf16.xpose.msra.mxu0 0
        %781 = vmatprep.subr.bf16.mxu0 0
        %782 = vmatpush1.bf16.xpose.msra.mxu0 0
        %783 = vmatprep.mubr.bf16.mxu0 0
        %784 = vmatmul.mubr.bf16.gmra.mrb[0].mxu0 %v746
        %v785 = vpop.f32.mrb[0].mxu0
        %v786 = vadd.f32 0.0, %v785
        %v787 = vpop.f32.mrb[0].mxu0
        %v788 = vpop.f32.mrb[0].mxu0
        %v789 = vpop.f32.mrb[0].mxu0
        %790 = vdwg.mxu0
        %v791 = vsel %vm744, %v786, -inf
        %792 = vmax.xlane.f32.xlu0 %v791
        %v793 = vpop.xlane.xlu0 %792
        %v794 = vsub.f32 %v786, %v793
        %v795 = vmul.f32 %v794, 1.442695
        %v796 = vpow.pop %v795
        %v797 = vsel %vm744, %v796, 0.0
        %798 = vadd.xlane.f32.xlu0 %v797
        %v799 = vpop.xlane.xlu0 %798
        %v800 = vrcp.pop %v799
        %v801 = vmul.f32 %v796, %v800
        %v802 = vpack.c.bf16 %v801, %v801
        %803 = vrot.lane.b32.xlu0 %v740, 64
        %v804 = vpop.permute.xlu0 %803
        %v806 = vsel %vm744, %v802, 0
        %vm808 = vcmask 1043456
        %v810 = vsel %vm808, %v804, 0
        %812 = vmatprep.subr.bf16.mxu0 0
        %813 = vmatpush1.bf16.msra.mxu0 %v810
        %814 = vmatprep.subr.bf16.mxu0 0
        %815 = vmatpush1.bf16.msra.mxu0 0
        %816 = vmatprep.subr.bf16.mxu0 0
        %817 = vmatpush1.bf16.msra.mxu0 0
        %818 = vmatprep.subr.bf16.mxu0 0
        %819 = vmatpush1.bf16.msra.mxu0 0
        %820 = vmatprep.subr.bf16.mxu0 0
        %821 = vmatpush1.bf16.msra.mxu0 0
        %822 = vmatprep.subr.bf16.mxu0 0
        %823 = vmatpush1.bf16.msra.mxu0 0
        %824 = vmatprep.subr.bf16.mxu0 0
        %825 = vmatpush1.bf16.msra.mxu0 0
        %826 = vmatprep.subr.bf16.mxu0 0
        %827 = vmatpush1.bf16.msra.mxu0 0
        %828 = vmatprep.subr.bf16.mxu0 0
        %829 = vmatpush1.bf16.msra.mxu0 0
        %830 = vmatprep.subr.bf16.mxu0 0
        %831 = vmatpush1.bf16.msra.mxu0 0
        %832 = vmatprep.subr.bf16.mxu0 0
        %833 = vmatpush1.bf16.msra.mxu0 0
        %834 = vmatprep.subr.bf16.mxu0 0
        %835 = vmatpush1.bf16.msra.mxu0 0
        %836 = vmatprep.subr.bf16.mxu0 0
        %837 = vmatpush1.bf16.msra.mxu0 0
        %838 = vmatprep.subr.bf16.mxu0 0
        %839 = vmatpush1.bf16.msra.mxu0 0
        %840 = vmatprep.subr.bf16.mxu0 0
        %841 = vmatpush1.bf16.msra.mxu0 0
        %842 = vmatprep.subr.bf16.mxu0 0
        %843 = vmatpush1.bf16.msra.mxu0 0
        %844 = vmatprep.mubr.bf16.mxu0 0
        %845 = vmatmul.mubr.bf16.gmra.mrb[0].mxu0 %v806
        %v846 = vpop.f32.mrb[0].mxu0
        %v847 = vadd.f32 0.0, %v846
        %v848 = vpop.f32.mrb[0].mxu0
        %v849 = vpop.f32.mrb[0].mxu0
        %v850 = vpop.f32.mrb[0].mxu0
        %851 = vdwg.mxu0
        %v852 = vpack.c.bf16 %v847, %v847
        %854 = vrot.lane.b32.xlu0 %v739, 120
        %v855 = vpop.permute.xlu0 %854
        %856 = vrot.lane.b32.xlu0 %v740, 88
        %v857 = vpop.permute.xlu0 %856
        %v859 = vsel %vm744, %v855, 0
        %v862 = vsel %vm744, %v857, 0
        %864 = vmatprep.subr.bf16.mxu0 0
        %865 = vmatpush1.bf16.xpose.msra.mxu0 %v862
        %866 = vmatprep.subr.bf16.mxu0 0
        %867 = vmatpush1.bf16.xpose.msra.mxu0 0
        %868 = vmatprep.subr.bf16.mxu0 0
        %869 = vmatpush1.bf16.xpose.msra.mxu0 0
        %870 = vmatprep.subr.bf16.mxu0 0
        %871 = vmatpush1.bf16.xpose.msra.mxu0 0
        %872 = vmatprep.subr.bf16.mxu0 0
        %873 = vmatpush1.bf16.xpose.msra.mxu0 0
        %874 = vmatprep.subr.bf16.mxu0 0
        %875 = vmatpush1.bf16.xpose.msra.mxu0 0
        %876 = vmatprep.subr.bf16.mxu0 0
        %877 = vmatpush1.bf16.xpose.msra.mxu0 0
        %878 = vmatprep.subr.bf16.mxu0 0
        %879 = vmatpush1.bf16.xpose.msra.mxu0 0
        %880 = vmatprep.subr.bf16.mxu0 0
        %881 = vmatpush1.bf16.xpose.msra.mxu0 0
        %882 = vmatprep.subr.bf16.mxu0 0
        %883 = vmatpush1.bf16.xpose.msra.mxu0 0
        %884 = vmatprep.subr.bf16.mxu0 0
        %885 = vmatpush1.bf16.xpose.msra.mxu0 0
        %886 = vmatprep.subr.bf16.mxu0 0
        %887 = vmatpush1.bf16.xpose.msra.mxu0 0
        %888 = vmatprep.subr.bf16.mxu0 0
        %889 = vmatpush1.bf16.xpose.msra.mxu0 0
        %890 = vmatprep.subr.bf16.mxu0 0
        %891 = vmatpush1.bf16.xpose.msra.mxu0 0
        %892 = vmatprep.subr.bf16.mxu0 0
        %893 = vmatpush1.bf16.xpose.msra.mxu0 0
        %894 = vmatprep.subr.bf16.mxu0 0
        %895 = vmatpush1.bf16.xpose.msra.mxu0 0
        %896 = vmatprep.mubr.bf16.mxu0 0
        %897 = vmatmul.mubr.bf16.gmra.mrb[0].mxu0 %v859
        %v898 = vpop.f32.mrb[0].mxu0
        %v899 = vadd.f32 0.0, %v898
        %v900 = vpop.f32.mrb[0].mxu0
        %v901 = vpop.f32.mrb[0].mxu0
        %v902 = vpop.f32.mrb[0].mxu0
        %903 = vdwg.mxu0
        %v904 = vsel %vm744, %v899, -inf
        %905 = vmax.xlane.f32.xlu0 %v904
        %v906 = vpop.xlane.xlu0 %905
        %v907 = vsub.f32 %v899, %v906
        %v908 = vmul.f32 %v907, 1.442695
        %v909 = vpow.pop %v908
        %v910 = vsel %vm744, %v909, 0.0
        %911 = vadd.xlane.f32.xlu0 %v910
        %v912 = vpop.xlane.xlu0 %911
        %v913 = vrcp.pop %v912
        %v914 = vmul.f32 %v909, %v913
        %v915 = vpack.c.bf16 %v914, %v914
        %916 = vrot.lane.b32.xlu0 %v740, 56
        %v917 = vpop.permute.xlu0 %916
        %v919 = vsel %vm744, %v915, 0
        %v922 = vsel %vm808, %v917, 0
        %924 = vmatprep.subr.bf16.mxu0 0
        %925 = vmatpush1.bf16.msra.mxu0 %v922
        %926 = vmatprep.subr.bf16.mxu0 0
        %927 = vmatpush1.bf16.msra.mxu0 0
        %928 = vmatprep.subr.bf16.mxu0 0
        %929 = vmatpush1.bf16.msra.mxu0 0
        %930 = vmatprep.subr.bf16.mxu0 0
        %931 = vmatpush1.bf16.msra.mxu0 0
        %932 = vmatprep.subr.bf16.mxu0 0
        %933 = vmatpush1.bf16.msra.mxu0 0
        %934 = vmatprep.subr.bf16.mxu0 0
        %935 = vmatpush1.bf16.msra.mxu0 0
        %936 = vmatprep.subr.bf16.mxu0 0
        %937 = vmatpush1.bf16.msra.mxu0 0
        %938 = vmatprep.subr.bf16.mxu0 0
        %939 = vmatpush1.bf16.msra.mxu0 0
        %940 = vmatprep.subr.bf16.mxu0 0
        %941 = vmatpush1.bf16.msra.mxu0 0
        %942 = vmatprep.subr.bf16.mxu0 0
        %943 = vmatpush1.bf16.msra.mxu0 0
        %944 = vmatprep.subr.bf16.mxu0 0
        %945 = vmatpush1.bf16.msra.mxu0 0
        %946 = vmatprep.subr.bf16.mxu0 0
        %947 = vmatpush1.bf16.msra.mxu0 0
        %948 = vmatprep.subr.bf16.mxu0 0
        %949 = vmatpush1.bf16.msra.mxu0 0
        %950 = vmatprep.subr.bf16.mxu0 0
        %951 = vmatpush1.bf16.msra.mxu0 0
        %952 = vmatprep.subr.bf16.mxu0 0
        %953 = vmatpush1.bf16.msra.mxu0 0
        %954 = vmatprep.subr.bf16.mxu0 0
        %955 = vmatpush1.bf16.msra.mxu0 0
        %956 = vmatprep.mubr.bf16.mxu0 0
        %957 = vmatmul.mubr.bf16.gmra.mrb[0].mxu0 %v919
        %v958 = vpop.f32.mrb[0].mxu0
        %v959 = vadd.f32 0.0, %v958
        %v960 = vpop.f32.mrb[0].mxu0
        %v961 = vpop.f32.mrb[0].mxu0
        %v962 = vpop.f32.mrb[0].mxu0
        %963 = vdwg.mxu0
        %v964 = vpack.c.bf16 %v959, %v959
        %v966 = vsel %vm744, %v964, 0
        %v969 = vsel %vm808, %v735, 0
        %971 = vmatprep.subr.bf16.mxu0 0
        %972 = vmatpush1.bf16.msra.mxu0 %v969
        %973 = vmatprep.subr.bf16.mxu0 0
        %974 = vmatpush1.bf16.msra.mxu0 0
        %975 = vmatprep.subr.bf16.mxu0 0
        %976 = vmatpush1.bf16.msra.mxu0 0
        %977 = vmatprep.subr.bf16.mxu0 0
        %978 = vmatpush1.bf16.msra.mxu0 0
        %979 = vmatprep.subr.bf16.mxu0 0
        %980 = vmatpush1.bf16.msra.mxu0 0
        %981 = vmatprep.subr.bf16.mxu0 0
        %982 = vmatpush1.bf16.msra.mxu0 0
        %983 = vmatprep.subr.bf16.mxu0 0
        %984 = vmatpush1.bf16.msra.mxu0 0
        %985 = vmatprep.subr.bf16.mxu0 0
        %986 = vmatpush1.bf16.msra.mxu0 0
        %987 = vmatprep.subr.bf16.mxu0 0
        %988 = vmatpush1.bf16.msra.mxu0 0
        %989 = vmatprep.subr.bf16.mxu0 0
        %990 = vmatpush1.bf16.msra.mxu0 0
        %991 = vmatprep.subr.bf16.mxu0 0
        %992 = vmatpush1.bf16.msra.mxu0 0
        %993 = vmatprep.subr.bf16.mxu0 0
        %994 = vmatpush1.bf16.msra.mxu0 0
        %995 = vmatprep.subr.bf16.mxu0 0
        %996 = vmatpush1.bf16.msra.mxu0 0
        %997 = vmatprep.subr.bf16.mxu0 0
        %998 = vmatpush1.bf16.msra.mxu0 0
        %999 = vmatprep.subr.bf16.mxu0 0
        %1000 = vmatpush1.bf16.msra.mxu0 0
        %1001 = vmatprep.subr.bf16.mxu0 0
        %1002 = vmatpush1.bf16.msra.mxu0 0
        %1003 = vmatprep.mubr.bf16.mxu0 0
        %1004 = vmatmul.mubr.bf16.gmra.mrb[0].mxu0 %v966
        %v1005 = vpop.f32.mrb[0].mxu0
        %v1006 = vadd.f32 0.0, %v1005
        %v1007 = vpop.f32.mrb[0].mxu0
        %v1008 = vpop.f32.mrb[0].mxu0
        %v1009 = vpop.f32.mrb[0].mxu0
        %1010 = vdwg.mxu0
        %v1012 = vsel %vm744, %v852, 0
        %v1015 = vsel %vm808, %v734, 0
        %1017 = vmatprep.subr.bf16.mxu0 0
        %1018 = vmatpush1.bf16.msra.mxu0 %v1015
        %1019 = vmatprep.subr.bf16.mxu0 0
        %1020 = vmatpush1.bf16.msra.mxu0 0
        %1021 = vmatprep.subr.bf16.mxu0 0
        %1022 = vmatpush1.bf16.msra.mxu0 0
        %1023 = vmatprep.subr.bf16.mxu0 0
        %1024 = vmatpush1.bf16.msra.mxu0 0
        %1025 = vmatprep.subr.bf16.mxu0 0
        %1026 = vmatpush1.bf16.msra.mxu0 0
        %1027 = vmatprep.subr.bf16.mxu0 0
        %1028 = vmatpush1.bf16.msra.mxu0 0
        %1029 = vmatprep.subr.bf16.mxu0 0
        %1030 = vmatpush1.bf16.msra.mxu0 0
        %1031 = vmatprep.subr.bf16.mxu0 0
        %1032 = vmatpush1.bf16.msra.mxu0 0
        %1033 = vmatprep.subr.bf16.mxu0 0
        %1034 = vmatpush1.bf16.msra.mxu0 0
        %1035 = vmatprep.subr.bf16.mxu0 0
        %1036 = vmatpush1.bf16.msra.mxu0 0
        %1037 = vmatprep.subr.bf16.mxu0 0
        %1038 = vmatpush1.bf16.msra.mxu0 0
        %1039 = vmatprep.subr.bf16.mxu0 0
        %1040 = vmatpush1.bf16.msra.mxu0 0
        %1041 = vmatprep.subr.bf16.mxu0 0
        %1042 = vmatpush1.bf16.msra.mxu0 0
        %1043 = vmatprep.subr.bf16.mxu0 0
        %1044 = vmatpush1.bf16.msra.mxu0 0
        %1045 = vmatprep.subr.bf16.mxu0 0
        %1046 = vmatpush1.bf16.msra.mxu0 0
        %1047 = vmatprep.subr.bf16.mxu0 0
        %1048 = vmatpush1.bf16.msra.mxu0 0
        %1049 = vmatprep.mubr.bf16.mxu0 0
        %1050 = vmatmul.mubr.bf16.gmra.mrb[0].mxu0 %v1012
        %v1051 = vpop.f32.mrb[0].mxu0
        %v1052 = vadd.f32 %v1006, %v1051
        %v1053 = vpop.f32.mrb[0].mxu0
        %v1054 = vpop.f32.mrb[0].mxu0
        %v1055 = vpop.f32.mrb[0].mxu0
        %1056 = vdwg.mxu0
        %1057 = vrot.lane.b32.xlu0 %v739, 112
        %v1058 = vpop.permute.xlu0 %1057
        %1059 = vrot.lane.b32.xlu0 %v740, 80
        %v1060 = vpop.permute.xlu0 %1059
        %v1062 = vsel %vm744, %v1058, 0
        %v1065 = vsel %vm744, %v1060, 0
        %1067 = vmatprep.subr.bf16.mxu0 0
        %1068 = vmatpush1.bf16.xpose.msra.mxu0 %v1065
        %1069 = vmatprep.subr.bf16.mxu0 0
        %1070 = vmatpush1.bf16.xpose.msra.mxu0 0
        %1071 = vmatprep.subr.bf16.mxu0 0
        %1072 = vmatpush1.bf16.xpose.msra.mxu0 0
        %1073 = vmatprep.subr.bf16.mxu0 0
        %1074 = vmatpush1.bf16.xpose.msra.mxu0 0
        %1075 = vmatprep.subr.bf16.mxu0 0
        %1076 = vmatpush1.bf16.xpose.msra.mxu0 0
        %1077 = vmatprep.subr.bf16.mxu0 0
        %1078 = vmatpush1.bf16.xpose.msra.mxu0 0
        %1079 = vmatprep.subr.bf16.mxu0 0
        %1080 = vmatpush1.bf16.xpose.msra.mxu0 0
        %1081 = vmatprep.subr.bf16.mxu0 0
        %1082 = vmatpush1.bf16.xpose.msra.mxu0 0
        %1083 = vmatprep.subr.bf16.mxu0 0
        %1084 = vmatpush1.bf16.xpose.msra.mxu0 0
        %1085 = vmatprep.subr.bf16.mxu0 0
        %1086 = vmatpush1.bf16.xpose.msra.mxu0 0
        %1087 = vmatprep.subr.bf16.mxu0 0
        %1088 = vmatpush1.bf16.xpose.msra.mxu0 0
        %1089 = vmatprep.subr.bf16.mxu0 0
        %1090 = vmatpush1.bf16.xpose.msra.mxu0 0
        %1091 = vmatprep.subr.bf16.mxu0 0
        %1092 = vmatpush1.bf16.xpose.msra.mxu0 0
        %1093 = vmatprep.subr.bf16.mxu0 0
        %1094 = vmatpush1.bf16.xpose.msra.mxu0 0
        %1095 = vmatprep.subr.bf16.mxu0 0
        %1096 = vmatpush1.bf16.xpose.msra.mxu0 0
        %1097 = vmatprep.subr.bf16.mxu0 0
        %1098 = vmatpush1.bf16.xpose.msra.mxu0 0
        %1099 = vmatprep.mubr.bf16.mxu0 0
        %1100 = vmatmul.mubr.bf16.gmra.mrb[0].mxu0 %v1062
        %v1101 = vpop.f32.mrb[0].mxu0
        %v1102 = vadd.f32 0.0, %v1101
        %v1103 = vpop.f32.mrb[0].mxu0
        %v1104 = vpop.f32.mrb[0].mxu0
        %v1105 = vpop.f32.mrb[0].mxu0
        %1106 = vdwg.mxu0
        %v1107 = vsel %vm744, %v1102, -inf
        %1108 = vmax.xlane.f32.xlu0 %v1107
        %v1109 = vpop.xlane.xlu0 %1108
        %v1110 = vsub.f32 %v1102, %v1109
        %v1111 = vmul.f32 %v1110, 1.442695
        %v1112 = vpow.pop %v1111
        %v1113 = vsel %vm744, %v1112, 0.0
        %1114 = vadd.xlane.f32.xlu0 %v1113
        %v1115 = vpop.xlane.xlu0 %1114
        %v1116 = vrcp.pop %v1115
        %v1117 = vmul.f32 %v1112, %v1116
        %v1118 = vpack.c.bf16 %v1117, %v1117
        %1119 = vrot.lane.b32.xlu0 %v740, 48
        %v1120 = vpop.permute.xlu0 %1119
        %v1122 = vsel %vm744, %v1118, 0
        %v1125 = vsel %vm808, %v1120, 0
        %1127 = vmatprep.subr.bf16.mxu0 0
        %1128 = vmatpush1.bf16.msra.mxu0 %v1125
        %1129 = vmatprep.subr.bf16.mxu0 0
        %1130 = vmatpush1.bf16.msra.mxu0 0
        %1131 = vmatprep.subr.bf16.mxu0 0
        %1132 = vmatpush1.bf16.msra.mxu0 0
        %1133 = vmatprep.subr.bf16.mxu0 0
        %1134 = vmatpush1.bf16.msra.mxu0 0
        %1135 = vmatprep.subr.bf16.mxu0 0
        %1136 = vmatpush1.bf16.msra.mxu0 0
        %1137 = vmatprep.subr.bf16.mxu0 0
        %1138 = vmatpush1.bf16.msra.mxu0 0
        %1139 = vmatprep.subr.bf16.mxu0 0
        %1140 = vmatpush1.bf16.msra.mxu0 0
        %1141 = vmatprep.subr.bf16.mxu0 0
        %1142 = vmatpush1.bf16.msra.mxu0 0
        %1143 = vmatprep.subr.bf16.mxu0 0
        %1144 = vmatpush1.bf16.msra.mxu0 0
        %1145 = vmatprep.subr.bf16.mxu0 0
        %1146 = vmatpush1.bf16.msra.mxu0 0
        %1147 = vmatprep.subr.bf16.mxu0 0
        %1148 = vmatpush1.bf16.msra.mxu0 0
        %1149 = vmatprep.subr.bf16.mxu0 0
        %1150 = vmatpush1.bf16.msra.mxu0 0
        %1151 = vmatprep.subr.bf16.mxu0 0
        %1152 = vmatpush1.bf16.msra.mxu0 0
        %1153 = vmatprep.subr.bf16.mxu0 0
        %1154 = vmatpush1.bf16.msra.mxu0 0
        %1155 = vmatprep.subr.bf16.mxu0 0
        %1156 = vmatpush1.bf16.msra.mxu0 0
        %1157 = vmatprep.subr.bf16.mxu0 0
        %1158 = vmatpush1.bf16.msra.mxu0 0
        %1159 = vmatprep.mubr.bf16.mxu0 0
        %1160 = vmatmul.mubr.bf16.gmra.mrb[0].mxu0 %v1122
        %v1161 = vpop.f32.mrb[0].mxu0
        %v1162 = vadd.f32 0.0, %v1161
        %v1163 = vpop.f32.mrb[0].mxu0
        %v1164 = vpop.f32.mrb[0].mxu0
        %v1165 = vpop.f32.mrb[0].mxu0
        %1166 = vdwg.mxu0
        %v1167 = vpack.c.bf16 %v1162, %v1162
        %v1169 = vsel %vm744, %v1167, 0
        %v1172 = vsel %vm808, %v736, 0
        %1174 = vmatprep.subr.bf16.mxu0 0
        %1175 = vmatpush1.bf16.msra.mxu0 %v1172
        %1176 = vmatprep.subr.bf16.mxu0 0
        %1177 = vmatpush1.bf16.msra.mxu0 0
        %1178 = vmatprep.subr.bf16.mxu0 0
        %1179 = vmatpush1.bf16.msra.mxu0 0
        %1180 = vmatprep.subr.bf16.mxu0 0
        %1181 = vmatpush1.bf16.msra.mxu0 0
        %1182 = vmatprep.subr.bf16.mxu0 0
        %1183 = vmatpush1.bf16.msra.mxu0 0
        %1184 = vmatprep.subr.bf16.mxu0 0
        %1185 = vmatpush1.bf16.msra.mxu0 0
        %1186 = vmatprep.subr.bf16.mxu0 0
        %1187 = vmatpush1.bf16.msra.mxu0 0
        %1188 = vmatprep.subr.bf16.mxu0 0
        %1189 = vmatpush1.bf16.msra.mxu0 0
        %1190 = vmatprep.subr.bf16.mxu0 0
        %1191 = vmatpush1.bf16.msra.mxu0 0
        %1192 = vmatprep.subr.bf16.mxu0 0
        %1193 = vmatpush1.bf16.msra.mxu0 0
        %1194 = vmatprep.subr.bf16.mxu0 0
        %1195 = vmatpush1.bf16.msra.mxu0 0
        %1196 = vmatprep.subr.bf16.mxu0 0
        %1197 = vmatpush1.bf16.msra.mxu0 0
        %1198 = vmatprep.subr.bf16.mxu0 0
        %1199 = vmatpush1.bf16.msra.mxu0 0
        %1200 = vmatprep.subr.bf16.mxu0 0
        %1201 = vmatpush1.bf16.msra.mxu0 0
        %1202 = vmatprep.subr.bf16.mxu0 0
        %1203 = vmatpush1.bf16.msra.mxu0 0
        %1204 = vmatprep.subr.bf16.mxu0 0
        %1205 = vmatpush1.bf16.msra.mxu0 0
        %1206 = vmatprep.mubr.bf16.mxu0 0
        %1207 = vmatmul.mubr.bf16.gmra.mrb[0].mxu0 %v1169
        %v1208 = vpop.f32.mrb[0].mxu0
        %v1209 = vadd.f32 0.0, %v1208
        %v1210 = vpop.f32.mrb[0].mxu0
        %v1211 = vpop.f32.mrb[0].mxu0
        %v1212 = vpop.f32.mrb[0].mxu0
        %1213 = vdwg.mxu0
        %v1214 = vadd.f32 %v1052, %v1209
        %1215 = vrot.lane.b32.xlu0 %v739, 104
        %v1216 = vpop.permute.xlu0 %1215
        %1217 = vrot.lane.b32.xlu0 %v740, 72
        %v1218 = vpop.permute.xlu0 %1217
        %v1220 = vsel %vm744, %v1216, 0
        %v1223 = vsel %vm744, %v1218, 0
        %1225 = vmatprep.subr.bf16.mxu0 0
        %1226 = vmatpush1.bf16.xpose.msra.mxu0 %v1223
        %1227 = vmatprep.subr.bf16.mxu0 0
        %1228 = vmatpush1.bf16.xpose.msra.mxu0 0
        %1229 = vmatprep.subr.bf16.mxu0 0
        %1230 = vmatpush1.bf16.xpose.msra.mxu0 0
        %1231 = vmatprep.subr.bf16.mxu0 0
        %1232 = vmatpush1.bf16.xpose.msra.mxu0 0
        %1233 = vmatprep.subr.bf16.mxu0 0
        %1234 = vmatpush1.bf16.xpose.msra.mxu0 0
        %1235 = vmatprep.subr.bf16.mxu0 0
        %1236 = vmatpush1.bf16.xpose.msra.mxu0 0
        %1237 = vmatprep.subr.bf16.mxu0 0
        %1238 = vmatpush1.bf16.xpose.msra.mxu0 0
        %1239 = vmatprep.subr.bf16.mxu0 0
        %1240 = vmatpush1.bf16.xpose.msra.mxu0 0
        %1241 = vmatprep.subr.bf16.mxu0 0
        %1242 = vmatpush1.bf16.xpose.msra.mxu0 0
        %1243 = vmatprep.subr.bf16.mxu0 0
        %1244 = vmatpush1.bf16.xpose.msra.mxu0 0
        %1245 = vmatprep.subr.bf16.mxu0 0
        %1246 = vmatpush1.bf16.xpose.msra.mxu0 0
        %1247 = vmatprep.subr.bf16.mxu0 0
        %1248 = vmatpush1.bf16.xpose.msra.mxu0 0
        %1249 = vmatprep.subr.bf16.mxu0 0
        %1250 = vmatpush1.bf16.xpose.msra.mxu0 0
        %1251 = vmatprep.subr.bf16.mxu0 0
        %1252 = vmatpush1.bf16.xpose.msra.mxu0 0
        %1253 = vmatprep.subr.bf16.mxu0 0
        %1254 = vmatpush1.bf16.xpose.msra.mxu0 0
        %1255 = vmatprep.subr.bf16.mxu0 0
        %1256 = vmatpush1.bf16.xpose.msra.mxu0 0
        %1257 = vmatprep.mubr.bf16.mxu0 0
        %1258 = vmatmul.mubr.bf16.gmra.mrb[0].mxu0 %v1220
        %v1259 = vpop.f32.mrb[0].mxu0
        %v1260 = vadd.f32 0.0, %v1259
        %v1261 = vpop.f32.mrb[0].mxu0
        %v1262 = vpop.f32.mrb[0].mxu0
        %v1263 = vpop.f32.mrb[0].mxu0
        %1264 = vdwg.mxu0
        %v1265 = vsel %vm744, %v1260, -inf
        %1266 = vmax.xlane.f32.xlu0 %v1265
        %v1267 = vpop.xlane.xlu0 %1266
        %v1268 = vsub.f32 %v1260, %v1267
        %v1269 = vmul.f32 %v1268, 1.442695
        %v1270 = vpow.pop %v1269
        %v1271 = vsel %vm744, %v1270, 0.0
        %1272 = vadd.xlane.f32.xlu0 %v1271
        %v1273 = vpop.xlane.xlu0 %1272
        %v1274 = vrcp.pop %v1273
        %v1275 = vmul.f32 %v1270, %v1274
        %v1276 = vpack.c.bf16 %v1275, %v1275
        %1277 = vrot.lane.b32.xlu0 %v740, 40
        %v1278 = vpop.permute.xlu0 %1277
        %v1280 = vsel %vm744, %v1276, 0
        %v1283 = vsel %vm808, %v1278, 0
        %1285 = vmatprep.subr.bf16.mxu0 0
        %1286 = vmatpush1.bf16.msra.mxu0 %v1283
        %1287 = vmatprep.subr.bf16.mxu0 0
        %1288 = vmatpush1.bf16.msra.mxu0 0
        %1289 = vmatprep.subr.bf16.mxu0 0
        %1290 = vmatpush1.bf16.msra.mxu0 0
        %1291 = vmatprep.subr.bf16.mxu0 0
        %1292 = vmatpush1.bf16.msra.mxu0 0
        %1293 = vmatprep.subr.bf16.mxu0 0
        %1294 = vmatpush1.bf16.msra.mxu0 0
        %1295 = vmatprep.subr.bf16.mxu0 0
        %1296 = vmatpush1.bf16.msra.mxu0 0
        %1297 = vmatprep.subr.bf16.mxu0 0
        %1298 = vmatpush1.bf16.msra.mxu0 0
        %1299 = vmatprep.subr.bf16.mxu0 0
        %1300 = vmatpush1.bf16.msra.mxu0 0
        %1301 = vmatprep.subr.bf16.mxu0 0
        %1302 = vmatpush1.bf16.msra.mxu0 0
        %1303 = vmatprep.subr.bf16.mxu0 0
        %1304 = vmatpush1.bf16.msra.mxu0 0
        %1305 = vmatprep.subr.bf16.mxu0 0
        %1306 = vmatpush1.bf16.msra.mxu0 0
        %1307 = vmatprep.subr.bf16.mxu0 0
        %1308 = vmatpush1.bf16.msra.mxu0 0
        %1309 = vmatprep.subr.bf16.mxu0 0
        %1310 = vmatpush1.bf16.msra.mxu0 0
        %1311 = vmatprep.subr.bf16.mxu0 0
        %1312 = vmatpush1.bf16.msra.mxu0 0
        %1313 = vmatprep.subr.bf16.mxu0 0
        %1314 = vmatpush1.bf16.msra.mxu0 0
        %1315 = vmatprep.subr.bf16.mxu0 0
        %1316 = vmatpush1.bf16.msra.mxu0 0
        %1317 = vmatprep.mubr.bf16.mxu0 0
        %1318 = vmatmul.mubr.bf16.gmra.mrb[0].mxu0 %v1280
        %v1319 = vpop.f32.mrb[0].mxu0
        %v1320 = vadd.f32 0.0, %v1319
        %v1321 = vpop.f32.mrb[0].mxu0
        %v1322 = vpop.f32.mrb[0].mxu0
        %v1323 = vpop.f32.mrb[0].mxu0
        %1324 = vdwg.mxu0
        %v1325 = vpack.c.bf16 %v1320, %v1320
        %v1327 = vsel %vm744, %v1325, 0
        %v1330 = vsel %vm808, %v737, 0
        %1332 = vmatprep.subr.bf16.mxu0 0
        %1333 = vmatpush1.bf16.msra.mxu0 %v1330
        %1334 = vmatprep.subr.bf16.mxu0 0
        %1335 = vmatpush1.bf16.msra.mxu0 0
        %1336 = vmatprep.subr.bf16.mxu0 0
        %1337 = vmatpush1.bf16.msra.mxu0 0
        %1338 = vmatprep.subr.bf16.mxu0 0
        %1339 = vmatpush1.bf16.msra.mxu0 0
        %1340 = vmatprep.subr.bf16.mxu0 0
        %1341 = vmatpush1.bf16.msra.mxu0 0
        %1342 = vmatprep.subr.bf16.mxu0 0
        %1343 = vmatpush1.bf16.msra.mxu0 0
        %1344 = vmatprep.subr.bf16.mxu0 0
        %1345 = vmatpush1.bf16.msra.mxu0 0
        %1346 = vmatprep.subr.bf16.mxu0 0
        %1347 = vmatpush1.bf16.msra.mxu0 0
        %1348 = vmatprep.subr.bf16.mxu0 0
        %1349 = vmatpush1.bf16.msra.mxu0 0
        %1350 = vmatprep.subr.bf16.mxu0 0
        %1351 = vmatpush1.bf16.msra.mxu0 0
        %1352 = vmatprep.subr.bf16.mxu0 0
        %1353 = vmatpush1.bf16.msra.mxu0 0
        %1354 = vmatprep.subr.bf16.mxu0 0
        %1355 = vmatpush1.bf16.msra.mxu0 0
        %1356 = vmatprep.subr.bf16.mxu0 0
        %1357 = vmatpush1.bf16.msra.mxu0 0
        %1358 = vmatprep.subr.bf16.mxu0 0
        %1359 = vmatpush1.bf16.msra.mxu0 0
        %1360 = vmatprep.subr.bf16.mxu0 0
        %1361 = vmatpush1.bf16.msra.mxu0 0
        %1362 = vmatprep.subr.bf16.mxu0 0
        %1363 = vmatpush1.bf16.msra.mxu0 0
        %1364 = vmatprep.mubr.bf16.mxu0 0
        %1365 = vmatmul.mubr.bf16.gmra.mrb[0].mxu0 %v1327
        %v1366 = vpop.f32.mrb[0].mxu0
        %v1367 = vadd.f32 0.0, %v1366
        %v1368 = vpop.f32.mrb[0].mxu0
        %v1369 = vpop.f32.mrb[0].mxu0
        %v1370 = vpop.f32.mrb[0].mxu0
        %1371 = vdwg.mxu0
        %v1372 = vadd.f32 %v1214, %v1367
        %1373 = vst.msk [vmem:[#allocation3] sm:$0xff] %vm689, %v1372
        %v1374 = vmul.f32 %v731, 0.35355338
        %v1375 = vpack.c.bf16 %v1374, %v1374
        %v1376 = vpack.c.bf16 %v731, %v731
        %1378 = vrot.lane.b32.xlu0 %v1376, 96
        %v1379 = vpop.permute.xlu0 %1378
        %v1381 = vsel %vm744, %v1375, 0
        %v1384 = vsel %vm744, %v1379, 0
        %1386 = vmatprep.subr.bf16.mxu0 0
        %1387 = vmatpush1.bf16.xpose.msra.mxu0 %v1384
        %1388 = vmatprep.subr.bf16.mxu0 0
        %1389 = vmatpush1.bf16.xpose.msra.mxu0 0
        %1390 = vmatprep.subr.bf16.mxu0 0
        %1391 = vmatpush1.bf16.xpose.msra.mxu0 0
        %1392 = vmatprep.subr.bf16.mxu0 0
        %1393 = vmatpush1.bf16.xpose.msra.mxu0 0
        %1394 = vmatprep.subr.bf16.mxu0 0
        %1395 = vmatpush1.bf16.xpose.msra.mxu0 0
        %1396 = vmatprep.subr.bf16.mxu0 0
        %1397 = vmatpush1.bf16.xpose.msra.mxu0 0
        %1398 = vmatprep.subr.bf16.mxu0 0
        %1399 = vmatpush1.bf16.xpose.msra.mxu0 0
        %1400 = vmatprep.subr.bf16.mxu0 0
        %1401 = vmatpush1.bf16.xpose.msra.mxu0 0
        %1402 = vmatprep.subr.bf16.mxu0 0
        %1403 = vmatpush1.bf16.xpose.msra.mxu0 0
        %1404 = vmatprep.subr.bf16.mxu0 0
        %1405 = vmatpush1.bf16.xpose.msra.mxu0 0
        %1406 = vmatprep.subr.bf16.mxu0 0
        %1407 = vmatpush1.bf16.xpose.msra.mxu0 0
        %1408 = vmatprep.subr.bf16.mxu0 0
        %1409 = vmatpush1.bf16.xpose.msra.mxu0 0
        %1410 = vmatprep.subr.bf16.mxu0 0
        %1411 = vmatpush1.bf16.xpose.msra.mxu0 0
        %1412 = vmatprep.subr.bf16.mxu0 0
        %1413 = vmatpush1.bf16.xpose.msra.mxu0 0
        %1414 = vmatprep.subr.bf16.mxu0 0
        %1415 = vmatpush1.bf16.xpose.msra.mxu0 0
        %1416 = vmatprep.subr.bf16.mxu0 0
        %1417 = vmatpush1.bf16.xpose.msra.mxu0 0
        %1418 = vmatprep.mubr.bf16.mxu0 0
        %1419 = vmatmul.mubr.bf16.gmra.mrb[0].mxu0 %v1381
        %v1420 = vpop.f32.mrb[0].mxu0
        %v1421 = vadd.f32 0.0, %v1420
        %v1422 = vpop.f32.mrb[0].mxu0
        %v1423 = vpop.f32.mrb[0].mxu0
        %v1424 = vpop.f32.mrb[0].mxu0
        %1425 = vdwg.mxu0
        %v1426 = vsel %vm744, %v1421, -inf
        %1427 = vmax.xlane.f32.xlu0 %v1426
        %v1428 = vpop.xlane.xlu0 %1427
        %v1429 = vsub.f32 %v1421, %v1428
        %v1430 = vmul.f32 %v1429, 1.442695
        %v1431 = vpow.pop %v1430
        %v1432 = vsel %vm744, %v1431, 0.0
        %1433 = vadd.xlane.f32.xlu0 %v1432
        %v1434 = vpop.xlane.xlu0 %1433
        %v1435 = vrcp.pop %v1434
        %v1436 = vmul.f32 %v1431, %v1435
        %v1437 = vpack.c.bf16 %v1436, %v1436
        %1438 = vrot.lane.b32.xlu0 %v1376, 64
        %v1439 = vpop.permute.xlu0 %1438
        %v1441 = vsel %vm744, %v1437, 0
        %v1444 = vsel %vm808, %v1439, 0
        %1446 = vmatprep.subr.bf16.mxu0 0
        %1447 = vmatpush1.bf16.msra.mxu0 %v1444
        %1448 = vmatprep.subr.bf16.mxu0 0
        %1449 = vmatpush1.bf16.msra.mxu0 0
        %1450 = vmatprep.subr.bf16.mxu0 0
        %1451 = vmatpush1.bf16.msra.mxu0 0
        %1452 = vmatprep.subr.bf16.mxu0 0
        %1453 = vmatpush1.bf16.msra.mxu0 0
        %1454 = vmatprep.subr.bf16.mxu0 0
        %1455 = vmatpush1.bf16.msra.mxu0 0
        %1456 = vmatprep.subr.bf16.mxu0 0
        %1457 = vmatpush1.bf16.msra.mxu0 0
        %1458 = vmatprep.subr.bf16.mxu0 0
        %1459 = vmatpush1.bf16.msra.mxu0 0
        %1460 = vmatprep.subr.bf16.mxu0 0
        %1461 = vmatpush1.bf16.msra.mxu0 0
        %1462 = vmatprep.subr.bf16.mxu0 0
        %1463 = vmatpush1.bf16.msra.mxu0 0
        %1464 = vmatprep.subr.bf16.mxu0 0
        %1465 = vmatpush1.bf16.msra.mxu0 0
        %1466 = vmatprep.subr.bf16.mxu0 0
        %1467 = vmatpush1.bf16.msra.mxu0 0
        %1468 = vmatprep.subr.bf16.mxu0 0
        %1469 = vmatpush1.bf16.msra.mxu0 0
        %1470 = vmatprep.subr.bf16.mxu0 0
        %1471 = vmatpush1.bf16.msra.mxu0 0
        %1472 = vmatprep.subr.bf16.mxu0 0
        %1473 = vmatpush1.bf16.msra.mxu0 0
        %1474 = vmatprep.subr.bf16.mxu0 0
        %1475 = vmatpush1.bf16.msra.mxu0 0
        %1476 = vmatprep.subr.bf16.mxu0 0
        %1477 = vmatpush1.bf16.msra.mxu0 0
        %1478 = vmatprep.mubr.bf16.mxu0 0
        %1479 = vmatmul.mubr.bf16.gmra.mrb[0].mxu0 %v1441
        %v1480 = vpop.f32.mrb[0].mxu0
        %v1481 = vadd.f32 0.0, %v1480
        %v1482 = vpop.f32.mrb[0].mxu0
        %v1483 = vpop.f32.mrb[0].mxu0
        %v1484 = vpop.f32.mrb[0].mxu0
        %1485 = vdwg.mxu0
        %v1486 = vpack.c.bf16 %v1481, %v1481
        %1488 = vrot.lane.b32.xlu0 %v1375, 120
        %v1489 = vpop.permute.xlu0 %1488
        %1490 = vrot.lane.b32.xlu0 %v1376, 88
        %v1491 = vpop.permute.xlu0 %1490
        %v1493 = vsel %vm744, %v1489, 0
        %v1496 = vsel %vm744, %v1491, 0
        %1498 = vmatprep.subr.bf16.mxu0 0
        %1499 = vmatpush1.bf16.xpose.msra.mxu0 %v1496
        %1500 = vmatprep.subr.bf16.mxu0 0
        %1501 = vmatpush1.bf16.xpose.msra.mxu0 0
        %1502 = vmatprep.subr.bf16.mxu0 0
        %1503 = vmatpush1.bf16.xpose.msra.mxu0 0
        %1504 = vmatprep.subr.bf16.mxu0 0
        %1505 = vmatpush1.bf16.xpose.msra.mxu0 0
        %1506 = vmatprep.subr.bf16.mxu0 0
        %1507 = vmatpush1.bf16.xpose.msra.mxu0 0
        %1508 = vmatprep.subr.bf16.mxu0 0
        %1509 = vmatpush1.bf16.xpose.msra.mxu0 0
        %1510 = vmatprep.subr.bf16.mxu0 0
        %1511 = vmatpush1.bf16.xpose.msra.mxu0 0
        %1512 = vmatprep.subr.bf16.mxu0 0
        %1513 = vmatpush1.bf16.xpose.msra.mxu0 0
        %1514 = vmatprep.subr.bf16.mxu0 0
        %1515 = vmatpush1.bf16.xpose.msra.mxu0 0
        %1516 = vmatprep.subr.bf16.mxu0 0
        %1517 = vmatpush1.bf16.xpose.msra.mxu0 0
        %1518 = vmatprep.subr.bf16.mxu0 0
        %1519 = vmatpush1.bf16.xpose.msra.mxu0 0
        %1520 = vmatprep.subr.bf16.mxu0 0
        %1521 = vmatpush1.bf16.xpose.msra.mxu0 0
        %1522 = vmatprep.subr.bf16.mxu0 0
        %1523 = vmatpush1.bf16.xpose.msra.mxu0 0
        %1524 = vmatprep.subr.bf16.mxu0 0
        %1525 = vmatpush1.bf16.xpose.msra.mxu0 0
        %1526 = vmatprep.subr.bf16.mxu0 0
        %1527 = vmatpush1.bf16.xpose.msra.mxu0 0
        %1528 = vmatprep.subr.bf16.mxu0 0
        %1529 = vmatpush1.bf16.xpose.msra.mxu0 0
        %1530 = vmatprep.mubr.bf16.mxu0 0
        %1531 = vmatmul.mubr.bf16.gmra.mrb[0].mxu0 %v1493
        %v1532 = vpop.f32.mrb[0].mxu0
        %v1533 = vadd.f32 0.0, %v1532
        %v1534 = vpop.f32.mrb[0].mxu0
        %v1535 = vpop.f32.mrb[0].mxu0
        %v1536 = vpop.f32.mrb[0].mxu0
        %1537 = vdwg.mxu0
        %v1538 = vsel %vm744, %v1533, -inf
        %1539 = vmax.xlane.f32.xlu0 %v1538
        %v1540 = vpop.xlane.xlu0 %1539
        %v1541 = vsub.f32 %v1533, %v1540
        %v1542 = vmul.f32 %v1541, 1.442695
        %v1543 = vpow.pop %v1542
        %v1544 = vsel %vm744, %v1543, 0.0
        %1545 = vadd.xlane.f32.xlu0 %v1544
        %v1546 = vpop.xlane.xlu0 %1545
        %v1547 = vrcp.pop %v1546
        %v1548 = vmul.f32 %v1543, %v1547
        %v1549 = vpack.c.bf16 %v1548, %v1548
        %1550 = vrot.lane.b32.xlu0 %v1376, 56
        %v1551 = vpop.permute.xlu0 %1550
        %v1553 = vsel %vm744, %v1549, 0
        %v1556 = vsel %vm808, %v1551, 0
        %1558 = vmatprep.subr.bf16.mxu0 0
        %1559 = vmatpush1.bf16.msra.mxu0 %v1556
        %1560 = vmatprep.subr.bf16.mxu0 0
        %1561 = vmatpush1.bf16.msra.mxu0 0
        %1562 = vmatprep.subr.bf16.mxu0 0
        %1563 = vmatpush1.bf16.msra.mxu0 0
        %1564 = vmatprep.subr.bf16.mxu0 0
        %1565 = vmatpush1.bf16.msra.mxu0 0
        %1566 = vmatprep.subr.bf16.mxu0 0
        %1567 = vmatpush1.bf16.msra.mxu0 0
        %1568 = vmatprep.subr.bf16.mxu0 0
        %1569 = vmatpush1.bf16.msra.mxu0 0
        %1570 = vmatprep.subr.bf16.mxu0 0
        %1571 = vmatpush1.bf16.msra.mxu0 0
        %1572 = vmatprep.subr.bf16.mxu0 0
        %1573 = vmatpush1.bf16.msra.mxu0 0
        %1574 = vmatprep.subr.bf16.mxu0 0
        %1575 = vmatpush1.bf16.msra.mxu0 0
        %1576 = vmatprep.subr.bf16.mxu0 0
        %1577 = vmatpush1.bf16.msra.mxu0 0
        %1578 = vmatprep.subr.bf16.mxu0 0
        %1579 = vmatpush1.bf16.msra.mxu0 0
        %1580 = vmatprep.subr.bf16.mxu0 0
        %1581 = vmatpush1.bf16.msra.mxu0 0
        %1582 = vmatprep.subr.bf16.mxu0 0
        %1583 = vmatpush1.bf16.msra.mxu0 0
        %1584 = vmatprep.subr.bf16.mxu0 0
        %1585 = vmatpush1.bf16.msra.mxu0 0
        %1586 = vmatprep.subr.bf16.mxu0 0
        %1587 = vmatpush1.bf16.msra.mxu0 0
        %1588 = vmatprep.subr.bf16.mxu0 0
        %1589 = vmatpush1.bf16.msra.mxu0 0
        %1590 = vmatprep.mubr.bf16.mxu0 0
        %1591 = vmatmul.mubr.bf16.gmra.mrb[0].mxu0 %v1553
        %v1592 = vpop.f32.mrb[0].mxu0
        %v1593 = vadd.f32 0.0, %v1592
        %v1594 = vpop.f32.mrb[0].mxu0
        %v1595 = vpop.f32.mrb[0].mxu0
        %v1596 = vpop.f32.mrb[0].mxu0
        %1597 = vdwg.mxu0
        %v1598 = vpack.c.bf16 %v1593, %v1593
        %v1600 = vsel %vm744, %v1598, 0
        %1602 = vmatprep.subr.bf16.mxu0 0
        %1603 = vmatpush1.bf16.msra.mxu0 %v969
        %1604 = vmatprep.subr.bf16.mxu0 0
        %1605 = vmatpush1.bf16.msra.mxu0 0
        %1606 = vmatprep.subr.bf16.mxu0 0
        %1607 = vmatpush1.bf16.msra.mxu0 0
        %1608 = vmatprep.subr.bf16.mxu0 0
        %1609 = vmatpush1.bf16.msra.mxu0 0
        %1610 = vmatprep.subr.bf16.mxu0 0
        %1611 = vmatpush1.bf16.msra.mxu0 0
        %1612 = vmatprep.subr.bf16.mxu0 0
        %1613 = vmatpush1.bf16.msra.mxu0 0
        %1614 = vmatprep.subr.bf16.mxu0 0
        %1615 = vmatpush1.bf16.msra.mxu0 0
        %1616 = vmatprep.subr.bf16.mxu0 0
        %1617 = vmatpush1.bf16.msra.mxu0 0
        %1618 = vmatprep.subr.bf16.mxu0 0
        %1619 = vmatpush1.bf16.msra.mxu0 0
        %1620 = vmatprep.subr.bf16.mxu0 0
        %1621 = vmatpush1.bf16.msra.mxu0 0
        %1622 = vmatprep.subr.bf16.mxu0 0
        %1623 = vmatpush1.bf16.msra.mxu0 0
        %1624 = vmatprep.subr.bf16.mxu0 0
        %1625 = vmatpush1.bf16.msra.mxu0 0
        %1626 = vmatprep.subr.bf16.mxu0 0
        %1627 = vmatpush1.bf16.msra.mxu0 0
        %1628 = vmatprep.subr.bf16.mxu0 0
        %1629 = vmatpush1.bf16.msra.mxu0 0
        %1630 = vmatprep.subr.bf16.mxu0 0
        %1631 = vmatpush1.bf16.msra.mxu0 0
        %1632 = vmatprep.subr.bf16.mxu0 0
        %1633 = vmatpush1.bf16.msra.mxu0 0
        %1634 = vmatprep.mubr.bf16.mxu0 0
        %1635 = vmatmul.mubr.bf16.gmra.mrb[0].mxu0 %v1600
        %v1636 = vpop.f32.mrb[0].mxu0
        %v1637 = vadd.f32 0.0, %v1636
        %v1638 = vpop.f32.mrb[0].mxu0
        %v1639 = vpop.f32.mrb[0].mxu0
        %v1640 = vpop.f32.mrb[0].mxu0
        %1641 = vdwg.mxu0
        %v1643 = vsel %vm744, %v1486, 0
        %1645 = vmatprep.subr.bf16.mxu0 0
        %1646 = vmatpush1.bf16.msra.mxu0 %v1015
        %1647 = vmatprep.subr.bf16.mxu0 0
        %1648 = vmatpush1.bf16.msra.mxu0 0
        %1649 = vmatprep.subr.bf16.mxu0 0
        %1650 = vmatpush1.bf16.msra.mxu0 0
        %1651 = vmatprep.subr.bf16.mxu0 0
        %1652 = vmatpush1.bf16.msra.mxu0 0
        %1653 = vmatprep.subr.bf16.mxu0 0
        %1654 = vmatpush1.bf16.msra.mxu0 0
        %1655 = vmatprep.subr.bf16.mxu0 0
        %1656 = vmatpush1.bf16.msra.mxu0 0
        %1657 = vmatprep.subr.bf16.mxu0 0
        %1658 = vmatpush1.bf16.msra.mxu0 0
        %1659 = vmatprep.subr.bf16.mxu0 0
        %1660 = vmatpush1.bf16.msra.mxu0 0
        %1661 = vmatprep.subr.bf16.mxu0 0
        %1662 = vmatpush1.bf16.msra.mxu0 0
        %1663 = vmatprep.subr.bf16.mxu0 0
        %1664 = vmatpush1.bf16.msra.mxu0 0
        %1665 = vmatprep.subr.bf16.mxu0 0
        %1666 = vmatpush1.bf16.msra.mxu0 0
        %1667 = vmatprep.subr.bf16.mxu0 0
        %1668 = vmatpush1.bf16.msra.mxu0 0
        %1669 = vmatprep.subr.bf16.mxu0 0
        %1670 = vmatpush1.bf16.msra.mxu0 0
        %1671 = vmatprep.subr.bf16.mxu0 0
        %1672 = vmatpush1.bf16.msra.mxu0 0
        %1673 = vmatprep.subr.bf16.mxu0 0
        %1674 = vmatpush1.bf16.msra.mxu0 0
        %1675 = vmatprep.subr.bf16.mxu0 0
        %1676 = vmatpush1.bf16.msra.mxu0 0
        %1677 = vmatprep.mubr.bf16.mxu0 0
        %1678 = vmatmul.mubr.bf16.gmra.mrb[0].mxu0 %v1643
        %v1679 = vpop.f32.mrb[0].mxu0
        %v1680 = vadd.f32 %v1637, %v1679
        %v1681 = vpop.f32.mrb[0].mxu0
        %v1682 = vpop.f32.mrb[0].mxu0
        %v1683 = vpop.f32.mrb[0].mxu0
        %1684 = vdwg.mxu0
        %1685 = vrot.lane.b32.xlu0 %v1375, 112
        %v1686 = vpop.permute.xlu0 %1685
        %1687 = vrot.lane.b32.xlu0 %v1376, 80
        %v1688 = vpop.permute.xlu0 %1687
        %v1690 = vsel %vm744, %v1686, 0
        %v1693 = vsel %vm744, %v1688, 0
        %1695 = vmatprep.subr.bf16.mxu0 0
        %1696 = vmatpush1.bf16.xpose.msra.mxu0 %v1693
        %1697 = vmatprep.subr.bf16.mxu0 0
        %1698 = vmatpush1.bf16.xpose.msra.mxu0 0
        %1699 = vmatprep.subr.bf16.mxu0 0
        %1700 = vmatpush1.bf16.xpose.msra.mxu0 0
        %1701 = vmatprep.subr.bf16.mxu0 0
        %1702 = vmatpush1.bf16.xpose.msra.mxu0 0
        %1703 = vmatprep.subr.bf16.mxu0 0
        %1704 = vmatpush1.bf16.xpose.msra.mxu0 0
        %1705 = vmatprep.subr.bf16.mxu0 0
        %1706 = vmatpush1.bf16.xpose.msra.mxu0 0
        %1707 = vmatprep.subr.bf16.mxu0 0
        %1708 = vmatpush1.bf16.xpose.msra.mxu0 0
        %1709 = vmatprep.subr.bf16.mxu0 0
        %1710 = vmatpush1.bf16.xpose.msra.mxu0 0
        %1711 = vmatprep.subr.bf16.mxu0 0
        %1712 = vmatpush1.bf16.xpose.msra.mxu0 0
        %1713 = vmatprep.subr.bf16.mxu0 0
        %1714 = vmatpush1.bf16.xpose.msra.mxu0 0
        %1715 = vmatprep.subr.bf16.mxu0 0
        %1716 = vmatpush1.bf16.xpose.msra.mxu0 0
        %1717 = vmatprep.subr.bf16.mxu0 0
        %1718 = vmatpush1.bf16.xpose.msra.mxu0 0
        %1719 = vmatprep.subr.bf16.mxu0 0
        %1720 = vmatpush1.bf16.xpose.msra.mxu0 0
        %1721 = vmatprep.subr.bf16.mxu0 0
        %1722 = vmatpush1.bf16.xpose.msra.mxu0 0
        %1723 = vmatprep.subr.bf16.mxu0 0
        %1724 = vmatpush1.bf16.xpose.msra.mxu0 0
        %1725 = vmatprep.subr.bf16.mxu0 0
        %1726 = vmatpush1.bf16.xpose.msra.mxu0 0
        %1727 = vmatprep.mubr.bf16.mxu0 0
        %1728 = vmatmul.mubr.bf16.gmra.mrb[0].mxu0 %v1690
        %v1729 = vpop.f32.mrb[0].mxu0
        %v1730 = vadd.f32 0.0, %v1729
        %v1731 = vpop.f32.mrb[0].mxu0
        %v1732 = vpop.f32.mrb[0].mxu0
        %v1733 = vpop.f32.mrb[0].mxu0
        %1734 = vdwg.mxu0
        %v1735 = vsel %vm744, %v1730, -inf
        %1736 = vmax.xlane.f32.xlu0 %v1735
        %v1737 = vpop.xlane.xlu0 %1736
        %v1738 = vsub.f32 %v1730, %v1737
        %v1739 = vmul.f32 %v1738, 1.442695
        %v1740 = vpow.pop %v1739
        %v1741 = vsel %vm744, %v1740, 0.0
        %1742 = vadd.xlane.f32.xlu0 %v1741
        %v1743 = vpop.xlane.xlu0 %1742
        %v1744 = vrcp.pop %v1743
        %v1745 = vmul.f32 %v1740, %v1744
        %v1746 = vpack.c.bf16 %v1745, %v1745
        %1747 = vrot.lane.b32.xlu0 %v1376, 48
        %v1748 = vpop.permute.xlu0 %1747
        %v1750 = vsel %vm744, %v1746, 0
        %v1753 = vsel %vm808, %v1748, 0
        %1755 = vmatprep.subr.bf16.mxu0 0
        %1756 = vmatpush1.bf16.msra.mxu0 %v1753
        %1757 = vmatprep.subr.bf16.mxu0 0
        %1758 = vmatpush1.bf16.msra.mxu0 0
        %1759 = vmatprep.subr.bf16.mxu0 0
        %1760 = vmatpush1.bf16.msra.mxu0 0
        %1761 = vmatprep.subr.bf16.mxu0 0
        %1762 = vmatpush1.bf16.msra.mxu0 0
        %1763 = vmatprep.subr.bf16.mxu0 0
        %1764 = vmatpush1.bf16.msra.mxu0 0
        %1765 = vmatprep.subr.bf16.mxu0 0
        %1766 = vmatpush1.bf16.msra.mxu0 0
        %1767 = vmatprep.subr.bf16.mxu0 0
        %1768 = vmatpush1.bf16.msra.mxu0 0
        %1769 = vmatprep.subr.bf16.mxu0 0
        %1770 = vmatpush1.bf16.msra.mxu0 0
        %1771 = vmatprep.subr.bf16.mxu0 0
        %1772 = vmatpush1.bf16.msra.mxu0 0
        %1773 = vmatprep.subr.bf16.mxu0 0
        %1774 = vmatpush1.bf16.msra.mxu0 0
        %1775 = vmatprep.subr.bf16.mxu0 0
        %1776 = vmatpush1.bf16.msra.mxu0 0
        %1777 = vmatprep.subr.bf16.mxu0 0
        %1778 = vmatpush1.bf16.msra.mxu0 0
        %1779 = vmatprep.subr.bf16.mxu0 0
        %1780 = vmatpush1.bf16.msra.mxu0 0
        %1781 = vmatprep.subr.bf16.mxu0 0
        %1782 = vmatpush1.bf16.msra.mxu0 0
        %1783 = vmatprep.subr.bf16.mxu0 0
        %1784 = vmatpush1.bf16.msra.mxu0 0
        %1785 = vmatprep.subr.bf16.mxu0 0
        %1786 = vmatpush1.bf16.msra.mxu0 0
        %1787 = vmatprep.mubr.bf16.mxu0 0
        %1788 = vmatmul.mubr.bf16.gmra.mrb[0].mxu0 %v1750
        %v1789 = vpop.f32.mrb[0].mxu0
        %v1790 = vadd.f32 0.0, %v1789
        %v1791 = vpop.f32.mrb[0].mxu0
        %v1792 = vpop.f32.mrb[0].mxu0
        %v1793 = vpop.f32.mrb[0].mxu0
        %1794 = vdwg.mxu0
        %v1795 = vpack.c.bf16 %v1790, %v1790
        %v1797 = vsel %vm744, %v1795, 0
        %1799 = vmatprep.subr.bf16.mxu0 0
        %1800 = vmatpush1.bf16.msra.mxu0 %v1172
        %1801 = vmatprep.subr.bf16.mxu0 0
        %1802 = vmatpush1.bf16.msra.mxu0 0
        %1803 = vmatprep.subr.bf16.mxu0 0
        %1804 = vmatpush1.bf16.msra.mxu0 0
        %1805 = vmatprep.subr.bf16.mxu0 0
        %1806 = vmatpush1.bf16.msra.mxu0 0
        %1807 = vmatprep.subr.bf16.mxu0 0
        %1808 = vmatpush1.bf16.msra.mxu0 0
        %1809 = vmatprep.subr.bf16.mxu0 0
        %1810 = vmatpush1.bf16.msra.mxu0 0
        %1811 = vmatprep.subr.bf16.mxu0 0
        %1812 = vmatpush1.bf16.msra.mxu0 0
        %1813 = vmatprep.subr.bf16.mxu0 0
        %1814 = vmatpush1.bf16.msra.mxu0 0
        %1815 = vmatprep.subr.bf16.mxu0 0
        %1816 = vmatpush1.bf16.msra.mxu0 0
        %1817 = vmatprep.subr.bf16.mxu0 0
        %1818 = vmatpush1.bf16.msra.mxu0 0
        %1819 = vmatprep.subr.bf16.mxu0 0
        %1820 = vmatpush1.bf16.msra.mxu0 0
        %1821 = vmatprep.subr.bf16.mxu0 0
        %1822 = vmatpush1.bf16.msra.mxu0 0
        %1823 = vmatprep.subr.bf16.mxu0 0
        %1824 = vmatpush1.bf16.msra.mxu0 0
        %1825 = vmatprep.subr.bf16.mxu0 0
        %1826 = vmatpush1.bf16.msra.mxu0 0
        %1827 = vmatprep.subr.bf16.mxu0 0
        %1828 = vmatpush1.bf16.msra.mxu0 0
        %1829 = vmatprep.subr.bf16.mxu0 0
        %1830 = vmatpush1.bf16.msra.mxu0 0
        %1831 = vmatprep.mubr.bf16.mxu0 0
        %1832 = vmatmul.mubr.bf16.gmra.mrb[0].mxu0 %v1797
        %v1833 = vpop.f32.mrb[0].mxu0
        %v1834 = vadd.f32 0.0, %v1833
        %v1835 = vpop.f32.mrb[0].mxu0
        %v1836 = vpop.f32.mrb[0].mxu0
        %v1837 = vpop.f32.mrb[0].mxu0
        %1838 = vdwg.mxu0
        %v1839 = vadd.f32 %v1680, %v1834
        %1840 = vrot.lane.b32.xlu0 %v1375, 104
        %v1841 = vpop.permute.xlu0 %1840
        %1842 = vrot.lane.b32.xlu0 %v1376, 72
        %v1843 = vpop.permute.xlu0 %1842
        %v1845 = vsel %vm744, %v1841, 0
        %v1848 = vsel %vm744, %v1843, 0
        %1850 = vmatprep.subr.bf16.mxu0 0
        %1851 = vmatpush1.bf16.xpose.msra.mxu0 %v1848
        %1852 = vmatprep.subr.bf16.mxu0 0
        %1853 = vmatpush1.bf16.xpose.msra.mxu0 0
        %1854 = vmatprep.subr.bf16.mxu0 0
        %1855 = vmatpush1.bf16.xpose.msra.mxu0 0
        %1856 = vmatprep.subr.bf16.mxu0 0
        %1857 = vmatpush1.bf16.xpose.msra.mxu0 0
        %1858 = vmatprep.subr.bf16.mxu0 0
        %1859 = vmatpush1.bf16.xpose.msra.mxu0 0
        %1860 = vmatprep.subr.bf16.mxu0 0
        %1861 = vmatpush1.bf16.xpose.msra.mxu0 0
        %1862 = vmatprep.subr.bf16.mxu0 0
        %1863 = vmatpush1.bf16.xpose.msra.mxu0 0
        %1864 = vmatprep.subr.bf16.mxu0 0
        %1865 = vmatpush1.bf16.xpose.msra.mxu0 0
        %1866 = vmatprep.subr.bf16.mxu0 0
        %1867 = vmatpush1.bf16.xpose.msra.mxu0 0
        %1868 = vmatprep.subr.bf16.mxu0 0
        %1869 = vmatpush1.bf16.xpose.msra.mxu0 0
        %1870 = vmatprep.subr.bf16.mxu0 0
        %1871 = vmatpush1.bf16.xpose.msra.mxu0 0
        %1872 = vmatprep.subr.bf16.mxu0 0
        %1873 = vmatpush1.bf16.xpose.msra.mxu0 0
        %1874 = vmatprep.subr.bf16.mxu0 0
        %1875 = vmatpush1.bf16.xpose.msra.mxu0 0
        %1876 = vmatprep.subr.bf16.mxu0 0
        %1877 = vmatpush1.bf16.xpose.msra.mxu0 0
        %1878 = vmatprep.subr.bf16.mxu0 0
        %1879 = vmatpush1.bf16.xpose.msra.mxu0 0
        %1880 = vmatprep.subr.bf16.mxu0 0
        %1881 = vmatpush1.bf16.xpose.msra.mxu0 0
        %1882 = vmatprep.mubr.bf16.mxu0 0
        %1883 = vmatmul.mubr.bf16.gmra.mrb[0].mxu0 %v1845
        %v1884 = vpop.f32.mrb[0].mxu0
        %v1885 = vadd.f32 0.0, %v1884
        %v1886 = vpop.f32.mrb[0].mxu0
        %v1887 = vpop.f32.mrb[0].mxu0
        %v1888 = vpop.f32.mrb[0].mxu0
        %1889 = vdwg.mxu0
        %v1890 = vsel %vm744, %v1885, -inf
        %1891 = vmax.xlane.f32.xlu0 %v1890
        %v1892 = vpop.xlane.xlu0 %1891
        %v1893 = vsub.f32 %v1885, %v1892
        %v1894 = vmul.f32 %v1893, 1.442695
        %v1895 = vpow.pop %v1894
        %v1896 = vsel %vm744, %v1895, 0.0
        %1897 = vadd.xlane.f32.xlu0 %v1896
        %v1898 = vpop.xlane.xlu0 %1897
        %v1899 = vrcp.pop %v1898
        %v1900 = vmul.f32 %v1895, %v1899
        %v1901 = vpack.c.bf16 %v1900, %v1900
        %1902 = vrot.lane.b32.xlu0 %v1376, 40
        %v1903 = vpop.permute.xlu0 %1902
        %v1905 = vsel %vm744, %v1901, 0
        %v1908 = vsel %vm808, %v1903, 0
        %1910 = vmatprep.subr.bf16.mxu0 0
        %1911 = vmatpush1.bf16.msra.mxu0 %v1908
        %1912 = vmatprep.subr.bf16.mxu0 0
        %1913 = vmatpush1.bf16.msra.mxu0 0
        %1914 = vmatprep.subr.bf16.mxu0 0
        %1915 = vmatpush1.bf16.msra.mxu0 0
        %1916 = vmatprep.subr.bf16.mxu0 0
        %1917 = vmatpush1.bf16.msra.mxu0 0
        %1918 = vmatprep.subr.bf16.mxu0 0
        %1919 = vmatpush1.bf16.msra.mxu0 0
        %1920 = vmatprep.subr.bf16.mxu0 0
        %1921 = vmatpush1.bf16.msra.mxu0 0
        %1922 = vmatprep.subr.bf16.mxu0 0
        %1923 = vmatpush1.bf16.msra.mxu0 0
        %1924 = vmatprep.subr.bf16.mxu0 0
        %1925 = vmatpush1.bf16.msra.mxu0 0
        %1926 = vmatprep.subr.bf16.mxu0 0
        %1927 = vmatpush1.bf16.msra.mxu0 0
        %1928 = vmatprep.subr.bf16.mxu0 0
        %1929 = vmatpush1.bf16.msra.mxu0 0
        %1930 = vmatprep.subr.bf16.mxu0 0
        %1931 = vmatpush1.bf16.msra.mxu0 0
        %1932 = vmatprep.subr.bf16.mxu0 0
        %1933 = vmatpush1.bf16.msra.mxu0 0
        %1934 = vmatprep.subr.bf16.mxu0 0
        %1935 = vmatpush1.bf16.msra.mxu0 0
        %1936 = vmatprep.subr.bf16.mxu0 0
        %1937 = vmatpush1.bf16.msra.mxu0 0
        %1938 = vmatprep.subr.bf16.mxu0 0
        %1939 = vmatpush1.bf16.msra.mxu0 0
        %1940 = vmatprep.subr.bf16.mxu0 0
        %1941 = vmatpush1.bf16.msra.mxu0 0
        %1942 = vmatprep.mubr.bf16.mxu0 0
        %1943 = vmatmul.mubr.bf16.gmra.mrb[0].mxu0 %v1905
        %v1944 = vpop.f32.mrb[0].mxu0
        %v1945 = vadd.f32 0.0, %v1944
        %v1946 = vpop.f32.mrb[0].mxu0
        %v1947 = vpop.f32.mrb[0].mxu0
        %v1948 = vpop.f32.mrb[0].mxu0
        %1949 = vdwg.mxu0
        %v1950 = vpack.c.bf16 %v1945, %v1945
        %v1952 = vsel %vm744, %v1950, 0
        %1954 = vmatprep.subr.bf16.mxu0 0
        %1955 = vmatpush1.bf16.msra.mxu0 %v1330
        %1956 = vmatprep.subr.bf16.mxu0 0
        %1957 = vmatpush1.bf16.msra.mxu0 0
        %1958 = vmatprep.subr.bf16.mxu0 0
        %1959 = vmatpush1.bf16.msra.mxu0 0
        %1960 = vmatprep.subr.bf16.mxu0 0
        %1961 = vmatpush1.bf16.msra.mxu0 0
        %1962 = vmatprep.subr.bf16.mxu0 0
        %1963 = vmatpush1.bf16.msra.mxu0 0
        %1964 = vmatprep.subr.bf16.mxu0 0
        %1965 = vmatpush1.bf16.msra.mxu0 0
        %1966 = vmatprep.subr.bf16.mxu0 0
        %1967 = vmatpush1.bf16.msra.mxu0 0
        %1968 = vmatprep.subr.bf16.mxu0 0
        %1969 = vmatpush1.bf16.msra.mxu0 0
        %1970 = vmatprep.subr.bf16.mxu0 0
        %1971 = vmatpush1.bf16.msra.mxu0 0
        %1972 = vmatprep.subr.bf16.mxu0 0
        %1973 = vmatpush1.bf16.msra.mxu0 0
        %1974 = vmatprep.subr.bf16.mxu0 0
        %1975 = vmatpush1.bf16.msra.mxu0 0
        %1976 = vmatprep.subr.bf16.mxu0 0
        %1977 = vmatpush1.bf16.msra.mxu0 0
        %1978 = vmatprep.subr.bf16.mxu0 0
        %1979 = vmatpush1.bf16.msra.mxu0 0
        %1980 = vmatprep.subr.bf16.mxu0 0
        %1981 = vmatpush1.bf16.msra.mxu0 0
        %1982 = vmatprep.subr.bf16.mxu0 0
        %1983 = vmatpush1.bf16.msra.mxu0 0
        %1984 = vmatprep.subr.bf16.mxu0 0
        %1985 = vmatpush1.bf16.msra.mxu0 0
        %1986 = vmatprep.mubr.bf16.mxu0 0
        %1987 = vmatmul.mubr.bf16.gmra.mrb[0].mxu0 %v1952
        %v1988 = vpop.f32.mrb[0].mxu0
        %v1989 = vadd.f32 0.0, %v1988
        %v1990 = vpop.f32.mrb[0].mxu0
        %v1991 = vpop.f32.mrb[0].mxu0
        %v1992 = vpop.f32.mrb[0].mxu0
        %1993 = vdwg.mxu0
        %v1994 = vadd.f32 %v1839, %v1989
        %1995 = vst.msk [vmem:[#allocation3 + $0x8] sm:$0xff] %vm689, %v1994
        %v1996 = vld [vmem:[#allocation3] sm:$0xff]
        %v1997 = vld [vmem:[#allocation3 + $0x8] sm:$0xff]
        %v1998 = vld [vmem:[%s624] sm:$0x1]
        %v2000 = vlaneseq
        %v2001 = vshrl.u32 %v2000, 7
        %v2002 = vsub.s32 0, %v2001
        %v2003 = vrot.slane %v1998, %v2002
        %v2005 = vadd.f32 %v1996, %v2003
        %v2006 = vadd.f32 %v1997, %v2003
        %v2007 = vadd.f32 %v663, %v2005
        %v2008 = vadd.f32 %v664, %v2006
        %v2009 = vld [vmem:[%s627] sm:$0x1]
        %v2010 = vld [vmem:[%s630] sm:$0x1]
        %v2011 = vsel %vm689, %v2007, 0.0
        %2012 = vadd.xlane.f32.xlu0 %v2011
        %v2013 = vpop.xlane.xlu0 %2012
        %v2014 = vsel %vm689, %v2008, 0.0
        %2015 = vadd.xlane.f32.xlu0 %v2014
        %v2016 = vpop.xlane.xlu0 %2015
        %v2017 = vrcp.pop 32.0
        %v2018 = vmul.f32 %v2013, %v2017
        %v2019 = vmul.f32 %v2016, %v2017
        %v2020 = vsub.f32 %v2007, %v2018
        %v2021 = vsub.f32 %v2008, %v2019
        %v2022 = vmul.f32 %v2020, %v2020
        %v2023 = vmul.f32 %v2021, %v2021
        %v2024 = vsel %vm689, %v2022, 0.0
        %2025 = vadd.xlane.f32.xlu0 %v2024
        %v2026 = vpop.xlane.xlu0 %2025
        %v2027 = vsel %vm689, %v2023, 0.0
        %2028 = vadd.xlane.f32.xlu0 %v2027
        %v2029 = vpop.xlane.xlu0 %2028
        %v2030 = vmul.f32 %v2026, %v2017
        %v2031 = vmul.f32 %v2029, %v2017
        %v2032 = vadd.f32 %v2030, 1e-05
        %v2033 = vadd.f32 %v2031, 1e-05
        %v2034 = vrsqrt.pop %v2032
        %v2035 = vrsqrt.pop %v2033
        %v2036 = vmul.f32 %v2020, %v2034
        %v2037 = vmul.f32 %v2021, %v2035
        %v2039 = vlaneseq
        %v2040 = vshrl.u32 %v2039, 7
        %v2041 = vsub.s32 0, %v2040
        %v2042 = vrot.slane %v2009, %v2041
        %v2044 = vmul.f32 %v2036, %v2042
        %v2045 = vmul.f32 %v2037, %v2042
        %v2047 = vlaneseq
        %v2048 = vshrl.u32 %v2047, 7
        %v2049 = vsub.s32 0, %v2048
        %v2050 = vrot.slane %v2010, %v2049
        %v2052 = vadd.f32 %v2044, %v2050
        %v2053 = vadd.f32 %v2045, %v2050
        %v2054 = vld [vmem:[%s635] sm:$0xf]
        %v2055 = vld [vmem:[%s635 + $0x4] sm:$0xf]
        %v2056 = vld [vmem:[%s635 + $0x8] sm:$0xf]
        %v2057 = vld [vmem:[%s635 + $0xc] sm:$0xf]
        %v2058 = vpack.c.bf16 %v2053, %v2052
        %v2059 = vld [vmem:[%s638] sm:$0x1]
        %v2061 = vlaneseq
        %v2062 = vshrl.u32 %v2061, 7
        %v2063 = vsub.s32 0, %v2062
        %v2064 = vrot.slane %v2059, %v2063
        %v2070 = vunpack.c.l.b16 %v2054
        %v2071 = vunpack.c.l.b16 %v2055
        %v2072 = vunpack.c.l.b16 %v2056
        %v2073 = vunpack.c.l.b16 %v2057
        %v2074 = vpack.c.b16 %v2071, %v2070
        %v2075 = vpack.c.b16 %v2073, %v2072
        %v2079 = vsel %vm689, %v2058, 0
        %2081 = vmatprep.subr.bf16.mxu0 0
        %2082 = vmatpush1.bf16.msra.mxu0 %v2074
        %2083 = vmatprep.subr.bf16.mxu0 0
        %2084 = vmatpush1.bf16.msra.mxu0 %v2075
        %2085 = vmatprep.subr.bf16.mxu0 0
        %2086 = vmatpush1.bf16.msra.mxu0 0
        %2087 = vmatprep.subr.bf16.mxu0 0
        %2088 = vmatpush1.bf16.msra.mxu0 0
        %2089 = vmatprep.subr.bf16.mxu0 0
        %2090 = vmatpush1.bf16.msra.mxu0 0
        %2091 = vmatprep.subr.bf16.mxu0 0
        %2092 = vmatpush1.bf16.msra.mxu0 0
        %2093 = vmatprep.subr.bf16.mxu0 0
        %2094 = vmatpush1.bf16.msra.mxu0 0
        %2095 = vmatprep.subr.bf16.mxu0 0
        %2096 = vmatpush1.bf16.msra.mxu0 0
        %2097 = vmatprep.subr.bf16.mxu0 0
        %2098 = vmatpush1.bf16.msra.mxu0 0
        %2099 = vmatprep.subr.bf16.mxu0 0
        %2100 = vmatpush1.bf16.msra.mxu0 0
        %2101 = vmatprep.subr.bf16.mxu0 0
        %2102 = vmatpush1.bf16.msra.mxu0 0
        %2103 = vmatprep.subr.bf16.mxu0 0
        %2104 = vmatpush1.bf16.msra.mxu0 0
        %2105 = vmatprep.subr.bf16.mxu0 0
        %2106 = vmatpush1.bf16.msra.mxu0 0
        %2107 = vmatprep.subr.bf16.mxu0 0
        %2108 = vmatpush1.bf16.msra.mxu0 0
        %2109 = vmatprep.subr.bf16.mxu0 0
        %2110 = vmatpush1.bf16.msra.mxu0 0
        %2111 = vmatprep.subr.bf16.mxu0 0
        %2112 = vmatpush1.bf16.msra.mxu0 0
        %2113 = vmatprep.mubr.bf16.mxu0 0
        %2114 = vmatmul.mubr.bf16.gmra.mrb[0].mxu0 %v2079
        %v2115 = vpop.f32.mrb[0].mxu0
        %v2116 = vadd.f32 %v2064, %v2115
        %v2117 = vpop.f32.mrb[0].mxu0
        %v2118 = vpop.f32.mrb[0].mxu0
        %v2119 = vadd.f32 %v2064, %v2118
        %v2120 = vpop.f32.mrb[0].mxu0
        %2121 = vdwg.mxu0
        %v2122 = vmax.f32 %v2116, 0.0
        %v2123 = vmax.f32 %v2119, 0.0
        %v2124 = vld [vmem:[%s643] sm:$0xf]
        %v2125 = vld [vmem:[%s643 + $0x4] sm:$0xf]
        %v2126 = vld [vmem:[%s643 + $0x8] sm:$0xf]
        %v2127 = vld [vmem:[%s643 + $0xc] sm:$0xf]
        %v2128 = vld [vmem:[%s643 + $0x10] sm:$0xf]
        %v2129 = vld [vmem:[%s643 + $0x14] sm:$0xf]
        %v2130 = vld [vmem:[%s643 + $0x18] sm:$0xf]
        %v2131 = vld [vmem:[%s643 + $0x1c] sm:$0xf]
        %v2132 = vld [vmem:[%s643 + $0x20] sm:$0xf]
        %v2133 = vld [vmem:[%s643 + $0x24] sm:$0xf]
        %v2134 = vld [vmem:[%s643 + $0x28] sm:$0xf]
        %v2135 = vld [vmem:[%s643 + $0x2c] sm:$0xf]
        %v2136 = vld [vmem:[%s643 + $0x30] sm:$0xf]
        %v2137 = vld [vmem:[%s643 + $0x34] sm:$0xf]
        %v2138 = vld [vmem:[%s643 + $0x38] sm:$0xf]
        %v2139 = vld [vmem:[%s643 + $0x3c] sm:$0xf]
        %v2140 = vpack.c.bf16 %v2123, %v2122
        %v2141 = vld [vmem:[%s646] sm:$0x1]
        %v2143 = vlaneseq
        %v2144 = vshrl.u32 %v2143, 7
        %v2145 = vsub.s32 0, %v2144
        %v2146 = vrot.slane %v2141, %v2145
        %v2164 = vunpack.c.l.b16 %v2124
        %v2165 = vunpack.c.l.b16 %v2125
        %v2166 = vunpack.c.l.b16 %v2126
        %v2167 = vunpack.c.l.b16 %v2127
        %v2168 = vunpack.c.l.b16 %v2128
        %v2169 = vunpack.c.l.b16 %v2129
        %v2170 = vunpack.c.l.b16 %v2130
        %v2171 = vunpack.c.l.b16 %v2131
        %v2172 = vunpack.c.l.b16 %v2132
        %v2173 = vunpack.c.l.b16 %v2133
        %v2174 = vunpack.c.l.b16 %v2134
        %v2175 = vunpack.c.l.b16 %v2135
        %v2176 = vunpack.c.l.b16 %v2136
        %v2177 = vunpack.c.l.b16 %v2137
        %v2178 = vunpack.c.l.b16 %v2138
        %v2179 = vunpack.c.l.b16 %v2139
        %v2180 = vpack.c.b16 %v2165, %v2164
        %v2181 = vpack.c.b16 %v2167, %v2166
        %v2182 = vpack.c.b16 %v2169, %v2168
        %v2183 = vpack.c.b16 %v2171, %v2170
        %v2184 = vpack.c.b16 %v2173, %v2172
        %v2185 = vpack.c.b16 %v2175, %v2174
        %v2186 = vpack.c.b16 %v2177, %v2176
        %v2187 = vpack.c.b16 %v2179, %v2178
        %2196 = vmatprep.subr.bf16.mxu0 0
        %2197 = vmatpush1.bf16.msra.mxu0 %v2180
        %2198 = vmatprep.subr.bf16.mxu0 0
        %2199 = vmatpush1.bf16.msra.mxu0 %v2181
        %2200 = vmatprep.subr.bf16.mxu0 0
        %2201 = vmatpush1.bf16.msra.mxu0 %v2182
        %2202 = vmatprep.subr.bf16.mxu0 0
        %2203 = vmatpush1.bf16.msra.mxu0 %v2183
        %2204 = vmatprep.subr.bf16.mxu0 0
        %2205 = vmatpush1.bf16.msra.mxu0 %v2184
        %2206 = vmatprep.subr.bf16.mxu0 0
        %2207 = vmatpush1.bf16.msra.mxu0 %v2185
        %2208 = vmatprep.subr.bf16.mxu0 0
        %2209 = vmatpush1.bf16.msra.mxu0 %v2186
        %2210 = vmatprep.subr.bf16.mxu0 0
        %2211 = vmatpush1.bf16.msra.mxu0 %v2187
        %2212 = vmatprep.subr.bf16.mxu0 0
        %2213 = vmatpush1.bf16.msra.mxu0 0
        %2214 = vmatprep.subr.bf16.mxu0 0
        %2215 = vmatpush1.bf16.msra.mxu0 0
        %2216 = vmatprep.subr.bf16.mxu0 0
        %2217 = vmatpush1.bf16.msra.mxu0 0
        %2218 = vmatprep.subr.bf16.mxu0 0
        %2219 = vmatpush1.bf16.msra.mxu0 0
        %2220 = vmatprep.subr.bf16.mxu0 0
        %2221 = vmatpush1.bf16.msra.mxu0 0
        %2222 = vmatprep.subr.bf16.mxu0 0
        %2223 = vmatpush1.bf16.msra.mxu0 0
        %2224 = vmatprep.subr.bf16.mxu0 0
        %2225 = vmatpush1.bf16.msra.mxu0 0
        %2226 = vmatprep.subr.bf16.mxu0 0
        %2227 = vmatpush1.bf16.msra.mxu0 0
        %2228 = vmatprep.mubr.bf16.mxu0 0
        %2229 = vmatmul.mubr.bf16.gmra.mrb[0].mxu0 %v2140
        %v2230 = vpop.f32.mrb[0].mxu0
        %v2231 = vadd.f32 %v2146, %v2230
        %v2232 = vpop.f32.mrb[0].mxu0
        %v2233 = vpop.f32.mrb[0].mxu0
        %v2234 = vadd.f32 %v2146, %v2233
        %v2235 = vpop.f32.mrb[0].mxu0
        %2236 = vdwg.mxu0
        %v2237 = vadd.f32 %v2052, %v2231
        %v2238 = vadd.f32 %v2053, %v2234
        %v2239 = vld [vmem:[%s649] sm:$0x1]
        %v2240 = vld [vmem:[%s652] sm:$0x1]
        %v2241 = vsel %vm689, %v2237, 0.0
        %2242 = vadd.xlane.f32.xlu0 %v2241
        %v2243 = vpop.xlane.xlu0 %2242
        %v2244 = vsel %vm689, %v2238, 0.0
        %2245 = vadd.xlane.f32.xlu0 %v2244
        %v2246 = vpop.xlane.xlu0 %2245
        %v2247 = vmul.f32 %v2243, %v2017
        %v2248 = vmul.f32 %v2246, %v2017
        %v2249 = vsub.f32 %v2237, %v2247
        %v2250 = vsub.f32 %v2238, %v2248
        %v2251 = vmul.f32 %v2249, %v2249
        %v2252 = vmul.f32 %v2250, %v2250
        %v2253 = vsel %vm689, %v2251, 0.0
        %2254 = vadd.xlane.f32.xlu0 %v2253
        %v2255 = vpop.xlane.xlu0 %2254
        %v2256 = vsel %vm689, %v2252, 0.0
        %2257 = vadd.xlane.f32.xlu0 %v2256
        %v2258 = vpop.xlane.xlu0 %2257
        %v2259 = vmul.f32 %v2255, %v2017
        %v2260 = vmul.f32 %v2258, %v2017
        %v2261 = vadd.f32 %v2259, 1e-05
        %v2262 = vadd.f32 %v2260, 1e-05
        %v2263 = vrsqrt.pop %v2261
        %v2264 = vrsqrt.pop %v2262
        %v2265 = vmul.f32 %v2249, %v2263
        %v2266 = vmul.f32 %v2250, %v2264
        %v2268 = vlaneseq
        %v2269 = vshrl.u32 %v2268, 7
        %v2270 = vsub.s32 0, %v2269
        %v2271 = vrot.slane %v2239, %v2270
        %v2273 = vmul.f32 %v2265, %v2271
        %v2274 = vmul.f32 %v2266, %v2271
        %v2276 = vlaneseq
        %v2277 = vshrl.u32 %v2276, 7
        %v2278 = vsub.s32 0, %v2277
        %v2279 = vrot.slane %v2240, %v2278
        %v2281 = vadd.f32 %v2273, %v2279
        %v2282 = vadd.f32 %v2274, %v2279
        %2283 = vst.msk [vmem:[#allocation2] sm:$0xff] %vm689, %v2281
        %2284 = vst.msk [vmem:[#allocation2 + $0x8] sm:$0xff] %vm689, %v2282
        %p2285 = scmp.eq.s32.totalorder %s27, 1
        // Predicated region
        $region85: #{tpu_custom_call.1} parent=79 // pred_check
          %p2286 = pneg %p2285
        $region86: #{tpu_custom_call.1} parent=79 // pred_check_branch
          %2288 = sbr.rel (%p2286) target = $region88
        $region87: #{tpu_custom_call.1} parent=79 // pred_region
          %v2289 = vld [vmem:[%s13] sm:$0xf]
          %v2290 = vld [vmem:[%s13 + $0x4] sm:$0xf]
          %v2291 = vld [vmem:[%s13 + $0x8] sm:$0xf]
          %v2292 = vld [vmem:[%s13 + $0xc] sm:$0xf]
          %v2293 = vpack.c.bf16 %v2282, %v2281
          %v2294 = vld [vmem:[%s14] sm:$0x1]
          %v2296 = vlaneseq
          %v2297 = vshrl.u32 %v2296, 7
          %v2298 = vsub.s32 0, %v2297
          %v2299 = vrot.slane %v2294, %v2298
          %v2305 = vunpack.c.l.b16 %v2289
          %v2306 = vunpack.c.l.b16 %v2290
          %v2307 = vunpack.c.l.b16 %v2291
          %v2308 = vunpack.c.l.b16 %v2292
          %v2309 = vpack.c.b16 %v2306, %v2305
          %v2310 = vpack.c.b16 %v2308, %v2307
          %v2314 = vsel %vm689, %v2293, 0
          %2316 = vmatprep.subr.bf16.mxu0 0
          %2317 = vmatpush1.bf16.msra.mxu0 %v2309
          %2318 = vmatprep.subr.bf16.mxu0 0
          %2319 = vmatpush1.bf16.msra.mxu0 %v2310
          %2320 = vmatprep.subr.bf16.mxu0 0
          %2321 = vmatpush1.bf16.msra.mxu0 0
          %2322 = vmatprep.subr.bf16.mxu0 0
          %2323 = vmatpush1.bf16.msra.mxu0 0
          %2324 = vmatprep.subr.bf16.mxu0 0
          %2325 = vmatpush1.bf16.msra.mxu0 0
          %2326 = vmatprep.subr.bf16.mxu0 0
          %2327 = vmatpush1.bf16.msra.mxu0 0
          %2328 = vmatprep.subr.bf16.mxu0 0
          %2329 = vmatpush1.bf16.msra.mxu0 0
          %2330 = vmatprep.subr.bf16.mxu0 0
          %2331 = vmatpush1.bf16.msra.mxu0 0
          %2332 = vmatprep.subr.bf16.mxu0 0
          %2333 = vmatpush1.bf16.msra.mxu0 0
          %2334 = vmatprep.subr.bf16.mxu0 0
          %2335 = vmatpush1.bf16.msra.mxu0 0
          %2336 = vmatprep.subr.bf16.mxu0 0
          %2337 = vmatpush1.bf16.msra.mxu0 0
          %2338 = vmatprep.subr.bf16.mxu0 0
          %2339 = vmatpush1.bf16.msra.mxu0 0
          %2340 = vmatprep.subr.bf16.mxu0 0
          %2341 = vmatpush1.bf16.msra.mxu0 0
          %2342 = vmatprep.subr.bf16.mxu0 0
          %2343 = vmatpush1.bf16.msra.mxu0 0
          %2344 = vmatprep.subr.bf16.mxu0 0
          %2345 = vmatpush1.bf16.msra.mxu0 0
          %2346 = vmatprep.subr.bf16.mxu0 0
          %2347 = vmatpush1.bf16.msra.mxu0 0
          %2348 = vmatprep.mubr.bf16.mxu0 0
          %2349 = vmatmul.mubr.bf16.gmra.mrb[0].mxu0 %v2314
          %v2350 = vpop.f32.mrb[0].mxu0
          %v2351 = vadd.f32 %v2299, %v2350
          %v2352 = vpop.f32.mrb[0].mxu0
          %v2353 = vpop.f32.mrb[0].mxu0
          %v2354 = vadd.f32 %v2299, %v2353
          %v2355 = vpop.f32.mrb[0].mxu0
          %2356 = vdwg.mxu0
          %2357 = vst [vmem:[#allocation4] sm:$0xff] %v2351
          %2358 = vst [vmem:[#allocation4 + $0x8] sm:$0xff] %v2354
        $region88: #{tpu_custom_call.1} parent=79 // pred_fallthru
          _
        // Predicated region
        $region89: #{tpu_custom_call.1} parent=79 // pred_check
          %p2359 = pneg %p415
        $region90: #{tpu_custom_call.1} parent=79 // pred_check_branch
          %2361 = sbr.rel (%p2359) target = $region92
        $region91: #{tpu_custom_call.1} parent=79 // pred_region
          %s2363 = ssub.s32 256, 256
          %2364 = vsyncadd [#allocation5], %s2363
          %s2365 = sshll.u32 [#allocation4], 4
          %s2366 = int_to_ptr.vmem [resolvable:$true] %s2365
          %2371 = dma.vmem_to_hbm [thread:$0]  %s2366, 256, %s15, [#allocation5], 128, 128, 8
        $region92: #{tpu_custom_call.1} parent=79 // pred_fallthru
          _
        // Predicated region
        $region93: #{tpu_custom_call.1} parent=79 // pred_check
          %p2372 = pneg %p415
        $region94: #{tpu_custom_call.1} parent=79 // pred_check_branch
          %2374 = sbr.rel (%p2372) target = $region96
        $region95: #{tpu_custom_call.1} parent=79 // pred_region
          %2375 = dma.done [#allocation5], 256
        $region96: #{tpu_custom_call.1} parent=79 // pred_fallthru
          _
      $region80: #{tpu_custom_call.1} parent=5 // pred_fallthru
        _
      %p2376 = scmp.le.s32.totalorder 2, %s22
      // Predicated region
      $region97: #{tpu_custom_call.1} parent=5 // pred_check
        %p2377 = pneg %p2376
      $region98: #{tpu_custom_call.1} parent=5 // pred_check_branch
        %2379 = sbr.rel (%p2377) target = $region100
      $region99: #{tpu_custom_call.1} parent=5 // pred_region
        %s2380 = ssub.s32 %s22, 2
      $region100: #{tpu_custom_call.1} parent=5 // pred_fallthru
        _
    $region6: #{tpu_custom_call.1} parent=1 // loop_footer
      %s26 = sadd.s32 1, %s22
    $region7: #{tpu_custom_call.1} parent=1 // loop_footer_branch
      %21 = sbr.rel target = $region3
    $region8: #{tpu_custom_call.1} parent=1 // loop_exit
      _
    %2381 = vsyncpa [#allocation5], 1
    %s2382 = scalar_lea.sflag [#allocation5], 1
    %2383 = vsyncpa %s2382, 1

</llo_original>
